<compile_context>
chip_gen: v6e
topology: v6e:2x2x1
jax: 0.10.0
libtpu: 0.0.40
codegen_flags: <defaults>
</compile_context>

<pallas_src>
import jax
import jax.numpy as jnp
from jax import lax
from jax.experimental import pallas as pl
from jax.experimental.pallas import tpu as pltpu


_V_CHUNK = 512        # contraction-chunk size along the vocab axis (mult. of 128)
_NUM_SPLITS = 3       # bf16 terms reproducing the f32 table (3 == Precision.HIGH)


def fm_kernel(bias_ref, idx_ref, table_ref, out_ref):
    # bias_ref  : (1,)           float32 in SMEM
    # idx_ref   : (F, TB)        int32   field indices, batch on lanes
    # table_ref : (S, 2E+1, V)   bf16    bf16 expansion of [emb | emb^2 | fc]^T
    #                                    (sum_s table[s] == f32 table to ~2^-24)
    # out_ref   : (1, TB)        float32 lane-dense output
    F, TB = idx_ref.shape
    S, two_e_p1, V = table_ref.shape
    E = (two_e_p1 - 1) // 2

    res = jnp.zeros((two_e_p1, TB), jnp.float32)

    # Chunk the contraction (V) axis: caps the one-hot counts intermediate at
    # (chunk, TB) and lets the VPU mask-build of the next chunk overlap the
    # MXU matmul of the current one.  V is static -> loop fully unrolled.
    for start in range(0, V, _V_CHUNK):
        csize = min(_V_CHUNK, V - start)
        # counts[v, b] = number of fields of sample b hitting vocab row start+v
        # (duplicate indices across fields are handled correctly by counts).
        row_ids = lax.broadcasted_iota(jnp.int32, (csize, TB), 0) + start
        counts = jnp.zeros((csize, TB), jnp.float32)
        for f in range(F):                              # F tiny & static -> unrolled
            counts += (row_ids == idx_ref[pl.ds(f, 1), :]).astype(jnp.float32)
        counts_bf = counts.astype(jnp.bfloat16)         # exact: integer counts <= F

        # Gather + sum over fields:  res[j, b] += sum_v table[j, v] * counts[v, b]
        # as S native single-pass bf16 MXU matmuls with f32 accumulation.
        for s_i in range(S):
            res = res + jnp.dot(table_ref[s_i, :, start:start + csize], counts_bf,
                                preferred_element_type=jnp.float32)

    s      = res[0:E, :]                 # (E, TB)  sum_f e_f
    sum_sq = res[E:2 * E, :]             # (E, TB)  sum_f e_f^2
    lin    = res[2 * E:2 * E + 1, :]     # (1, TB)  sum_f w_f

    ix = jnp.sum(s * s - sum_sq, axis=0, keepdims=True)  # (1, TB) sublane reduce
    out_ref[...] = 0.5 * ix + lin + bias_ref[0]


def _tensorcores_per_chip():
    try:
        kind = jax.devices()[0].device_kind.lower()
    except Exception:
        return 1
    # Megacore chips (v4 / v5p / v7x) expose two TensorCores worth of
    # "parallel" grid sharding; inference chips (v5e / v6e) have one.
    return 2 if any(t in kind for t in ("v7", "7x", "v4", "v5p")) else 1


def _pick_tile_b(B, num_tc, cap=2048):
    """Largest 128-aligned divisor of B (<= cap) giving >= num_tc grid steps."""
    if B % 128 != 0:
        return B                       # single full-array block (small-B fallback)
    best = None
    t = 128
    while t <= min(B, cap):
        if B % t == 0 and B // t >= num_tc:
            best = t
        t += 128
    if best is not None:
        return best
    return B if B <= cap else 128


def _vmem_limit_bytes(E, V, F, tile_b, table_buffers):
    v_chunk = min(_V_CHUNK, V)
    table = _NUM_SPLITS * (2 * E + 1) * V * 2 * table_buffers     # bf16 table
    counts = v_chunk * tile_b * (4 + 2)                           # f32 build + bf16 cast
    acc = (2 * E + 1) * tile_b * 4                                # res accumulator
    io = 2 * (F * tile_b * 4 + tile_b * 4)                        # dbl-buffered idx/out
    demand = table + counts + acc + io
    # Headroom x2 + 4 MiB slack, floored at 32 MiB, capped at 64 MiB (v7x).
    return int(min(max(2 * demand + (4 << 20), 32 << 20), 64 << 20))


def _build_fm_call(B, F, V, E, tile_b, single_buffer_table):
    two_e_p1 = 2 * E + 1

    table_kwargs = {}
    if single_buffer_table and hasattr(pl, "Buffered"):
        # Constant index_map -> the table is never re-fetched; one buffer is
        # enough, halving its VMEM residency vs the default double buffer.
        table_kwargs["pipeline_mode"] = pl.Buffered(buffer_count=1)
    table_spec = pl.BlockSpec((_NUM_SPLITS, two_e_p1, V), lambda i: (0, 0, 0),
                              **table_kwargs)

    cost = pl.CostEstimate(
        flops=2 * _NUM_SPLITS * two_e_p1 * V * B + 6 * E * B,
        transcendentals=0,
        bytes_accessed=B * F * 4 + _NUM_SPLITS * two_e_p1 * V * 2 + B * 4,
    )

    return pl.pallas_call(
        fm_kernel,
        out_shape=jax.ShapeDtypeStruct((1, B), jnp.float32),
        grid_spec=pltpu.PrefetchScalarGridSpec(
            num_scalar_prefetch=0,
            grid=(B // tile_b,),
            in_specs=[
                pl.BlockSpec(memory_space=pltpu.MemorySpace.SMEM),   # bias (1,)
                pl.BlockSpec((F, tile_b), lambda i: (0, i)),         # indices tile
                table_spec,                                          # resident table
            ],
            out_specs=pl.BlockSpec((1, tile_b), lambda i: (0, i)),   # lane-dense out
        ),
        compiler_params=pltpu.CompilerParams(
            dimension_semantics=("parallel",),
            vmem_limit_bytes=_vmem_limit_bytes(
                E, V, F, tile_b, 1 if single_buffer_table else 2),
        ),
        cost_estimate=cost,
    )


def _split_table_bf16(table_f32, num_terms):
    """bf16 multi-term expansion: sum(terms) == table_f32 to ~2^-(8*num_terms)."""
    terms = []
    resid = table_f32
    for _ in range(num_terms):
        t = resid.astype(jnp.bfloat16)
        terms.append(t)
        resid = resid - t.astype(jnp.float32)
    return jnp.stack(terms, axis=0)            # (num_terms, 2E+1, V) bf16


def fm_forward(interaction_pairs, fc_weight, emb_weight, bias, *, tile_b=None):
    """interaction_pairs: (B, F) int32 indices into the shared embedding tables."""
    B, F = interaction_pairs.shape
    V, E = emb_weight.shape

    if tile_b is None:
        tile_b = _pick_tile_b(B, _tensorcores_per_chip())
    assert B % tile_b == 0
    assert tile_b == B or tile_b % 128 == 0, "lane tiles must be 128-aligned"

    # Tiny glue (O(V*E) and O(B*F)): batch-last indices and augmented table.
    idx_t = interaction_pairs.astype(jnp.int32).T                            # (F, B)
    table = jnp.concatenate(
        [emb_weight, emb_weight * emb_weight, fc_weight[:, :1]], axis=1).T   # (2E+1, V)
    table_bf = _split_table_bf16(table.astype(jnp.float32), _NUM_SPLITS)

    args = (bias.astype(jnp.float32), idx_t, table_bf)
    try:
        out = _build_fm_call(B, F, V, E, tile_b, True)(*args)
    except Exception:
        # pl.Buffered(1) / pipeline_mode unsupported on this jax version:
        # rebuild with the default (double-buffered) table spec.
        out = _build_fm_call(B, F, V, E, tile_b, False)(*args)

    return out[0]                       # (1, B) -> (B,)  == squeeze(1)


def reference_forward(interaction_pairs, fc_weight, emb_weight, bias):
    emb = jnp.take(emb_weight, interaction_pairs, axis=0)          # (B, F, E)
    lin = jnp.take(fc_weight, interaction_pairs, axis=0)           # (B, F, 1)
    linear = jnp.sum(lin, axis=1) + bias                           # (B, 1)
    square_of_sum = jnp.sum(emb, axis=1) ** 2
    sum_of_square = jnp.sum(emb ** 2, axis=1)
    ix = jnp.sum(square_of_sum - sum_of_square, axis=1, keepdims=True)
    return (linear + 0.5 * ix)[:, 0]


if __name__ == "__main__":
    # Small deterministic setup; tile_b is auto-picked per chip generation
    # (1 grid step on v5e/v6e, 2 steps on megacore chips such as v7x).
    field_dims = 64    # total vocabulary size of the shared embedding tables
    embed_dim = 32
    B = 1024           # batch
    F = 2              # number of fields per interaction pair

    key = jax.random.PRNGKey(0)
    k_idx, k_fc, k_emb = jax.random.split(key, 3)

    interaction_pairs = jax.random.randint(k_idx, (B, F), 0, field_dims,
                                           dtype=jnp.int32)

    # FeaturesLinear.fc : nn.Embedding(field_dims, 1), default N(0, 1) init.
    fc_weight = jax.random.normal(k_fc, (field_dims, 1), dtype=jnp.float32)
    # FeaturesLinear.bias : zeros((1,))
    bias = jnp.zeros((1,), dtype=jnp.float32)
    # embedding : nn.Embedding(field_dims, embed_dim), xavier_uniform_ init.
    limit = (6.0 / (field_dims + embed_dim)) ** 0.5
    emb_weight = jax.random.uniform(k_emb, (field_dims, embed_dim),
                                    minval=-limit, maxval=limit,
                                    dtype=jnp.float32)

    out = fm_forward(interaction_pairs, fc_weight, emb_weight, bias)
    out = jax.block_until_ready(out)

    ref = reference_forward(interaction_pairs, fc_weight, emb_weight, bias)
    assert out.shape == (B,)
    assert jnp.allclose(out, ref, atol=1e-4, rtol=1e-4), (out, ref)

    print("KERNEL_OK")
</pallas_src>

<mosaic_0001>
module attributes {stable_mosaic.version = 11 : i64} {
  func.func @fm_kernel(%arg0: i32, %arg1: memref<1xf32, #tpu.memory_space<smem>>, %arg2: memref<2x1024xi32, #tpu.memory_space<vmem>>, %arg3: memref<3x65x64xbf16, #tpu.memory_space<vmem>>, %arg4: memref<1x1024xf32, #tpu.memory_space<vmem>>) attributes {dimension_semantics = [#tpu.dimension_semantics<parallel>], iteration_bounds = array<i64: 1>, scalar_prefetch = 0 : i64, scratch_operands = 0 : i64, tpu.core_type = #tpu.core_type<tc>, window_params = [{transform_indices = @transform_0, window_bounds = array<i64: 1>}, {transform_indices = @transform_1, window_bounds = array<i64: 2, 1024>}, {pipeline_mode = #tpu.pipeline_mode<synchronous>, transform_indices = @transform_2, window_bounds = array<i64: 3, 65, 64>}, {transform_indices = @transform_3, window_bounds = array<i64: 1, 1024>}]} {
    %cst = arith.constant 0.000000e+00 : f32
    %0 = vector.broadcast %cst : f32 to vector<65x1024xf32>
    %1 = tpu.iota {dimensions = array<i32: 0>} : vector<64x1024xi32>
    %c0_i32 = arith.constant 0 : i32
    %2 = vector.broadcast %c0_i32 : i32 to vector<64x1024xi32>
    %3 = arith.addi %1, %2 : vector<64x1024xi32>
    %cst_0 = arith.constant 0.000000e+00 : f32
    %4 = vector.broadcast %cst_0 : f32 to vector<64x1024xf32>
    %c0 = arith.constant 0 : index
    %c0_1 = arith.constant 0 : index
    %5 = vector.load %arg2[%c0, %c0_1] : memref<2x1024xi32, #tpu.memory_space<vmem>>, vector<1x1024xi32>
    %6 = vector.broadcast %5 : vector<1x1024xi32> to vector<64x1024xi32>
    %7 = arith.cmpi eq, %3, %6 : vector<64x1024xi32>
    %8 = arith.extui %7 : vector<64x1024xi1> to vector<64x1024xi32>
    %9 = arith.sitofp %8 : vector<64x1024xi32> to vector<64x1024xf32>
    %10 = arith.addf %4, %9 : vector<64x1024xf32>
    %c1 = arith.constant 1 : index
    %c0_2 = arith.constant 0 : index
    %11 = vector.load %arg2[%c1, %c0_2] : memref<2x1024xi32, #tpu.memory_space<vmem>>, vector<1x1024xi32>
    %12 = vector.broadcast %11 : vector<1x1024xi32> to vector<64x1024xi32>
    %13 = arith.cmpi eq, %3, %12 : vector<64x1024xi32>
    %14 = arith.extui %13 : vector<64x1024xi1> to vector<64x1024xi32>
    %15 = arith.sitofp %14 : vector<64x1024xi32> to vector<64x1024xf32>
    %16 = arith.addf %10, %15 : vector<64x1024xf32>
    %17 = arith.truncf %16 : vector<64x1024xf32> to vector<64x1024xbf16>
    %c0_3 = arith.constant 0 : index
    %c0_4 = arith.constant 0 : index
    %c0_5 = arith.constant 0 : index
    %18 = vector.load %arg3[%c0_3, %c0_4, %c0_5] : memref<3x65x64xbf16, #tpu.memory_space<vmem>>, vector<1x65x64xbf16>
    %19 = vector.shape_cast %18 : vector<1x65x64xbf16> to vector<65x64xbf16>
    %cst_6 = arith.constant dense<0.000000e+00> : vector<65x1024xf32>
    %20 = tpu.matmul %19, %17, %cst_6 {dimension_numbers = #tpu.dot_dimension_numbers<[1], [0], [0], [1], [0, 0, 1, 1], [], []>} : vector<65x64xbf16>, vector<64x1024xbf16>, vector<65x1024xf32> -> vector<65x1024xf32>
    %21 = arith.addf %0, %20 : vector<65x1024xf32>
    %c1_7 = arith.constant 1 : index
    %c0_8 = arith.constant 0 : index
    %c0_9 = arith.constant 0 : index
    %22 = vector.load %arg3[%c1_7, %c0_8, %c0_9] : memref<3x65x64xbf16, #tpu.memory_space<vmem>>, vector<1x65x64xbf16>
    %23 = vector.shape_cast %22 : vector<1x65x64xbf16> to vector<65x64xbf16>
    %cst_10 = arith.constant dense<0.000000e+00> : vector<65x1024xf32>
    %24 = tpu.matmul %23, %17, %cst_10 {dimension_numbers = #tpu.dot_dimension_numbers<[1], [0], [0], [1], [0, 0, 1, 1], [], []>} : vector<65x64xbf16>, vector<64x1024xbf16>, vector<65x1024xf32> -> vector<65x1024xf32>
    %25 = arith.addf %21, %24 : vector<65x1024xf32>
    %c2 = arith.constant 2 : index
    %c0_11 = arith.constant 0 : index
    %c0_12 = arith.constant 0 : index
    %26 = vector.load %arg3[%c2, %c0_11, %c0_12] : memref<3x65x64xbf16, #tpu.memory_space<vmem>>, vector<1x65x64xbf16>
    %27 = vector.shape_cast %26 : vector<1x65x64xbf16> to vector<65x64xbf16>
    %cst_13 = arith.constant dense<0.000000e+00> : vector<65x1024xf32>
    %28 = tpu.matmul %27, %17, %cst_13 {dimension_numbers = #tpu.dot_dimension_numbers<[1], [0], [0], [1], [0, 0, 1, 1], [], []>} : vector<65x64xbf16>, vector<64x1024xbf16>, vector<65x1024xf32> -> vector<65x1024xf32>
    %29 = arith.addf %25, %28 : vector<65x1024xf32>
    %30 = vector.extract_strided_slice %29 {offsets = [0, 0], sizes = [32, 1024], strides = [1, 1]} : vector<65x1024xf32> to vector<32x1024xf32>
    %31 = vector.extract_strided_slice %29 {offsets = [32, 0], sizes = [32, 1024], strides = [1, 1]} : vector<65x1024xf32> to vector<32x1024xf32>
    %32 = vector.extract_strided_slice %29 {offsets = [64, 0], sizes = [1, 1024], strides = [1, 1]} : vector<65x1024xf32> to vector<1x1024xf32>
    %33 = arith.mulf %30, %30 : vector<32x1024xf32>
    %34 = arith.subf %33, %31 : vector<32x1024xf32>
    %cst_14 = arith.constant dense<0.000000e+00> : vector<1024xf32>
    %35 = vector.multi_reduction <add>, %34, %cst_14 [0] : vector<32x1024xf32> to vector<1024xf32>
    %36 = vector.shape_cast %35 : vector<1024xf32> to vector<1x1024xf32>
    %cst_15 = arith.constant 5.000000e-01 : f32
    %37 = vector.broadcast %cst_15 : f32 to vector<1x1024xf32>
    %38 = arith.mulf %37, %36 : vector<1x1024xf32>
    %39 = arith.addf %38, %32 : vector<1x1024xf32>
    %c0_16 = arith.constant 0 : index
    %40 = memref.load %arg1[%c0_16] : memref<1xf32, #tpu.memory_space<smem>>
    %41 = vector.broadcast %40 : f32 to vector<1x1024xf32>
    %42 = arith.addf %39, %41 : vector<1x1024xf32>
    %c0_17 = arith.constant 0 : index
    %c0_18 = arith.constant 0 : index
    %43 = vector.load %arg4[%c0_17, %c0_18] : memref<1x1024xf32, #tpu.memory_space<vmem>>, vector<1x1024xf32>
    tpu.vector_store %arg4[%c0_17, %c0_18], %42 {strides = array<i32>} : memref<1x1024xf32, #tpu.memory_space<vmem>>, vector<1x1024xf32>,
    return
  }
  func.func @transform_0(%arg0: i32) -> i32 {
    %c0_i32 = arith.constant 0 : i32
    %c0_i32_0 = arith.constant 0 : i32
    return %c0_i32 : i32
  }
  func.func @transform_1(%arg0: i32) -> (i32, i32) {
    %c0_i32 = arith.constant 0 : i32
    %c0_i32_0 = arith.constant 0 : i32
    return %c0_i32, %arg0 : i32, i32
  }
  func.func @transform_2(%arg0: i32) -> (i32, i32, i32) {
    %c0_i32 = arith.constant 0 : i32
    %c0_i32_0 = arith.constant 0 : i32
    %c0_i32_1 = arith.constant 0 : i32
    %c0_i32_2 = arith.constant 0 : i32
    return %c0_i32, %c0_i32_0, %c0_i32_1 : i32, i32, i32
  }
  func.func @transform_3(%arg0: i32) -> (i32, i32) {
    %c0_i32 = arith.constant 0 : i32
    %c0_i32_0 = arith.constant 0 : i32
    return %c0_i32, %arg0 : i32, i32
  }
}

module attributes {stable_mosaic.version = 11 : i64} {
  func.func @fm_kernel(%arg0: i32, %arg1: memref<1xf32, #tpu.memory_space<smem>>, %arg2: memref<2x1024xi32, #tpu.memory_space<vmem>>, %arg3: memref<3x65x64xbf16, #tpu.memory_space<vmem>>, %arg4: memref<1x1024xf32, #tpu.memory_space<vmem>>) attributes {dimension_semantics = [#tpu.dimension_semantics<parallel>], iteration_bounds = array<i64: 1>, scalar_prefetch = 0 : i64, scratch_operands = 0 : i64, tpu.core_type = #tpu.core_type<tc>, window_params = [{transform_indices = @transform_0, window_bounds = array<i64: 1>}, {transform_indices = @transform_1, window_bounds = array<i64: 2, 1024>}, {pipeline_mode = #tpu.pipeline_mode<synchronous>, transform_indices = @transform_2, window_bounds = array<i64: 3, 65, 64>}, {transform_indices = @transform_3, window_bounds = array<i64: 1, 1024>}]} {
    %cst = arith.constant 0.000000e+00 : f32
    %0 = vector.broadcast %cst : f32 to vector<65x1024xf32>
    %1 = tpu.iota {dimensions = array<i32: 0>} : vector<64x1024xi32>
    %c0_i32 = arith.constant 0 : i32
    %2 = vector.broadcast %c0_i32 : i32 to vector<64x1024xi32>
    %3 = arith.addi %1, %2 : vector<64x1024xi32>
    %cst_0 = arith.constant 0.000000e+00 : f32
    %4 = vector.broadcast %cst_0 : f32 to vector<64x1024xf32>
    %c0 = arith.constant 0 : index
    %c0_1 = arith.constant 0 : index
    %5 = vector.load %arg2[%c0, %c0_1] : memref<2x1024xi32, #tpu.memory_space<vmem>>, vector<1x1024xi32>
    %6 = vector.broadcast %5 : vector<1x1024xi32> to vector<64x1024xi32>
    %7 = arith.cmpi eq, %3, %6 : vector<64x1024xi32>
    %8 = arith.extui %7 : vector<64x1024xi1> to vector<64x1024xi32>
    %9 = arith.sitofp %8 : vector<64x1024xi32> to vector<64x1024xf32>
    %10 = arith.addf %4, %9 : vector<64x1024xf32>
    %c1 = arith.constant 1 : index
    %c0_2 = arith.constant 0 : index
    %11 = vector.load %arg2[%c1, %c0_2] : memref<2x1024xi32, #tpu.memory_space<vmem>>, vector<1x1024xi32>
    %12 = vector.broadcast %11 : vector<1x1024xi32> to vector<64x1024xi32>
    %13 = arith.cmpi eq, %3, %12 : vector<64x1024xi32>
    %14 = arith.extui %13 : vector<64x1024xi1> to vector<64x1024xi32>
    %15 = arith.sitofp %14 : vector<64x1024xi32> to vector<64x1024xf32>
    %16 = arith.addf %10, %15 : vector<64x1024xf32>
    %17 = arith.truncf %16 : vector<64x1024xf32> to vector<64x1024xbf16>
    %c0_3 = arith.constant 0 : index
    %c0_4 = arith.constant 0 : index
    %c0_5 = arith.constant 0 : index
    %18 = vector.load %arg3[%c0_3, %c0_4, %c0_5] : memref<3x65x64xbf16, #tpu.memory_space<vmem>>, vector<1x65x64xbf16>
    %19 = vector.shape_cast %18 : vector<1x65x64xbf16> to vector<65x64xbf16>
    %cst_6 = arith.constant dense<0.000000e+00> : vector<65x1024xf32>
    %20 = tpu.matmul %19, %17, %cst_6 {dimension_numbers = #tpu.dot_dimension_numbers<[1], [0], [0], [1], [0, 0, 1, 1], [], []>} : vector<65x64xbf16>, vector<64x1024xbf16>, vector<65x1024xf32> -> vector<65x1024xf32>
    %21 = arith.addf %0, %20 : vector<65x1024xf32>
    %c1_7 = arith.constant 1 : index
    %c0_8 = arith.constant 0 : index
    %c0_9 = arith.constant 0 : index
    %22 = vector.load %arg3[%c1_7, %c0_8, %c0_9] : memref<3x65x64xbf16, #tpu.memory_space<vmem>>, vector<1x65x64xbf16>
    %23 = vector.shape_cast %22 : vector<1x65x64xbf16> to vector<65x64xbf16>
    %cst_10 = arith.constant dense<0.000000e+00> : vector<65x1024xf32>
    %24 = tpu.matmul %23, %17, %cst_10 {dimension_numbers = #tpu.dot_dimension_numbers<[1], [0], [0], [1], [0, 0, 1, 1], [], []>} : vector<65x64xbf16>, vector<64x1024xbf16>, vector<65x1024xf32> -> vector<65x1024xf32>
    %25 = arith.addf %21, %24 : vector<65x1024xf32>
    %c2 = arith.constant 2 : index
    %c0_11 = arith.constant 0 : index
    %c0_12 = arith.constant 0 : index
    %26 = vector.load %arg3[%c2, %c0_11, %c0_12] : memref<3x65x64xbf16, #tpu.memory_space<vmem>>, vector<1x65x64xbf16>
    %27 = vector.shape_cast %26 : vector<1x65x64xbf16> to vector<65x64xbf16>
    %cst_13 = arith.constant dense<0.000000e+00> : vector<65x1024xf32>
    %28 = tpu.matmul %27, %17, %cst_13 {dimension_numbers = #tpu.dot_dimension_numbers<[1], [0], [0], [1], [0, 0, 1, 1], [], []>} : vector<65x64xbf16>, vector<64x1024xbf16>, vector<65x1024xf32> -> vector<65x1024xf32>
    %29 = arith.addf %25, %28 : vector<65x1024xf32>
    %30 = vector.extract_strided_slice %29 {offsets = [0, 0], sizes = [32, 1024], strides = [1, 1]} : vector<65x1024xf32> to vector<32x1024xf32>
    %31 = vector.extract_strided_slice %29 {offsets = [32, 0], sizes = [32, 1024], strides = [1, 1]} : vector<65x1024xf32> to vector<32x1024xf32>
    %32 = vector.extract_strided_slice %29 {offsets = [64, 0], sizes = [1, 1024], strides = [1, 1]} : vector<65x1024xf32> to vector<1x1024xf32>
    %33 = arith.mulf %30, %30 : vector<32x1024xf32>
    %34 = arith.subf %33, %31 : vector<32x1024xf32>
    %cst_14 = arith.constant dense<0.000000e+00> : vector<1024xf32>
    %35 = vector.multi_reduction <add>, %34, %cst_14 [0] : vector<32x1024xf32> to vector<1024xf32>
    %36 = vector.shape_cast %35 : vector<1024xf32> to vector<1x1024xf32>
    %cst_15 = arith.constant 5.000000e-01 : f32
    %37 = vector.broadcast %cst_15 : f32 to vector<1x1024xf32>
    %38 = arith.mulf %37, %36 : vector<1x1024xf32>
    %39 = arith.addf %38, %32 : vector<1x1024xf32>
    %c0_16 = arith.constant 0 : index
    %40 = memref.load %arg1[%c0_16] : memref<1xf32, #tpu.memory_space<smem>>
    %41 = vector.broadcast %40 : f32 to vector<1x1024xf32>
    %42 = arith.addf %39, %41 : vector<1x1024xf32>
    %c0_17 = arith.constant 0 : index
    %c0_18 = arith.constant 0 : index
    %43 = vector.load %arg4[%c0_17, %c0_18] : memref<1x1024xf32, #tpu.memory_space<vmem>>, vector<1x1024xf32>
    tpu.vector_store %arg4[%c0_17, %c0_18], %42 {strides = array<i32>} : memref<1x1024xf32, #tpu.memory_space<vmem>>, vector<1x1024xf32>,
    return
  }
  func.func @transform_0(%arg0: i32) -> i32 {
    %c0_i32 = arith.constant 0 : i32
    %c0_i32_0 = arith.constant 0 : i32
    return %c0_i32 : i32
  }
  func.func @transform_1(%arg0: i32) -> (i32, i32) {
    %c0_i32 = arith.constant 0 : i32
    %c0_i32_0 = arith.constant 0 : i32
    return %c0_i32, %arg0 : i32, i32
  }
  func.func @transform_2(%arg0: i32) -> (i32, i32, i32) {
    %c0_i32 = arith.constant 0 : i32
    %c0_i32_0 = arith.constant 0 : i32
    %c0_i32_1 = arith.constant 0 : i32
    %c0_i32_2 = arith.constant 0 : i32
    return %c0_i32, %c0_i32_0, %c0_i32_1 : i32, i32, i32
  }
  func.func @transform_3(%arg0: i32) -> (i32, i32) {
    %c0_i32 = arith.constant 0 : i32
    %c0_i32_0 = arith.constant 0 : i32
    return %c0_i32, %arg0 : i32, i32
  }
}

</mosaic_0001>

<llo_original>
// kernel: tpu_custom_call.1
$region0: #{tpu_custom_call.1}
  #allocation0 [shape = 'u32[]', space=smem, size = 0x4, offset = 0x4, fixed_abs, tag = 'smem constant byte address 0x4 - core index']
  #allocation1 [shape = 'u32[144,128]{1,0:T(1,128)}', space=vmem, size = 0x12000, scoped, tag = 'internal scratch']
  #allocation2 [shape = 'f32[1]{0:T(128)S(6)}', space=smem, size = 0x200, scoped, tag = 'scoped memory for tpu_custom_call.1']
  %s0 = inlined_call_operand.<no memory space> [shape: f32[1], index: 0, kind: input, shape index: {}]
  %s1 = inlined_call_operand.vmem [shape: s32[2,1024], index: 1, kind: input, shape index: {}]
  %s2 = inlined_call_operand.vmem [shape: bf16[3,65,64], index: 2, kind: input, shape index: {}]
  %s3 = inlined_call_operand.hbm [shape: f32[1,1024], index: 3, kind: output, shape index: {}]
  %s4 = sld [smem:[#allocation0]]
  $region22: #{tpu_custom_call.1} parent=0
    _
  %s6 = ssub.s32 1, %s4
  %s7 = scalar_select 0, %s6, %s4
  %8 = sst [smem:[#allocation2]] %s0
  $region1: #{tpu_custom_call.1} parent=0
    #allocation3 [shape = 'u8[4096]{0}', space=vmem, size = 0x1000, scoped, tag = 'output window, operand 0, single buffered']
    #allocation4 [shape = 's32[1]{0}', space=sflag, size = 0x4, scoped, tag = 'scoped memory for tpu_custom_call.1']
    %9 = vsyncpa [#allocation4], 0
    // Predicated region
    $region2: #{tpu_custom_call.1} parent=1 // pred_check
      _
    $region3: #{tpu_custom_call.1} parent=1 // pred_check_branch
      %11 = sbr.rel (0) target = $region5
    $region4: #{tpu_custom_call.1} parent=1 // pred_region
      _
    $region5: #{tpu_custom_call.1} parent=1 // pred_fallthru
      _
    // Predicated region
    $region6: #{tpu_custom_call.1} parent=1 // pred_check
      _
    $region7: #{tpu_custom_call.1} parent=1 // pred_check_branch
      %13 = sbr.rel (0) target = $region9
    $region8: #{tpu_custom_call.1} parent=1 // pred_region
      _
    $region9: #{tpu_custom_call.1} parent=1 // pred_fallthru
      _
    // Predicated region
    $region10: #{tpu_custom_call.1} parent=1 // pred_check
      _
    $region11: #{tpu_custom_call.1} parent=1 // pred_check_branch
      %15 = sbr.rel (0) target = $region13
    $region12: #{tpu_custom_call.1} parent=1 // pred_region
      _
    $region13: #{tpu_custom_call.1} parent=1 // pred_fallthru
      _
    %v17 = vlaneseq
    %v18 = vshrl.u32 %v17, 7
    %v19 = vadd.s32 %v18, 8
    %v20 = vadd.s32 %v18, 16
    %v21 = vadd.s32 %v18, 24
    %v22 = vadd.s32 %v18, 32
    %v23 = vadd.s32 %v18, 40
    %v24 = vadd.s32 %v18, 48
    %v25 = vadd.s32 %v18, 56
    %v26 = vld [vmem:[%s1] ss:$2 sm:$0xff]
    %v27 = vlaneseq
    %v28 = vshrl.u32 %v27, 7
    %v29 = vsub.s32 0, %v28
    %v30 = vrot.slane %v26, %v29
    %v31 = vlaneseq
    %v32 = vshrl.u32 %v31, 7
    %v33 = vsub.s32 1, %v32
    %v34 = vrot.slane %v26, %v33
    %v35 = vlaneseq
    %v36 = vshrl.u32 %v35, 7
    %v37 = vsub.s32 2, %v36
    %v38 = vrot.slane %v26, %v37
    %v39 = vlaneseq
    %v40 = vshrl.u32 %v39, 7
    %v41 = vsub.s32 3, %v40
    %v42 = vrot.slane %v26, %v41
    %v43 = vlaneseq
    %v44 = vshrl.u32 %v43, 7
    %v45 = vsub.s32 4, %v44
    %v46 = vrot.slane %v26, %v45
    %v47 = vlaneseq
    %v48 = vshrl.u32 %v47, 7
    %v49 = vsub.s32 5, %v48
    %v50 = vrot.slane %v26, %v49
    %v51 = vlaneseq
    %v52 = vshrl.u32 %v51, 7
    %v53 = vsub.s32 6, %v52
    %v54 = vrot.slane %v26, %v53
    %v55 = vlaneseq
    %v56 = vshrl.u32 %v55, 7
    %v57 = vsub.s32 7, %v56
    %v58 = vrot.slane %v26, %v57
    %vm59 = vcmp.eq.s32.totalorder %v18, %v30
    %vm60 = vcmp.eq.s32.totalorder %v18, %v34
    %vm61 = vcmp.eq.s32.totalorder %v18, %v38
    %vm62 = vcmp.eq.s32.totalorder %v18, %v42
    %vm63 = vcmp.eq.s32.totalorder %v18, %v46
    %vm64 = vcmp.eq.s32.totalorder %v18, %v50
    %vm65 = vcmp.eq.s32.totalorder %v18, %v54
    %vm66 = vcmp.eq.s32.totalorder %v18, %v58
    %vm67 = vcmp.eq.s32.totalorder %v19, %v30
    %vm68 = vcmp.eq.s32.totalorder %v19, %v34
    %vm69 = vcmp.eq.s32.totalorder %v19, %v38
    %vm70 = vcmp.eq.s32.totalorder %v19, %v42
    %vm71 = vcmp.eq.s32.totalorder %v19, %v46
    %vm72 = vcmp.eq.s32.totalorder %v19, %v50
    %vm73 = vcmp.eq.s32.totalorder %v19, %v54
    %vm74 = vcmp.eq.s32.totalorder %v19, %v58
    %vm75 = vcmp.eq.s32.totalorder %v20, %v30
    %vm76 = vcmp.eq.s32.totalorder %v20, %v34
    %vm77 = vcmp.eq.s32.totalorder %v20, %v38
    %vm78 = vcmp.eq.s32.totalorder %v20, %v42
    %vm79 = vcmp.eq.s32.totalorder %v20, %v46
    %vm80 = vcmp.eq.s32.totalorder %v20, %v50
    %vm81 = vcmp.eq.s32.totalorder %v20, %v54
    %vm82 = vcmp.eq.s32.totalorder %v20, %v58
    %vm83 = vcmp.eq.s32.totalorder %v21, %v30
    %vm84 = vcmp.eq.s32.totalorder %v21, %v34
    %vm85 = vcmp.eq.s32.totalorder %v21, %v38
    %vm86 = vcmp.eq.s32.totalorder %v21, %v42
    %vm87 = vcmp.eq.s32.totalorder %v21, %v46
    %vm88 = vcmp.eq.s32.totalorder %v21, %v50
    %vm89 = vcmp.eq.s32.totalorder %v21, %v54
    %vm90 = vcmp.eq.s32.totalorder %v21, %v58
    %vm91 = vcmp.eq.s32.totalorder %v22, %v30
    %vm92 = vcmp.eq.s32.totalorder %v22, %v34
    %vm93 = vcmp.eq.s32.totalorder %v22, %v38
    %vm94 = vcmp.eq.s32.totalorder %v22, %v42
    %vm95 = vcmp.eq.s32.totalorder %v22, %v46
    %vm96 = vcmp.eq.s32.totalorder %v22, %v50
    %vm97 = vcmp.eq.s32.totalorder %v22, %v54
    %vm98 = vcmp.eq.s32.totalorder %v22, %v58
    %vm99 = vcmp.eq.s32.totalorder %v23, %v30
    %vm100 = vcmp.eq.s32.totalorder %v23, %v34
    %vm101 = vcmp.eq.s32.totalorder %v23, %v38
    %vm102 = vcmp.eq.s32.totalorder %v23, %v42
    %vm103 = vcmp.eq.s32.totalorder %v23, %v46
    %vm104 = vcmp.eq.s32.totalorder %v23, %v50
    %vm105 = vcmp.eq.s32.totalorder %v23, %v54
    %vm106 = vcmp.eq.s32.totalorder %v23, %v58
    %vm107 = vcmp.eq.s32.totalorder %v24, %v30
    %vm108 = vcmp.eq.s32.totalorder %v24, %v34
    %vm109 = vcmp.eq.s32.totalorder %v24, %v38
    %vm110 = vcmp.eq.s32.totalorder %v24, %v42
    %vm111 = vcmp.eq.s32.totalorder %v24, %v46
    %vm112 = vcmp.eq.s32.totalorder %v24, %v50
    %vm113 = vcmp.eq.s32.totalorder %v24, %v54
    %vm114 = vcmp.eq.s32.totalorder %v24, %v58
    %vm115 = vcmp.eq.s32.totalorder %v25, %v30
    %vm116 = vcmp.eq.s32.totalorder %v25, %v34
    %vm117 = vcmp.eq.s32.totalorder %v25, %v38
    %vm118 = vcmp.eq.s32.totalorder %v25, %v42
    %vm119 = vcmp.eq.s32.totalorder %v25, %v46
    %vm120 = vcmp.eq.s32.totalorder %v25, %v50
    %vm121 = vcmp.eq.s32.totalorder %v25, %v54
    %vm122 = vcmp.eq.s32.totalorder %v25, %v58
    %v123 = vsel %vm59, 1, 0
    %v124 = vsel %vm60, 1, 0
    %v125 = vsel %vm61, 1, 0
    %v126 = vsel %vm62, 1, 0
    %v127 = vsel %vm63, 1, 0
    %v128 = vsel %vm64, 1, 0
    %v129 = vsel %vm65, 1, 0
    %v130 = vsel %vm66, 1, 0
    %v131 = vsel %vm67, 1, 0
    %v132 = vsel %vm68, 1, 0
    %v133 = vsel %vm69, 1, 0
    %v134 = vsel %vm70, 1, 0
    %v135 = vsel %vm71, 1, 0
    %v136 = vsel %vm72, 1, 0
    %v137 = vsel %vm73, 1, 0
    %v138 = vsel %vm74, 1, 0
    %v139 = vsel %vm75, 1, 0
    %v140 = vsel %vm76, 1, 0
    %v141 = vsel %vm77, 1, 0
    %v142 = vsel %vm78, 1, 0
    %v143 = vsel %vm79, 1, 0
    %v144 = vsel %vm80, 1, 0
    %v145 = vsel %vm81, 1, 0
    %v146 = vsel %vm82, 1, 0
    %v147 = vsel %vm83, 1, 0
    %v148 = vsel %vm84, 1, 0
    %v149 = vsel %vm85, 1, 0
    %v150 = vsel %vm86, 1, 0
    %v151 = vsel %vm87, 1, 0
    %v152 = vsel %vm88, 1, 0
    %v153 = vsel %vm89, 1, 0
    %v154 = vsel %vm90, 1, 0
    %v155 = vsel %vm91, 1, 0
    %v156 = vsel %vm92, 1, 0
    %v157 = vsel %vm93, 1, 0
    %v158 = vsel %vm94, 1, 0
    %v159 = vsel %vm95, 1, 0
    %v160 = vsel %vm96, 1, 0
    %v161 = vsel %vm97, 1, 0
    %v162 = vsel %vm98, 1, 0
    %v163 = vsel %vm99, 1, 0
    %v164 = vsel %vm100, 1, 0
    %v165 = vsel %vm101, 1, 0
    %v166 = vsel %vm102, 1, 0
    %v167 = vsel %vm103, 1, 0
    %v168 = vsel %vm104, 1, 0
    %v169 = vsel %vm105, 1, 0
    %v170 = vsel %vm106, 1, 0
    %v171 = vsel %vm107, 1, 0
    %v172 = vsel %vm108, 1, 0
    %v173 = vsel %vm109, 1, 0
    %v174 = vsel %vm110, 1, 0
    %v175 = vsel %vm111, 1, 0
    %v176 = vsel %vm112, 1, 0
    %v177 = vsel %vm113, 1, 0
    %v178 = vsel %vm114, 1, 0
    %v179 = vsel %vm115, 1, 0
    %v180 = vsel %vm116, 1, 0
    %v181 = vsel %vm117, 1, 0
    %v182 = vsel %vm118, 1, 0
    %v183 = vsel %vm119, 1, 0
    %v184 = vsel %vm120, 1, 0
    %v185 = vsel %vm121, 1, 0
    %v186 = vsel %vm122, 1, 0
    %v187 = vcvt.s32.f32 %v123
    %v188 = vcvt.s32.f32 %v124
    %v189 = vcvt.s32.f32 %v125
    %v190 = vcvt.s32.f32 %v126
    %v191 = vcvt.s32.f32 %v127
    %v192 = vcvt.s32.f32 %v128
    %v193 = vcvt.s32.f32 %v129
    %v194 = vcvt.s32.f32 %v130
    %v195 = vcvt.s32.f32 %v131
    %v196 = vcvt.s32.f32 %v132
    %v197 = vcvt.s32.f32 %v133
    %v198 = vcvt.s32.f32 %v134
    %v199 = vcvt.s32.f32 %v135
    %v200 = vcvt.s32.f32 %v136
    %v201 = vcvt.s32.f32 %v137
    %v202 = vcvt.s32.f32 %v138
    %v203 = vcvt.s32.f32 %v139
    %v204 = vcvt.s32.f32 %v140
    %v205 = vcvt.s32.f32 %v141
    %v206 = vcvt.s32.f32 %v142
    %v207 = vcvt.s32.f32 %v143
    %v208 = vcvt.s32.f32 %v144
    %v209 = vcvt.s32.f32 %v145
    %v210 = vcvt.s32.f32 %v146
    %v211 = vcvt.s32.f32 %v147
    %v212 = vcvt.s32.f32 %v148
    %v213 = vcvt.s32.f32 %v149
    %v214 = vcvt.s32.f32 %v150
    %v215 = vcvt.s32.f32 %v151
    %v216 = vcvt.s32.f32 %v152
    %v217 = vcvt.s32.f32 %v153
    %v218 = vcvt.s32.f32 %v154
    %v219 = vcvt.s32.f32 %v155
    %v220 = vcvt.s32.f32 %v156
    %v221 = vcvt.s32.f32 %v157
    %v222 = vcvt.s32.f32 %v158
    %v223 = vcvt.s32.f32 %v159
    %v224 = vcvt.s32.f32 %v160
    %v225 = vcvt.s32.f32 %v161
    %v226 = vcvt.s32.f32 %v162
    %v227 = vcvt.s32.f32 %v163
    %v228 = vcvt.s32.f32 %v164
    %v229 = vcvt.s32.f32 %v165
    %v230 = vcvt.s32.f32 %v166
    %v231 = vcvt.s32.f32 %v167
    %v232 = vcvt.s32.f32 %v168
    %v233 = vcvt.s32.f32 %v169
    %v234 = vcvt.s32.f32 %v170
    %v235 = vcvt.s32.f32 %v171
    %v236 = vcvt.s32.f32 %v172
    %v237 = vcvt.s32.f32 %v173
    %v238 = vcvt.s32.f32 %v174
    %v239 = vcvt.s32.f32 %v175
    %v240 = vcvt.s32.f32 %v176
    %v241 = vcvt.s32.f32 %v177
    %v242 = vcvt.s32.f32 %v178
    %v243 = vcvt.s32.f32 %v179
    %v244 = vcvt.s32.f32 %v180
    %v245 = vcvt.s32.f32 %v181
    %v246 = vcvt.s32.f32 %v182
    %v247 = vcvt.s32.f32 %v183
    %v248 = vcvt.s32.f32 %v184
    %v249 = vcvt.s32.f32 %v185
    %v250 = vcvt.s32.f32 %v186
    %v251 = vadd.f32 %v187, 0.0
    %v252 = vadd.f32 %v188, 0.0
    %v253 = vadd.f32 %v189, 0.0
    %v254 = vadd.f32 %v190, 0.0
    %v255 = vadd.f32 %v191, 0.0
    %v256 = vadd.f32 %v192, 0.0
    %v257 = vadd.f32 %v193, 0.0
    %v258 = vadd.f32 %v194, 0.0
    %v259 = vadd.f32 %v195, 0.0
    %v260 = vadd.f32 %v196, 0.0
    %v261 = vadd.f32 %v197, 0.0
    %v262 = vadd.f32 %v198, 0.0
    %v263 = vadd.f32 %v199, 0.0
    %v264 = vadd.f32 %v200, 0.0
    %v265 = vadd.f32 %v201, 0.0
    %v266 = vadd.f32 %v202, 0.0
    %v267 = vadd.f32 %v203, 0.0
    %v268 = vadd.f32 %v204, 0.0
    %v269 = vadd.f32 %v205, 0.0
    %v270 = vadd.f32 %v206, 0.0
    %v271 = vadd.f32 %v207, 0.0
    %v272 = vadd.f32 %v208, 0.0
    %v273 = vadd.f32 %v209, 0.0
    %v274 = vadd.f32 %v210, 0.0
    %v275 = vadd.f32 %v211, 0.0
    %v276 = vadd.f32 %v212, 0.0
    %v277 = vadd.f32 %v213, 0.0
    %v278 = vadd.f32 %v214, 0.0
    %v279 = vadd.f32 %v215, 0.0
    %v280 = vadd.f32 %v216, 0.0
    %v281 = vadd.f32 %v217, 0.0
    %v282 = vadd.f32 %v218, 0.0
    %v283 = vadd.f32 %v219, 0.0
    %v284 = vadd.f32 %v220, 0.0
    %v285 = vadd.f32 %v221, 0.0
    %v286 = vadd.f32 %v222, 0.0
    %v287 = vadd.f32 %v223, 0.0
    %v288 = vadd.f32 %v224, 0.0
    %v289 = vadd.f32 %v225, 0.0
    %v290 = vadd.f32 %v226, 0.0
    %v291 = vadd.f32 %v227, 0.0
    %v292 = vadd.f32 %v228, 0.0
    %v293 = vadd.f32 %v229, 0.0
    %v294 = vadd.f32 %v230, 0.0
    %v295 = vadd.f32 %v231, 0.0
    %v296 = vadd.f32 %v232, 0.0
    %v297 = vadd.f32 %v233, 0.0
    %v298 = vadd.f32 %v234, 0.0
    %v299 = vadd.f32 %v235, 0.0
    %v300 = vadd.f32 %v236, 0.0
    %v301 = vadd.f32 %v237, 0.0
    %v302 = vadd.f32 %v238, 0.0
    %v303 = vadd.f32 %v239, 0.0
    %v304 = vadd.f32 %v240, 0.0
    %v305 = vadd.f32 %v241, 0.0
    %v306 = vadd.f32 %v242, 0.0
    %v307 = vadd.f32 %v243, 0.0
    %v308 = vadd.f32 %v244, 0.0
    %v309 = vadd.f32 %v245, 0.0
    %v310 = vadd.f32 %v246, 0.0
    %v311 = vadd.f32 %v247, 0.0
    %v312 = vadd.f32 %v248, 0.0
    %v313 = vadd.f32 %v249, 0.0
    %v314 = vadd.f32 %v250, 0.0
    %s315 = scalar_lea.vmem %s1, 1
    %v316 = vld [vmem:[%s315] ss:$2 sm:$0xff]
    %v317 = vlaneseq
    %v318 = vshrl.u32 %v317, 7
    %v319 = vsub.s32 0, %v318
    %v320 = vrot.slane %v316, %v319
    %v321 = vlaneseq
    %v322 = vshrl.u32 %v321, 7
    %v323 = vsub.s32 1, %v322
    %v324 = vrot.slane %v316, %v323
    %v325 = vlaneseq
    %v326 = vshrl.u32 %v325, 7
    %v327 = vsub.s32 2, %v326
    %v328 = vrot.slane %v316, %v327
    %v329 = vlaneseq
    %v330 = vshrl.u32 %v329, 7
    %v331 = vsub.s32 3, %v330
    %v332 = vrot.slane %v316, %v331
    %v333 = vlaneseq
    %v334 = vshrl.u32 %v333, 7
    %v335 = vsub.s32 4, %v334
    %v336 = vrot.slane %v316, %v335
    %v337 = vlaneseq
    %v338 = vshrl.u32 %v337, 7
    %v339 = vsub.s32 5, %v338
    %v340 = vrot.slane %v316, %v339
    %v341 = vlaneseq
    %v342 = vshrl.u32 %v341, 7
    %v343 = vsub.s32 6, %v342
    %v344 = vrot.slane %v316, %v343
    %v345 = vlaneseq
    %v346 = vshrl.u32 %v345, 7
    %v347 = vsub.s32 7, %v346
    %v348 = vrot.slane %v316, %v347
    %vm349 = vcmp.eq.s32.totalorder %v18, %v320
    %vm350 = vcmp.eq.s32.totalorder %v18, %v324
    %vm351 = vcmp.eq.s32.totalorder %v18, %v328
    %vm352 = vcmp.eq.s32.totalorder %v18, %v332
    %vm353 = vcmp.eq.s32.totalorder %v18, %v336
    %vm354 = vcmp.eq.s32.totalorder %v18, %v340
    %vm355 = vcmp.eq.s32.totalorder %v18, %v344
    %vm356 = vcmp.eq.s32.totalorder %v18, %v348
    %vm357 = vcmp.eq.s32.totalorder %v19, %v320
    %vm358 = vcmp.eq.s32.totalorder %v19, %v324
    %vm359 = vcmp.eq.s32.totalorder %v19, %v328
    %vm360 = vcmp.eq.s32.totalorder %v19, %v332
    %vm361 = vcmp.eq.s32.totalorder %v19, %v336
    %vm362 = vcmp.eq.s32.totalorder %v19, %v340
    %vm363 = vcmp.eq.s32.totalorder %v19, %v344
    %vm364 = vcmp.eq.s32.totalorder %v19, %v348
    %vm365 = vcmp.eq.s32.totalorder %v20, %v320
    %vm366 = vcmp.eq.s32.totalorder %v20, %v324
    %vm367 = vcmp.eq.s32.totalorder %v20, %v328
    %vm368 = vcmp.eq.s32.totalorder %v20, %v332
    %vm369 = vcmp.eq.s32.totalorder %v20, %v336
    %vm370 = vcmp.eq.s32.totalorder %v20, %v340
    %vm371 = vcmp.eq.s32.totalorder %v20, %v344
    %vm372 = vcmp.eq.s32.totalorder %v20, %v348
    %vm373 = vcmp.eq.s32.totalorder %v21, %v320
    %vm374 = vcmp.eq.s32.totalorder %v21, %v324
    %vm375 = vcmp.eq.s32.totalorder %v21, %v328
    %vm376 = vcmp.eq.s32.totalorder %v21, %v332
    %vm377 = vcmp.eq.s32.totalorder %v21, %v336
    %vm378 = vcmp.eq.s32.totalorder %v21, %v340
    %vm379 = vcmp.eq.s32.totalorder %v21, %v344
    %vm380 = vcmp.eq.s32.totalorder %v21, %v348
    %vm381 = vcmp.eq.s32.totalorder %v22, %v320
    %vm382 = vcmp.eq.s32.totalorder %v22, %v324
    %vm383 = vcmp.eq.s32.totalorder %v22, %v328
    %vm384 = vcmp.eq.s32.totalorder %v22, %v332
    %vm385 = vcmp.eq.s32.totalorder %v22, %v336
    %vm386 = vcmp.eq.s32.totalorder %v22, %v340
    %vm387 = vcmp.eq.s32.totalorder %v22, %v344
    %vm388 = vcmp.eq.s32.totalorder %v22, %v348
    %vm389 = vcmp.eq.s32.totalorder %v23, %v320
    %vm390 = vcmp.eq.s32.totalorder %v23, %v324
    %vm391 = vcmp.eq.s32.totalorder %v23, %v328
    %vm392 = vcmp.eq.s32.totalorder %v23, %v332
    %vm393 = vcmp.eq.s32.totalorder %v23, %v336
    %vm394 = vcmp.eq.s32.totalorder %v23, %v340
    %vm395 = vcmp.eq.s32.totalorder %v23, %v344
    %vm396 = vcmp.eq.s32.totalorder %v23, %v348
    %vm397 = vcmp.eq.s32.totalorder %v24, %v320
    %vm398 = vcmp.eq.s32.totalorder %v24, %v324
    %vm399 = vcmp.eq.s32.totalorder %v24, %v328
    %vm400 = vcmp.eq.s32.totalorder %v24, %v332
    %vm401 = vcmp.eq.s32.totalorder %v24, %v336
    %vm402 = vcmp.eq.s32.totalorder %v24, %v340
    %vm403 = vcmp.eq.s32.totalorder %v24, %v344
    %vm404 = vcmp.eq.s32.totalorder %v24, %v348
    %vm405 = vcmp.eq.s32.totalorder %v25, %v320
    %vm406 = vcmp.eq.s32.totalorder %v25, %v324
    %vm407 = vcmp.eq.s32.totalorder %v25, %v328
    %vm408 = vcmp.eq.s32.totalorder %v25, %v332
    %vm409 = vcmp.eq.s32.totalorder %v25, %v336
    %vm410 = vcmp.eq.s32.totalorder %v25, %v340
    %vm411 = vcmp.eq.s32.totalorder %v25, %v344
    %vm412 = vcmp.eq.s32.totalorder %v25, %v348
    %v413 = vsel %vm349, 1, 0
    %v414 = vsel %vm350, 1, 0
    %v415 = vsel %vm351, 1, 0
    %v416 = vsel %vm352, 1, 0
    %v417 = vsel %vm353, 1, 0
    %v418 = vsel %vm354, 1, 0
    %v419 = vsel %vm355, 1, 0
    %v420 = vsel %vm356, 1, 0
    %v421 = vsel %vm357, 1, 0
    %v422 = vsel %vm358, 1, 0
    %v423 = vsel %vm359, 1, 0
    %v424 = vsel %vm360, 1, 0
    %v425 = vsel %vm361, 1, 0
    %v426 = vsel %vm362, 1, 0
    %v427 = vsel %vm363, 1, 0
    %v428 = vsel %vm364, 1, 0
    %v429 = vsel %vm365, 1, 0
    %v430 = vsel %vm366, 1, 0
    %v431 = vsel %vm367, 1, 0
    %v432 = vsel %vm368, 1, 0
    %v433 = vsel %vm369, 1, 0
    %v434 = vsel %vm370, 1, 0
    %v435 = vsel %vm371, 1, 0
    %v436 = vsel %vm372, 1, 0
    %v437 = vsel %vm373, 1, 0
    %v438 = vsel %vm374, 1, 0
    %v439 = vsel %vm375, 1, 0
    %v440 = vsel %vm376, 1, 0
    %v441 = vsel %vm377, 1, 0
    %v442 = vsel %vm378, 1, 0
    %v443 = vsel %vm379, 1, 0
    %v444 = vsel %vm380, 1, 0
    %v445 = vsel %vm381, 1, 0
    %v446 = vsel %vm382, 1, 0
    %v447 = vsel %vm383, 1, 0
    %v448 = vsel %vm384, 1, 0
    %v449 = vsel %vm385, 1, 0
    %v450 = vsel %vm386, 1, 0
    %v451 = vsel %vm387, 1, 0
    %v452 = vsel %vm388, 1, 0
    %v453 = vsel %vm389, 1, 0
    %v454 = vsel %vm390, 1, 0
    %v455 = vsel %vm391, 1, 0
    %v456 = vsel %vm392, 1, 0
    %v457 = vsel %vm393, 1, 0
    %v458 = vsel %vm394, 1, 0
    %v459 = vsel %vm395, 1, 0
    %v460 = vsel %vm396, 1, 0
    %v461 = vsel %vm397, 1, 0
    %v462 = vsel %vm398, 1, 0
    %v463 = vsel %vm399, 1, 0
    %v464 = vsel %vm400, 1, 0
    %v465 = vsel %vm401, 1, 0
    %v466 = vsel %vm402, 1, 0
    %v467 = vsel %vm403, 1, 0
    %v468 = vsel %vm404, 1, 0
    %v469 = vsel %vm405, 1, 0
    %v470 = vsel %vm406, 1, 0
    %v471 = vsel %vm407, 1, 0
    %v472 = vsel %vm408, 1, 0
    %v473 = vsel %vm409, 1, 0
    %v474 = vsel %vm410, 1, 0
    %v475 = vsel %vm411, 1, 0
    %v476 = vsel %vm412, 1, 0
    %v477 = vcvt.s32.f32 %v413
    %v478 = vcvt.s32.f32 %v414
    %v479 = vcvt.s32.f32 %v415
    %v480 = vcvt.s32.f32 %v416
    %v481 = vcvt.s32.f32 %v417
    %v482 = vcvt.s32.f32 %v418
    %v483 = vcvt.s32.f32 %v419
    %v484 = vcvt.s32.f32 %v420
    %v485 = vcvt.s32.f32 %v421
    %v486 = vcvt.s32.f32 %v422
    %v487 = vcvt.s32.f32 %v423
    %v488 = vcvt.s32.f32 %v424
    %v489 = vcvt.s32.f32 %v425
    %v490 = vcvt.s32.f32 %v426
    %v491 = vcvt.s32.f32 %v427
    %v492 = vcvt.s32.f32 %v428
    %v493 = vcvt.s32.f32 %v429
    %v494 = vcvt.s32.f32 %v430
    %v495 = vcvt.s32.f32 %v431
    %v496 = vcvt.s32.f32 %v432
    %v497 = vcvt.s32.f32 %v433
    %v498 = vcvt.s32.f32 %v434
    %v499 = vcvt.s32.f32 %v435
    %v500 = vcvt.s32.f32 %v436
    %v501 = vcvt.s32.f32 %v437
    %v502 = vcvt.s32.f32 %v438
    %v503 = vcvt.s32.f32 %v439
    %v504 = vcvt.s32.f32 %v440
    %v505 = vcvt.s32.f32 %v441
    %v506 = vcvt.s32.f32 %v442
    %v507 = vcvt.s32.f32 %v443
    %v508 = vcvt.s32.f32 %v444
    %v509 = vcvt.s32.f32 %v445
    %v510 = vcvt.s32.f32 %v446
    %v511 = vcvt.s32.f32 %v447
    %v512 = vcvt.s32.f32 %v448
    %v513 = vcvt.s32.f32 %v449
    %v514 = vcvt.s32.f32 %v450
    %v515 = vcvt.s32.f32 %v451
    %v516 = vcvt.s32.f32 %v452
    %v517 = vcvt.s32.f32 %v453
    %v518 = vcvt.s32.f32 %v454
    %v519 = vcvt.s32.f32 %v455
    %v520 = vcvt.s32.f32 %v456
    %v521 = vcvt.s32.f32 %v457
    %v522 = vcvt.s32.f32 %v458
    %v523 = vcvt.s32.f32 %v459
    %v524 = vcvt.s32.f32 %v460
    %v525 = vcvt.s32.f32 %v461
    %v526 = vcvt.s32.f32 %v462
    %v527 = vcvt.s32.f32 %v463
    %v528 = vcvt.s32.f32 %v464
    %v529 = vcvt.s32.f32 %v465
    %v530 = vcvt.s32.f32 %v466
    %v531 = vcvt.s32.f32 %v467
    %v532 = vcvt.s32.f32 %v468
    %v533 = vcvt.s32.f32 %v469
    %v534 = vcvt.s32.f32 %v470
    %v535 = vcvt.s32.f32 %v471
    %v536 = vcvt.s32.f32 %v472
    %v537 = vcvt.s32.f32 %v473
    %v538 = vcvt.s32.f32 %v474
    %v539 = vcvt.s32.f32 %v475
    %v540 = vcvt.s32.f32 %v476
    %v541 = vadd.f32 %v251, %v477
    %v542 = vadd.f32 %v252, %v478
    %v543 = vadd.f32 %v253, %v479
    %v544 = vadd.f32 %v254, %v480
    %v545 = vadd.f32 %v255, %v481
    %v546 = vadd.f32 %v256, %v482
    %v547 = vadd.f32 %v257, %v483
    %v548 = vadd.f32 %v258, %v484
    %v549 = vadd.f32 %v259, %v485
    %v550 = vadd.f32 %v260, %v486
    %v551 = vadd.f32 %v261, %v487
    %v552 = vadd.f32 %v262, %v488
    %v553 = vadd.f32 %v263, %v489
    %v554 = vadd.f32 %v264, %v490
    %v555 = vadd.f32 %v265, %v491
    %v556 = vadd.f32 %v266, %v492
    %v557 = vadd.f32 %v267, %v493
    %v558 = vadd.f32 %v268, %v494
    %v559 = vadd.f32 %v269, %v495
    %v560 = vadd.f32 %v270, %v496
    %v561 = vadd.f32 %v271, %v497
    %v562 = vadd.f32 %v272, %v498
    %v563 = vadd.f32 %v273, %v499
    %v564 = vadd.f32 %v274, %v500
    %v565 = vadd.f32 %v275, %v501
    %v566 = vadd.f32 %v276, %v502
    %v567 = vadd.f32 %v277, %v503
    %v568 = vadd.f32 %v278, %v504
    %v569 = vadd.f32 %v279, %v505
    %v570 = vadd.f32 %v280, %v506
    %v571 = vadd.f32 %v281, %v507
    %v572 = vadd.f32 %v282, %v508
    %v573 = vadd.f32 %v283, %v509
    %v574 = vadd.f32 %v284, %v510
    %v575 = vadd.f32 %v285, %v511
    %v576 = vadd.f32 %v286, %v512
    %v577 = vadd.f32 %v287, %v513
    %v578 = vadd.f32 %v288, %v514
    %v579 = vadd.f32 %v289, %v515
    %v580 = vadd.f32 %v290, %v516
    %v581 = vadd.f32 %v291, %v517
    %v582 = vadd.f32 %v292, %v518
    %v583 = vadd.f32 %v293, %v519
    %v584 = vadd.f32 %v294, %v520
    %v585 = vadd.f32 %v295, %v521
    %v586 = vadd.f32 %v296, %v522
    %v587 = vadd.f32 %v297, %v523
    %v588 = vadd.f32 %v298, %v524
    %v589 = vadd.f32 %v299, %v525
    %v590 = vadd.f32 %v300, %v526
    %v591 = vadd.f32 %v301, %v527
    %v592 = vadd.f32 %v302, %v528
    %v593 = vadd.f32 %v303, %v529
    %v594 = vadd.f32 %v304, %v530
    %v595 = vadd.f32 %v305, %v531
    %v596 = vadd.f32 %v306, %v532
    %v597 = vadd.f32 %v307, %v533
    %v598 = vadd.f32 %v308, %v534
    %v599 = vadd.f32 %v309, %v535
    %v600 = vadd.f32 %v310, %v536
    %v601 = vadd.f32 %v311, %v537
    %v602 = vadd.f32 %v312, %v538
    %v603 = vadd.f32 %v313, %v539
    %v604 = vadd.f32 %v314, %v540
    %v605 = vpack.c.bf16 %v549, %v541
    %v606 = vpack.c.bf16 %v550, %v542
    %v607 = vpack.c.bf16 %v551, %v543
    %v608 = vpack.c.bf16 %v552, %v544
    %v609 = vpack.c.bf16 %v553, %v545
    %v610 = vpack.c.bf16 %v554, %v546
    %v611 = vpack.c.bf16 %v555, %v547
    %v612 = vpack.c.bf16 %v556, %v548
    %v613 = vpack.c.bf16 %v565, %v557
    %v614 = vpack.c.bf16 %v566, %v558
    %v615 = vpack.c.bf16 %v567, %v559
    %v616 = vpack.c.bf16 %v568, %v560
    %v617 = vpack.c.bf16 %v569, %v561
    %v618 = vpack.c.bf16 %v570, %v562
    %v619 = vpack.c.bf16 %v571, %v563
    %v620 = vpack.c.bf16 %v572, %v564
    %v621 = vpack.c.bf16 %v581, %v573
    %v622 = vpack.c.bf16 %v582, %v574
    %v623 = vpack.c.bf16 %v583, %v575
    %v624 = vpack.c.bf16 %v584, %v576
    %v625 = vpack.c.bf16 %v585, %v577
    %v626 = vpack.c.bf16 %v586, %v578
    %v627 = vpack.c.bf16 %v587, %v579
    %v628 = vpack.c.bf16 %v588, %v580
    %v629 = vpack.c.bf16 %v597, %v589
    %v630 = vpack.c.bf16 %v598, %v590
    %v631 = vpack.c.bf16 %v599, %v591
    %v632 = vpack.c.bf16 %v600, %v592
    %v633 = vpack.c.bf16 %v601, %v593
    %v634 = vpack.c.bf16 %v602, %v594
    %v635 = vpack.c.bf16 %v603, %v595
    %v636 = vpack.c.bf16 %v604, %v596
    %v637 = vld [vmem:[%s2] sm:$0xf]
    %v638 = vld [vmem:[%s2 + $0x4] sm:$0xf]
    %v639 = vld [vmem:[%s2 + $0x8] sm:$0xf]
    %v640 = vld [vmem:[%s2 + $0xc] sm:$0xf]
    %v641 = vld [vmem:[%s2 + $0x10] sm:$0xf]
    %v642 = vld [vmem:[%s2 + $0x14] sm:$0xf]
    %v643 = vld [vmem:[%s2 + $0x18] sm:$0xf]
    %v644 = vld [vmem:[%s2 + $0x1c] sm:$0xf]
    %v645 = vld [vmem:[%s2 + $0x20] sm:$0x1]
    %s646 = scalar_lea.vmem %s2, 36
    %v647 = vld [vmem:[%s646] sm:$0xf]
    %v648 = vld [vmem:[%s646 + $0x4] sm:$0xf]
    %v649 = vld [vmem:[%s646 + $0x8] sm:$0xf]
    %v650 = vld [vmem:[%s646 + $0xc] sm:$0xf]
    %v651 = vld [vmem:[%s646 + $0x10] sm:$0xf]
    %v652 = vld [vmem:[%s646 + $0x14] sm:$0xf]
    %v653 = vld [vmem:[%s646 + $0x18] sm:$0xf]
    %v654 = vld [vmem:[%s646 + $0x1c] sm:$0xf]
    %v655 = vld [vmem:[%s646 + $0x20] sm:$0x1]
    %v665 = vunpack.c.l.b16 %v647
    %v666 = vunpack.c.l.b16 %v648
    %v667 = vunpack.c.l.b16 %v649
    %v668 = vunpack.c.l.b16 %v650
    %v669 = vunpack.c.l.b16 %v651
    %v670 = vunpack.c.l.b16 %v652
    %v671 = vunpack.c.l.b16 %v653
    %v672 = vunpack.c.l.b16 %v654
    %v673 = vunpack.c.l.b16 %v655
    %v674 = vpack.c.b16 %v666, %v665
    %v675 = vpack.c.b16 %v668, %v667
    %v676 = vpack.c.b16 %v670, %v669
    %v677 = vpack.c.b16 %v672, %v671
    %v678 = vpack.c.b16 %v673, %v673
    %vm679 = vcmask 523264
    %v681 = vsel %vm679, %v674, 0
    %v684 = vsel %vm679, %v675, 0
    %v687 = vsel %vm679, %v676, 0
    %v690 = vsel %vm679, %v677, 0
    %v693 = vsel %vm679, %v678, 0
    %695 = vmatprep.subr.bf16.mxu0 0
    %696 = vmatpush1.bf16.msra.mxu0 0
    %697 = vmatprep.subr.bf16.mxu0 0
    %698 = vmatpush1.bf16.msra.mxu0 0
    %699 = vmatprep.subr.bf16.mxu0 0
    %700 = vmatpush1.bf16.msra.mxu0 0
    %701 = vmatprep.subr.bf16.mxu0 0
    %702 = vmatpush1.bf16.msra.mxu0 0
    %703 = vmatprep.subr.bf16.mxu0 %v630
    %704 = vmatpush1.bf16.msra.mxu0 %v629
    %705 = vmatprep.subr.bf16.mxu0 %v622
    %706 = vmatpush1.bf16.msra.mxu0 %v621
    %707 = vmatprep.subr.bf16.mxu0 %v614
    %708 = vmatpush1.bf16.msra.mxu0 %v613
    %709 = vmatprep.subr.bf16.mxu0 %v606
    %710 = vmatpush1.bf16.msra.mxu0 %v605
    %711 = vmatprep.subr.bf16.mxu0 0
    %712 = vmatpush2.bf16.msra.mxu0 0
    %713 = vmatprep.subr.bf16.mxu0 0
    %714 = vmatpush2.bf16.msra.mxu0 0
    %715 = vmatprep.subr.bf16.mxu0 0
    %716 = vmatpush2.bf16.msra.mxu0 0
    %717 = vmatprep.subr.bf16.mxu0 0
    %718 = vmatpush2.bf16.msra.mxu0 0
    %719 = vmatprep.subr.bf16.mxu0 0
    %720 = vmatpush2.bf16.msra.mxu0 0
    %721 = vmatprep.subr.bf16.mxu0 0
    %722 = vmatpush2.bf16.msra.mxu0 0
    %723 = vmatprep.subr.bf16.mxu0 0
    %724 = vmatpush2.bf16.msra.mxu0 0
    %725 = vmatprep.subr.bf16.mxu0 0
    %726 = vmatpush2.bf16.msra.mxu0 0
    %727 = vmatprep.mubr.bf16.mxu0 0
    %728 = vmatmul.mubr.bf16.gmra.mxu0 %v681
    %v729 = vpop.f32.mrf.mxu0
    %v730 = vadd.f32 0.0, %v729
    %v731 = vpop.f32.mrf.mxu0
    %v732 = vadd.f32 0.0, %v731
    %v733 = vpop.f32.mrf.mxu0
    %v734 = vadd.f32 0.0, %v733
    %v735 = vpop.f32.mrf.mxu0
    %v736 = vadd.f32 0.0, %v735
    %737 = vmatprep.mubr.bf16.mxu0 0
    %738 = vmatmul.mubr.bf16.gmra.mxu0 %v684
    %v739 = vpop.f32.mrf.mxu0
    %v740 = vadd.f32 0.0, %v739
    %v741 = vpop.f32.mrf.mxu0
    %v742 = vadd.f32 0.0, %v741
    %v743 = vpop.f32.mrf.mxu0
    %v744 = vadd.f32 0.0, %v743
    %v745 = vpop.f32.mrf.mxu0
    %v746 = vadd.f32 0.0, %v745
    %747 = vmatprep.mubr.bf16.mxu0 0
    %748 = vmatmul.mubr.bf16.gmra.mxu0 %v687
    %v749 = vpop.f32.mrf.mxu0
    %v750 = vadd.f32 0.0, %v749
    %v751 = vpop.f32.mrf.mxu0
    %v752 = vadd.f32 0.0, %v751
    %v753 = vpop.f32.mrf.mxu0
    %v754 = vadd.f32 0.0, %v753
    %v755 = vpop.f32.mrf.mxu0
    %v756 = vadd.f32 0.0, %v755
    %757 = vmatprep.mubr.bf16.mxu0 0
    %758 = vmatmul.mubr.bf16.gmra.mxu0 %v690
    %v759 = vpop.f32.mrf.mxu0
    %v760 = vadd.f32 0.0, %v759
    %v761 = vpop.f32.mrf.mxu0
    %v762 = vadd.f32 0.0, %v761
    %v763 = vpop.f32.mrf.mxu0
    %v764 = vadd.f32 0.0, %v763
    %v765 = vpop.f32.mrf.mxu0
    %v766 = vadd.f32 0.0, %v765
    %767 = vmatprep.mubr.bf16.mxu0 0
    %768 = vmatmul.mubr.bf16.gmra.mxu0 %v693
    %v769 = vpop.f32.mrf.mxu0
    %v770 = vadd.f32 0.0, %v769
    %v771 = vpop.f32.mrf.mxu0
    %v772 = vadd.f32 0.0, %v771
    %v773 = vpop.f32.mrf.mxu0
    %v774 = vpop.f32.mrf.mxu0
    %775 = vdwg.mxu0
    %776 = vmatprep.subr.bf16.mxu0 0
    %777 = vmatpush1.bf16.msra.mxu0 0
    %778 = vmatprep.subr.bf16.mxu0 0
    %779 = vmatpush1.bf16.msra.mxu0 0
    %780 = vmatprep.subr.bf16.mxu0 0
    %781 = vmatpush1.bf16.msra.mxu0 0
    %782 = vmatprep.subr.bf16.mxu0 0
    %783 = vmatpush1.bf16.msra.mxu0 0
    %784 = vmatprep.subr.bf16.mxu0 %v632
    %785 = vmatpush1.bf16.msra.mxu0 %v631
    %786 = vmatprep.subr.bf16.mxu0 %v624
    %787 = vmatpush1.bf16.msra.mxu0 %v623
    %788 = vmatprep.subr.bf16.mxu0 %v616
    %789 = vmatpush1.bf16.msra.mxu0 %v615
    %790 = vmatprep.subr.bf16.mxu0 %v608
    %791 = vmatpush1.bf16.msra.mxu0 %v607
    %792 = vmatprep.subr.bf16.mxu0 0
    %793 = vmatpush2.bf16.msra.mxu0 0
    %794 = vmatprep.subr.bf16.mxu0 0
    %795 = vmatpush2.bf16.msra.mxu0 0
    %796 = vmatprep.subr.bf16.mxu0 0
    %797 = vmatpush2.bf16.msra.mxu0 0
    %798 = vmatprep.subr.bf16.mxu0 0
    %799 = vmatpush2.bf16.msra.mxu0 0
    %800 = vmatprep.subr.bf16.mxu0 0
    %801 = vmatpush2.bf16.msra.mxu0 0
    %802 = vmatprep.subr.bf16.mxu0 0
    %803 = vmatpush2.bf16.msra.mxu0 0
    %804 = vmatprep.subr.bf16.mxu0 0
    %805 = vmatpush2.bf16.msra.mxu0 0
    %806 = vmatprep.subr.bf16.mxu0 0
    %807 = vmatpush2.bf16.msra.mxu0 0
    %808 = vmatprep.mubr.bf16.mxu0 0
    %809 = vmatmul.mubr.bf16.gmra.mxu0 %v681
    %v810 = vpop.f32.mrf.mxu0
    %v811 = vadd.f32 0.0, %v810
    %v812 = vpop.f32.mrf.mxu0
    %v813 = vadd.f32 0.0, %v812
    %v814 = vpop.f32.mrf.mxu0
    %v815 = vadd.f32 0.0, %v814
    %v816 = vpop.f32.mrf.mxu0
    %v817 = vadd.f32 0.0, %v816
    %818 = vmatprep.mubr.bf16.mxu0 0
    %819 = vmatmul.mubr.bf16.gmra.mxu0 %v684
    %v820 = vpop.f32.mrf.mxu0
    %v821 = vadd.f32 0.0, %v820
    %v822 = vpop.f32.mrf.mxu0
    %v823 = vadd.f32 0.0, %v822
    %v824 = vpop.f32.mrf.mxu0
    %v825 = vadd.f32 0.0, %v824
    %v826 = vpop.f32.mrf.mxu0
    %v827 = vadd.f32 0.0, %v826
    %828 = vmatprep.mubr.bf16.mxu0 0
    %829 = vmatmul.mubr.bf16.gmra.mxu0 %v687
    %v830 = vpop.f32.mrf.mxu0
    %v831 = vadd.f32 0.0, %v830
    %v832 = vpop.f32.mrf.mxu0
    %v833 = vadd.f32 0.0, %v832
    %v834 = vpop.f32.mrf.mxu0
    %v835 = vadd.f32 0.0, %v834
    %v836 = vpop.f32.mrf.mxu0
    %v837 = vadd.f32 0.0, %v836
    %838 = vmatprep.mubr.bf16.mxu0 0
    %839 = vmatmul.mubr.bf16.gmra.mxu0 %v690
    %v840 = vpop.f32.mrf.mxu0
    %v841 = vadd.f32 0.0, %v840
    %v842 = vpop.f32.mrf.mxu0
    %v843 = vadd.f32 0.0, %v842
    %v844 = vpop.f32.mrf.mxu0
    %v845 = vadd.f32 0.0, %v844
    %v846 = vpop.f32.mrf.mxu0
    %v847 = vadd.f32 0.0, %v846
    %848 = vmatprep.mubr.bf16.mxu0 0
    %849 = vmatmul.mubr.bf16.gmra.mxu0 %v693
    %v850 = vpop.f32.mrf.mxu0
    %v851 = vadd.f32 0.0, %v850
    %v852 = vpop.f32.mrf.mxu0
    %v853 = vadd.f32 0.0, %v852
    %v854 = vpop.f32.mrf.mxu0
    %v855 = vpop.f32.mrf.mxu0
    %856 = vdwg.mxu0
    %857 = vmatprep.subr.bf16.mxu0 0
    %858 = vmatpush1.bf16.msra.mxu0 0
    %859 = vmatprep.subr.bf16.mxu0 0
    %860 = vmatpush1.bf16.msra.mxu0 0
    %861 = vmatprep.subr.bf16.mxu0 0
    %862 = vmatpush1.bf16.msra.mxu0 0
    %863 = vmatprep.subr.bf16.mxu0 0
    %864 = vmatpush1.bf16.msra.mxu0 0
    %865 = vmatprep.subr.bf16.mxu0 %v634
    %866 = vmatpush1.bf16.msra.mxu0 %v633
    %867 = vmatprep.subr.bf16.mxu0 %v626
    %868 = vmatpush1.bf16.msra.mxu0 %v625
    %869 = vmatprep.subr.bf16.mxu0 %v618
    %870 = vmatpush1.bf16.msra.mxu0 %v617
    %871 = vmatprep.subr.bf16.mxu0 %v610
    %872 = vmatpush1.bf16.msra.mxu0 %v609
    %873 = vmatprep.subr.bf16.mxu0 0
    %874 = vmatpush2.bf16.msra.mxu0 0
    %875 = vmatprep.subr.bf16.mxu0 0
    %876 = vmatpush2.bf16.msra.mxu0 0
    %877 = vmatprep.subr.bf16.mxu0 0
    %878 = vmatpush2.bf16.msra.mxu0 0
    %879 = vmatprep.subr.bf16.mxu0 0
    %880 = vmatpush2.bf16.msra.mxu0 0
    %881 = vmatprep.subr.bf16.mxu0 0
    %882 = vmatpush2.bf16.msra.mxu0 0
    %883 = vmatprep.subr.bf16.mxu0 0
    %884 = vmatpush2.bf16.msra.mxu0 0
    %885 = vmatprep.subr.bf16.mxu0 0
    %886 = vmatpush2.bf16.msra.mxu0 0
    %887 = vmatprep.subr.bf16.mxu0 0
    %888 = vmatpush2.bf16.msra.mxu0 0
    %889 = vmatprep.mubr.bf16.mxu0 0
    %890 = vmatmul.mubr.bf16.gmra.mxu0 %v681
    %v891 = vpop.f32.mrf.mxu0
    %v892 = vadd.f32 0.0, %v891
    %v893 = vpop.f32.mrf.mxu0
    %v894 = vadd.f32 0.0, %v893
    %v895 = vpop.f32.mrf.mxu0
    %v896 = vadd.f32 0.0, %v895
    %v897 = vpop.f32.mrf.mxu0
    %v898 = vadd.f32 0.0, %v897
    %899 = vmatprep.mubr.bf16.mxu0 0
    %900 = vmatmul.mubr.bf16.gmra.mxu0 %v684
    %v901 = vpop.f32.mrf.mxu0
    %v902 = vadd.f32 0.0, %v901
    %v903 = vpop.f32.mrf.mxu0
    %v904 = vadd.f32 0.0, %v903
    %v905 = vpop.f32.mrf.mxu0
    %v906 = vadd.f32 0.0, %v905
    %v907 = vpop.f32.mrf.mxu0
    %v908 = vadd.f32 0.0, %v907
    %909 = vmatprep.mubr.bf16.mxu0 0
    %910 = vmatmul.mubr.bf16.gmra.mxu0 %v687
    %v911 = vpop.f32.mrf.mxu0
    %v912 = vadd.f32 0.0, %v911
    %v913 = vpop.f32.mrf.mxu0
    %v914 = vadd.f32 0.0, %v913
    %v915 = vpop.f32.mrf.mxu0
    %v916 = vadd.f32 0.0, %v915
    %v917 = vpop.f32.mrf.mxu0
    %v918 = vadd.f32 0.0, %v917
    %919 = vmatprep.mubr.bf16.mxu0 0
    %920 = vmatmul.mubr.bf16.gmra.mxu0 %v690
    %v921 = vpop.f32.mrf.mxu0
    %v922 = vadd.f32 0.0, %v921
    %v923 = vpop.f32.mrf.mxu0
    %v924 = vadd.f32 0.0, %v923
    %v925 = vpop.f32.mrf.mxu0
    %v926 = vadd.f32 0.0, %v925
    %v927 = vpop.f32.mrf.mxu0
    %v928 = vadd.f32 0.0, %v927
    %929 = vmatprep.mubr.bf16.mxu0 0
    %930 = vmatmul.mubr.bf16.gmra.mxu0 %v693
    %v931 = vpop.f32.mrf.mxu0
    %v932 = vadd.f32 0.0, %v931
    %v933 = vpop.f32.mrf.mxu0
    %v934 = vadd.f32 0.0, %v933
    %v935 = vpop.f32.mrf.mxu0
    %v936 = vpop.f32.mrf.mxu0
    %937 = vdwg.mxu0
    %938 = vmatprep.subr.bf16.mxu0 0
    %939 = vmatpush1.bf16.msra.mxu0 0
    %940 = vmatprep.subr.bf16.mxu0 0
    %941 = vmatpush1.bf16.msra.mxu0 0
    %942 = vmatprep.subr.bf16.mxu0 0
    %943 = vmatpush1.bf16.msra.mxu0 0
    %944 = vmatprep.subr.bf16.mxu0 0
    %945 = vmatpush1.bf16.msra.mxu0 0
    %946 = vmatprep.subr.bf16.mxu0 %v636
    %947 = vmatpush1.bf16.msra.mxu0 %v635
    %948 = vmatprep.subr.bf16.mxu0 %v628
    %949 = vmatpush1.bf16.msra.mxu0 %v627
    %950 = vmatprep.subr.bf16.mxu0 %v620
    %951 = vmatpush1.bf16.msra.mxu0 %v619
    %952 = vmatprep.subr.bf16.mxu0 %v612
    %953 = vmatpush1.bf16.msra.mxu0 %v611
    %954 = vmatprep.subr.bf16.mxu0 0
    %955 = vmatpush2.bf16.msra.mxu0 0
    %956 = vmatprep.subr.bf16.mxu0 0
    %957 = vmatpush2.bf16.msra.mxu0 0
    %958 = vmatprep.subr.bf16.mxu0 0
    %959 = vmatpush2.bf16.msra.mxu0 0
    %960 = vmatprep.subr.bf16.mxu0 0
    %961 = vmatpush2.bf16.msra.mxu0 0
    %962 = vmatprep.subr.bf16.mxu0 0
    %963 = vmatpush2.bf16.msra.mxu0 0
    %964 = vmatprep.subr.bf16.mxu0 0
    %965 = vmatpush2.bf16.msra.mxu0 0
    %966 = vmatprep.subr.bf16.mxu0 0
    %967 = vmatpush2.bf16.msra.mxu0 0
    %968 = vmatprep.subr.bf16.mxu0 0
    %969 = vmatpush2.bf16.msra.mxu0 0
    %970 = vmatprep.mubr.bf16.mxu0 0
    %971 = vmatmul.mubr.bf16.gmra.mxu0 %v681
    %v972 = vpop.f32.mrf.mxu0
    %v973 = vadd.f32 0.0, %v972
    %v974 = vpop.f32.mrf.mxu0
    %v975 = vadd.f32 0.0, %v974
    %v976 = vpop.f32.mrf.mxu0
    %v977 = vadd.f32 0.0, %v976
    %v978 = vpop.f32.mrf.mxu0
    %v979 = vadd.f32 0.0, %v978
    %980 = vmatprep.mubr.bf16.mxu0 0
    %981 = vmatmul.mubr.bf16.gmra.mxu0 %v684
    %v982 = vpop.f32.mrf.mxu0
    %v983 = vadd.f32 0.0, %v982
    %v984 = vpop.f32.mrf.mxu0
    %v985 = vadd.f32 0.0, %v984
    %v986 = vpop.f32.mrf.mxu0
    %v987 = vadd.f32 0.0, %v986
    %v988 = vpop.f32.mrf.mxu0
    %v989 = vadd.f32 0.0, %v988
    %990 = vmatprep.mubr.bf16.mxu0 0
    %991 = vmatmul.mubr.bf16.gmra.mxu0 %v687
    %v992 = vpop.f32.mrf.mxu0
    %v993 = vadd.f32 0.0, %v992
    %v994 = vpop.f32.mrf.mxu0
    %v995 = vadd.f32 0.0, %v994
    %v996 = vpop.f32.mrf.mxu0
    %v997 = vadd.f32 0.0, %v996
    %v998 = vpop.f32.mrf.mxu0
    %v999 = vadd.f32 0.0, %v998
    %1000 = vmatprep.mubr.bf16.mxu0 0
    %1001 = vmatmul.mubr.bf16.gmra.mxu0 %v690
    %v1002 = vpop.f32.mrf.mxu0
    %v1003 = vadd.f32 0.0, %v1002
    %v1004 = vpop.f32.mrf.mxu0
    %v1005 = vadd.f32 0.0, %v1004
    %v1006 = vpop.f32.mrf.mxu0
    %v1007 = vadd.f32 0.0, %v1006
    %v1008 = vpop.f32.mrf.mxu0
    %v1009 = vadd.f32 0.0, %v1008
    %1010 = vmatprep.mubr.bf16.mxu0 0
    %1011 = vmatmul.mubr.bf16.gmra.mxu0 %v693
    %v1012 = vpop.f32.mrf.mxu0
    %v1013 = vadd.f32 0.0, %v1012
    %v1014 = vpop.f32.mrf.mxu0
    %v1015 = vadd.f32 0.0, %v1014
    %v1016 = vpop.f32.mrf.mxu0
    %v1017 = vpop.f32.mrf.mxu0
    %1018 = vdwg.mxu0
    %v1028 = vunpack.c.l.b16 %v637
    %v1029 = vunpack.c.l.b16 %v638
    %v1030 = vunpack.c.l.b16 %v639
    %v1031 = vunpack.c.l.b16 %v640
    %v1032 = vunpack.c.l.b16 %v641
    %v1033 = vunpack.c.l.b16 %v642
    %v1034 = vunpack.c.l.b16 %v643
    %v1035 = vunpack.c.l.b16 %v644
    %v1036 = vunpack.c.l.b16 %v645
    %v1037 = vpack.c.b16 %v1029, %v1028
    %v1038 = vpack.c.b16 %v1031, %v1030
    %v1039 = vpack.c.b16 %v1033, %v1032
    %v1040 = vpack.c.b16 %v1035, %v1034
    %v1041 = vpack.c.b16 %v1036, %v1036
    %v1043 = vsel %vm679, %v1037, 0
    %v1046 = vsel %vm679, %v1038, 0
    %v1049 = vsel %vm679, %v1039, 0
    %v1052 = vsel %vm679, %v1040, 0
    %v1055 = vsel %vm679, %v1041, 0
    %1057 = vmatprep.subr.bf16.mxu0 0
    %1058 = vmatpush1.bf16.msra.mxu0 0
    %1059 = vmatprep.subr.bf16.mxu0 0
    %1060 = vmatpush1.bf16.msra.mxu0 0
    %1061 = vmatprep.subr.bf16.mxu0 0
    %1062 = vmatpush1.bf16.msra.mxu0 0
    %1063 = vmatprep.subr.bf16.mxu0 0
    %1064 = vmatpush1.bf16.msra.mxu0 0
    %1065 = vmatprep.subr.bf16.mxu0 %v630
    %1066 = vmatpush1.bf16.msra.mxu0 %v629
    %1067 = vmatprep.subr.bf16.mxu0 %v622
    %1068 = vmatpush1.bf16.msra.mxu0 %v621
    %1069 = vmatprep.subr.bf16.mxu0 %v614
    %1070 = vmatpush1.bf16.msra.mxu0 %v613
    %1071 = vmatprep.subr.bf16.mxu0 %v606
    %1072 = vmatpush1.bf16.msra.mxu0 %v605
    %1073 = vmatprep.subr.bf16.mxu0 0
    %1074 = vmatpush2.bf16.msra.mxu0 0
    %1075 = vmatprep.subr.bf16.mxu0 0
    %1076 = vmatpush2.bf16.msra.mxu0 0
    %1077 = vmatprep.subr.bf16.mxu0 0
    %1078 = vmatpush2.bf16.msra.mxu0 0
    %1079 = vmatprep.subr.bf16.mxu0 0
    %1080 = vmatpush2.bf16.msra.mxu0 0
    %1081 = vmatprep.subr.bf16.mxu0 0
    %1082 = vmatpush2.bf16.msra.mxu0 0
    %1083 = vmatprep.subr.bf16.mxu0 0
    %1084 = vmatpush2.bf16.msra.mxu0 0
    %1085 = vmatprep.subr.bf16.mxu0 0
    %1086 = vmatpush2.bf16.msra.mxu0 0
    %1087 = vmatprep.subr.bf16.mxu0 0
    %1088 = vmatpush2.bf16.msra.mxu0 0
    %1089 = vmatprep.mubr.bf16.mxu0 0
    %1090 = vmatmul.mubr.bf16.gmra.mxu0 %v1043
    %v1091 = vpop.f32.mrf.mxu0
    %v1092 = vadd.f32 %v730, %v1091
    %v1093 = vpop.f32.mrf.mxu0
    %v1094 = vadd.f32 %v732, %v1093
    %v1095 = vpop.f32.mrf.mxu0
    %v1096 = vadd.f32 %v734, %v1095
    %v1097 = vpop.f32.mrf.mxu0
    %v1098 = vadd.f32 %v736, %v1097
    %1099 = vmatprep.mubr.bf16.mxu0 0
    %1100 = vmatmul.mubr.bf16.gmra.mxu0 %v1046
    %v1101 = vpop.f32.mrf.mxu0
    %v1102 = vadd.f32 %v740, %v1101
    %v1103 = vpop.f32.mrf.mxu0
    %v1104 = vadd.f32 %v742, %v1103
    %v1105 = vpop.f32.mrf.mxu0
    %v1106 = vadd.f32 %v744, %v1105
    %v1107 = vpop.f32.mrf.mxu0
    %v1108 = vadd.f32 %v746, %v1107
    %1109 = vmatprep.mubr.bf16.mxu0 0
    %1110 = vmatmul.mubr.bf16.gmra.mxu0 %v1049
    %v1111 = vpop.f32.mrf.mxu0
    %v1112 = vadd.f32 %v750, %v1111
    %v1113 = vpop.f32.mrf.mxu0
    %v1114 = vadd.f32 %v752, %v1113
    %v1115 = vpop.f32.mrf.mxu0
    %v1116 = vadd.f32 %v754, %v1115
    %v1117 = vpop.f32.mrf.mxu0
    %v1118 = vadd.f32 %v756, %v1117
    %1119 = vmatprep.mubr.bf16.mxu0 0
    %1120 = vmatmul.mubr.bf16.gmra.mxu0 %v1052
    %v1121 = vpop.f32.mrf.mxu0
    %v1122 = vadd.f32 %v760, %v1121
    %v1123 = vpop.f32.mrf.mxu0
    %v1124 = vadd.f32 %v762, %v1123
    %v1125 = vpop.f32.mrf.mxu0
    %v1126 = vadd.f32 %v764, %v1125
    %v1127 = vpop.f32.mrf.mxu0
    %v1128 = vadd.f32 %v766, %v1127
    %1129 = vmatprep.mubr.bf16.mxu0 0
    %1130 = vmatmul.mubr.bf16.gmra.mxu0 %v1055
    %v1131 = vpop.f32.mrf.mxu0
    %v1132 = vadd.f32 %v770, %v1131
    %v1133 = vpop.f32.mrf.mxu0
    %v1134 = vadd.f32 %v772, %v1133
    %v1135 = vpop.f32.mrf.mxu0
    %v1136 = vpop.f32.mrf.mxu0
    %1137 = vdwg.mxu0
    %1138 = vmatprep.subr.bf16.mxu0 0
    %1139 = vmatpush1.bf16.msra.mxu0 0
    %1140 = vmatprep.subr.bf16.mxu0 0
    %1141 = vmatpush1.bf16.msra.mxu0 0
    %1142 = vmatprep.subr.bf16.mxu0 0
    %1143 = vmatpush1.bf16.msra.mxu0 0
    %1144 = vmatprep.subr.bf16.mxu0 0
    %1145 = vmatpush1.bf16.msra.mxu0 0
    %1146 = vmatprep.subr.bf16.mxu0 %v632
    %1147 = vmatpush1.bf16.msra.mxu0 %v631
    %1148 = vmatprep.subr.bf16.mxu0 %v624
    %1149 = vmatpush1.bf16.msra.mxu0 %v623
    %1150 = vmatprep.subr.bf16.mxu0 %v616
    %1151 = vmatpush1.bf16.msra.mxu0 %v615
    %1152 = vmatprep.subr.bf16.mxu0 %v608
    %1153 = vmatpush1.bf16.msra.mxu0 %v607
    %1154 = vmatprep.subr.bf16.mxu0 0
    %1155 = vmatpush2.bf16.msra.mxu0 0
    %1156 = vmatprep.subr.bf16.mxu0 0
    %1157 = vmatpush2.bf16.msra.mxu0 0
    %1158 = vmatprep.subr.bf16.mxu0 0
    %1159 = vmatpush2.bf16.msra.mxu0 0
    %1160 = vmatprep.subr.bf16.mxu0 0
    %1161 = vmatpush2.bf16.msra.mxu0 0
    %1162 = vmatprep.subr.bf16.mxu0 0
    %1163 = vmatpush2.bf16.msra.mxu0 0
    %1164 = vmatprep.subr.bf16.mxu0 0
    %1165 = vmatpush2.bf16.msra.mxu0 0
    %1166 = vmatprep.subr.bf16.mxu0 0
    %1167 = vmatpush2.bf16.msra.mxu0 0
    %1168 = vmatprep.subr.bf16.mxu0 0
    %1169 = vmatpush2.bf16.msra.mxu0 0
    %1170 = vmatprep.mubr.bf16.mxu0 0
    %1171 = vmatmul.mubr.bf16.gmra.mxu0 %v1043
    %v1172 = vpop.f32.mrf.mxu0
    %v1173 = vadd.f32 %v811, %v1172
    %v1174 = vpop.f32.mrf.mxu0
    %v1175 = vadd.f32 %v813, %v1174
    %v1176 = vpop.f32.mrf.mxu0
    %v1177 = vadd.f32 %v815, %v1176
    %v1178 = vpop.f32.mrf.mxu0
    %v1179 = vadd.f32 %v817, %v1178
    %1180 = vmatprep.mubr.bf16.mxu0 0
    %1181 = vmatmul.mubr.bf16.gmra.mxu0 %v1046
    %v1182 = vpop.f32.mrf.mxu0
    %v1183 = vadd.f32 %v821, %v1182
    %v1184 = vpop.f32.mrf.mxu0
    %v1185 = vadd.f32 %v823, %v1184
    %v1186 = vpop.f32.mrf.mxu0
    %v1187 = vadd.f32 %v825, %v1186
    %v1188 = vpop.f32.mrf.mxu0
    %v1189 = vadd.f32 %v827, %v1188
    %1190 = vmatprep.mubr.bf16.mxu0 0
    %1191 = vmatmul.mubr.bf16.gmra.mxu0 %v1049
    %v1192 = vpop.f32.mrf.mxu0
    %v1193 = vadd.f32 %v831, %v1192
    %v1194 = vpop.f32.mrf.mxu0
    %v1195 = vadd.f32 %v833, %v1194
    %v1196 = vpop.f32.mrf.mxu0
    %v1197 = vadd.f32 %v835, %v1196
    %v1198 = vpop.f32.mrf.mxu0
    %v1199 = vadd.f32 %v837, %v1198
    %1200 = vmatprep.mubr.bf16.mxu0 0
    %1201 = vmatmul.mubr.bf16.gmra.mxu0 %v1052
    %v1202 = vpop.f32.mrf.mxu0
    %v1203 = vadd.f32 %v841, %v1202
    %v1204 = vpop.f32.mrf.mxu0
    %v1205 = vadd.f32 %v843, %v1204
    %v1206 = vpop.f32.mrf.mxu0
    %v1207 = vadd.f32 %v845, %v1206
    %v1208 = vpop.f32.mrf.mxu0
    %v1209 = vadd.f32 %v847, %v1208
    %1210 = vmatprep.mubr.bf16.mxu0 0
    %1211 = vmatmul.mubr.bf16.gmra.mxu0 %v1055
    %v1212 = vpop.f32.mrf.mxu0
    %v1213 = vadd.f32 %v851, %v1212
    %v1214 = vpop.f32.mrf.mxu0
    %v1215 = vadd.f32 %v853, %v1214
    %v1216 = vpop.f32.mrf.mxu0
    %v1217 = vpop.f32.mrf.mxu0
    %1218 = vdwg.mxu0
    %1219 = vmatprep.subr.bf16.mxu0 0
    %1220 = vmatpush1.bf16.msra.mxu0 0
    %1221 = vmatprep.subr.bf16.mxu0 0
    %1222 = vmatpush1.bf16.msra.mxu0 0
    %1223 = vmatprep.subr.bf16.mxu0 0
    %1224 = vmatpush1.bf16.msra.mxu0 0
    %1225 = vmatprep.subr.bf16.mxu0 0
    %1226 = vmatpush1.bf16.msra.mxu0 0
    %1227 = vmatprep.subr.bf16.mxu0 %v634
    %1228 = vmatpush1.bf16.msra.mxu0 %v633
    %1229 = vmatprep.subr.bf16.mxu0 %v626
    %1230 = vmatpush1.bf16.msra.mxu0 %v625
    %1231 = vmatprep.subr.bf16.mxu0 %v618
    %1232 = vmatpush1.bf16.msra.mxu0 %v617
    %1233 = vmatprep.subr.bf16.mxu0 %v610
    %1234 = vmatpush1.bf16.msra.mxu0 %v609
    %1235 = vmatprep.subr.bf16.mxu0 0
    %1236 = vmatpush2.bf16.msra.mxu0 0
    %1237 = vmatprep.subr.bf16.mxu0 0
    %1238 = vmatpush2.bf16.msra.mxu0 0
    %1239 = vmatprep.subr.bf16.mxu0 0
    %1240 = vmatpush2.bf16.msra.mxu0 0
    %1241 = vmatprep.subr.bf16.mxu0 0
    %1242 = vmatpush2.bf16.msra.mxu0 0
    %1243 = vmatprep.subr.bf16.mxu0 0
    %1244 = vmatpush2.bf16.msra.mxu0 0
    %1245 = vmatprep.subr.bf16.mxu0 0
    %1246 = vmatpush2.bf16.msra.mxu0 0
    %1247 = vmatprep.subr.bf16.mxu0 0
    %1248 = vmatpush2.bf16.msra.mxu0 0
    %1249 = vmatprep.subr.bf16.mxu0 0
    %1250 = vmatpush2.bf16.msra.mxu0 0
    %1251 = vmatprep.mubr.bf16.mxu0 0
    %1252 = vmatmul.mubr.bf16.gmra.mxu0 %v1043
    %v1253 = vpop.f32.mrf.mxu0
    %v1254 = vadd.f32 %v892, %v1253
    %v1255 = vpop.f32.mrf.mxu0
    %v1256 = vadd.f32 %v894, %v1255
    %v1257 = vpop.f32.mrf.mxu0
    %v1258 = vadd.f32 %v896, %v1257
    %v1259 = vpop.f32.mrf.mxu0
    %v1260 = vadd.f32 %v898, %v1259
    %1261 = vmatprep.mubr.bf16.mxu0 0
    %1262 = vmatmul.mubr.bf16.gmra.mxu0 %v1046
    %v1263 = vpop.f32.mrf.mxu0
    %v1264 = vadd.f32 %v902, %v1263
    %v1265 = vpop.f32.mrf.mxu0
    %v1266 = vadd.f32 %v904, %v1265
    %v1267 = vpop.f32.mrf.mxu0
    %v1268 = vadd.f32 %v906, %v1267
    %v1269 = vpop.f32.mrf.mxu0
    %v1270 = vadd.f32 %v908, %v1269
    %1271 = vmatprep.mubr.bf16.mxu0 0
    %1272 = vmatmul.mubr.bf16.gmra.mxu0 %v1049
    %v1273 = vpop.f32.mrf.mxu0
    %v1274 = vadd.f32 %v912, %v1273
    %v1275 = vpop.f32.mrf.mxu0
    %v1276 = vadd.f32 %v914, %v1275
    %v1277 = vpop.f32.mrf.mxu0
    %v1278 = vadd.f32 %v916, %v1277
    %v1279 = vpop.f32.mrf.mxu0
    %v1280 = vadd.f32 %v918, %v1279
    %1281 = vmatprep.mubr.bf16.mxu0 0
    %1282 = vmatmul.mubr.bf16.gmra.mxu0 %v1052
    %v1283 = vpop.f32.mrf.mxu0
    %v1284 = vadd.f32 %v922, %v1283
    %v1285 = vpop.f32.mrf.mxu0
    %v1286 = vadd.f32 %v924, %v1285
    %v1287 = vpop.f32.mrf.mxu0
    %v1288 = vadd.f32 %v926, %v1287
    %v1289 = vpop.f32.mrf.mxu0
    %v1290 = vadd.f32 %v928, %v1289
    %1291 = vmatprep.mubr.bf16.mxu0 0
    %1292 = vmatmul.mubr.bf16.gmra.mxu0 %v1055
    %v1293 = vpop.f32.mrf.mxu0
    %v1294 = vadd.f32 %v932, %v1293
    %v1295 = vpop.f32.mrf.mxu0
    %v1296 = vadd.f32 %v934, %v1295
    %v1297 = vpop.f32.mrf.mxu0
    %v1298 = vpop.f32.mrf.mxu0
    %1299 = vdwg.mxu0
    %1300 = vmatprep.subr.bf16.mxu0 0
    %1301 = vmatpush1.bf16.msra.mxu0 0
    %1302 = vmatprep.subr.bf16.mxu0 0
    %1303 = vmatpush1.bf16.msra.mxu0 0
    %1304 = vmatprep.subr.bf16.mxu0 0
    %1305 = vmatpush1.bf16.msra.mxu0 0
    %1306 = vmatprep.subr.bf16.mxu0 0
    %1307 = vmatpush1.bf16.msra.mxu0 0
    %1308 = vmatprep.subr.bf16.mxu0 %v636
    %1309 = vmatpush1.bf16.msra.mxu0 %v635
    %1310 = vmatprep.subr.bf16.mxu0 %v628
    %1311 = vmatpush1.bf16.msra.mxu0 %v627
    %1312 = vmatprep.subr.bf16.mxu0 %v620
    %1313 = vmatpush1.bf16.msra.mxu0 %v619
    %1314 = vmatprep.subr.bf16.mxu0 %v612
    %1315 = vmatpush1.bf16.msra.mxu0 %v611
    %1316 = vmatprep.subr.bf16.mxu0 0
    %1317 = vmatpush2.bf16.msra.mxu0 0
    %1318 = vmatprep.subr.bf16.mxu0 0
    %1319 = vmatpush2.bf16.msra.mxu0 0
    %1320 = vmatprep.subr.bf16.mxu0 0
    %1321 = vmatpush2.bf16.msra.mxu0 0
    %1322 = vmatprep.subr.bf16.mxu0 0
    %1323 = vmatpush2.bf16.msra.mxu0 0
    %1324 = vmatprep.subr.bf16.mxu0 0
    %1325 = vmatpush2.bf16.msra.mxu0 0
    %1326 = vmatprep.subr.bf16.mxu0 0
    %1327 = vmatpush2.bf16.msra.mxu0 0
    %1328 = vmatprep.subr.bf16.mxu0 0
    %1329 = vmatpush2.bf16.msra.mxu0 0
    %1330 = vmatprep.subr.bf16.mxu0 0
    %1331 = vmatpush2.bf16.msra.mxu0 0
    %1332 = vmatprep.mubr.bf16.mxu0 0
    %1333 = vmatmul.mubr.bf16.gmra.mxu0 %v1043
    %v1334 = vpop.f32.mrf.mxu0
    %v1335 = vadd.f32 %v973, %v1334
    %v1336 = vpop.f32.mrf.mxu0
    %v1337 = vadd.f32 %v975, %v1336
    %v1338 = vpop.f32.mrf.mxu0
    %v1339 = vadd.f32 %v977, %v1338
    %v1340 = vpop.f32.mrf.mxu0
    %v1341 = vadd.f32 %v979, %v1340
    %1342 = vmatprep.mubr.bf16.mxu0 0
    %1343 = vmatmul.mubr.bf16.gmra.mxu0 %v1046
    %v1344 = vpop.f32.mrf.mxu0
    %v1345 = vadd.f32 %v983, %v1344
    %v1346 = vpop.f32.mrf.mxu0
    %v1347 = vadd.f32 %v985, %v1346
    %v1348 = vpop.f32.mrf.mxu0
    %v1349 = vadd.f32 %v987, %v1348
    %v1350 = vpop.f32.mrf.mxu0
    %v1351 = vadd.f32 %v989, %v1350
    %1352 = vmatprep.mubr.bf16.mxu0 0
    %1353 = vmatmul.mubr.bf16.gmra.mxu0 %v1049
    %v1354 = vpop.f32.mrf.mxu0
    %v1355 = vadd.f32 %v993, %v1354
    %v1356 = vpop.f32.mrf.mxu0
    %v1357 = vadd.f32 %v995, %v1356
    %v1358 = vpop.f32.mrf.mxu0
    %v1359 = vadd.f32 %v997, %v1358
    %v1360 = vpop.f32.mrf.mxu0
    %v1361 = vadd.f32 %v999, %v1360
    %1362 = vmatprep.mubr.bf16.mxu0 0
    %1363 = vmatmul.mubr.bf16.gmra.mxu0 %v1052
    %v1364 = vpop.f32.mrf.mxu0
    %v1365 = vadd.f32 %v1003, %v1364
    %v1366 = vpop.f32.mrf.mxu0
    %v1367 = vadd.f32 %v1005, %v1366
    %v1368 = vpop.f32.mrf.mxu0
    %v1369 = vadd.f32 %v1007, %v1368
    %v1370 = vpop.f32.mrf.mxu0
    %v1371 = vadd.f32 %v1009, %v1370
    %1372 = vmatprep.mubr.bf16.mxu0 0
    %1373 = vmatmul.mubr.bf16.gmra.mxu0 %v1055
    %v1374 = vpop.f32.mrf.mxu0
    %v1375 = vadd.f32 %v1013, %v1374
    %v1376 = vpop.f32.mrf.mxu0
    %v1377 = vadd.f32 %v1015, %v1376
    %v1378 = vpop.f32.mrf.mxu0
    %v1379 = vpop.f32.mrf.mxu0
    %1380 = vdwg.mxu0
    %s1381 = scalar_lea.vmem %s2, 72
    %v1382 = vld [vmem:[%s1381] sm:$0xf]
    %v1383 = vld [vmem:[%s1381 + $0x4] sm:$0xf]
    %v1384 = vld [vmem:[%s1381 + $0x8] sm:$0xf]
    %v1385 = vld [vmem:[%s1381 + $0xc] sm:$0xf]
    %v1386 = vld [vmem:[%s1381 + $0x10] sm:$0xf]
    %v1387 = vld [vmem:[%s1381 + $0x14] sm:$0xf]
    %v1388 = vld [vmem:[%s1381 + $0x18] sm:$0xf]
    %v1389 = vld [vmem:[%s1381 + $0x1c] sm:$0xf]
    %v1390 = vld [vmem:[%s1381 + $0x20] sm:$0x1]
    %v1400 = vunpack.c.l.b16 %v1382
    %v1401 = vunpack.c.l.b16 %v1383
    %v1402 = vunpack.c.l.b16 %v1384
    %v1403 = vunpack.c.l.b16 %v1385
    %v1404 = vunpack.c.l.b16 %v1386
    %v1405 = vunpack.c.l.b16 %v1387
    %v1406 = vunpack.c.l.b16 %v1388
    %v1407 = vunpack.c.l.b16 %v1389
    %v1408 = vunpack.c.l.b16 %v1390
    %v1409 = vpack.c.b16 %v1401, %v1400
    %v1410 = vpack.c.b16 %v1403, %v1402
    %v1411 = vpack.c.b16 %v1405, %v1404
    %v1412 = vpack.c.b16 %v1407, %v1406
    %v1413 = vpack.c.b16 %v1408, %v1408
    %v1415 = vsel %vm679, %v1409, 0
    %v1418 = vsel %vm679, %v1410, 0
    %v1421 = vsel %vm679, %v1411, 0
    %v1424 = vsel %vm679, %v1412, 0
    %v1427 = vsel %vm679, %v1413, 0
    %1429 = vmatprep.subr.bf16.mxu0 0
    %1430 = vmatpush1.bf16.msra.mxu0 0
    %1431 = vmatprep.subr.bf16.mxu0 0
    %1432 = vmatpush1.bf16.msra.mxu0 0
    %1433 = vmatprep.subr.bf16.mxu0 0
    %1434 = vmatpush1.bf16.msra.mxu0 0
    %1435 = vmatprep.subr.bf16.mxu0 0
    %1436 = vmatpush1.bf16.msra.mxu0 0
    %1437 = vmatprep.subr.bf16.mxu0 %v630
    %1438 = vmatpush1.bf16.msra.mxu0 %v629
    %1439 = vmatprep.subr.bf16.mxu0 %v622
    %1440 = vmatpush1.bf16.msra.mxu0 %v621
    %1441 = vmatprep.subr.bf16.mxu0 %v614
    %1442 = vmatpush1.bf16.msra.mxu0 %v613
    %1443 = vmatprep.subr.bf16.mxu0 %v606
    %1444 = vmatpush1.bf16.msra.mxu0 %v605
    %1445 = vmatprep.subr.bf16.mxu0 0
    %1446 = vmatpush2.bf16.msra.mxu0 0
    %1447 = vmatprep.subr.bf16.mxu0 0
    %1448 = vmatpush2.bf16.msra.mxu0 0
    %1449 = vmatprep.subr.bf16.mxu0 0
    %1450 = vmatpush2.bf16.msra.mxu0 0
    %1451 = vmatprep.subr.bf16.mxu0 0
    %1452 = vmatpush2.bf16.msra.mxu0 0
    %1453 = vmatprep.subr.bf16.mxu0 0
    %1454 = vmatpush2.bf16.msra.mxu0 0
    %1455 = vmatprep.subr.bf16.mxu0 0
    %1456 = vmatpush2.bf16.msra.mxu0 0
    %1457 = vmatprep.subr.bf16.mxu0 0
    %1458 = vmatpush2.bf16.msra.mxu0 0
    %1459 = vmatprep.subr.bf16.mxu0 0
    %1460 = vmatpush2.bf16.msra.mxu0 0
    %1461 = vmatprep.mubr.bf16.mxu0 0
    %1462 = vmatmul.mubr.bf16.gmra.mxu0 %v1415
    %v1463 = vpop.f32.mrf.mxu0
    %v1464 = vadd.f32 0.0, %v1463
    %v1465 = vpop.f32.mrf.mxu0
    %v1466 = vadd.f32 0.0, %v1465
    %v1467 = vpop.f32.mrf.mxu0
    %v1468 = vadd.f32 0.0, %v1467
    %v1469 = vpop.f32.mrf.mxu0
    %v1470 = vadd.f32 0.0, %v1469
    %1471 = vmatprep.mubr.bf16.mxu0 0
    %1472 = vmatmul.mubr.bf16.gmra.mxu0 %v1418
    %v1473 = vpop.f32.mrf.mxu0
    %v1474 = vadd.f32 0.0, %v1473
    %v1475 = vpop.f32.mrf.mxu0
    %v1476 = vadd.f32 0.0, %v1475
    %v1477 = vpop.f32.mrf.mxu0
    %v1478 = vadd.f32 0.0, %v1477
    %v1479 = vpop.f32.mrf.mxu0
    %v1480 = vadd.f32 0.0, %v1479
    %1481 = vmatprep.mubr.bf16.mxu0 0
    %1482 = vmatmul.mubr.bf16.gmra.mxu0 %v1421
    %v1483 = vpop.f32.mrf.mxu0
    %v1484 = vadd.f32 0.0, %v1483
    %v1485 = vpop.f32.mrf.mxu0
    %v1486 = vadd.f32 0.0, %v1485
    %v1487 = vpop.f32.mrf.mxu0
    %v1488 = vadd.f32 0.0, %v1487
    %v1489 = vpop.f32.mrf.mxu0
    %v1490 = vadd.f32 0.0, %v1489
    %1491 = vmatprep.mubr.bf16.mxu0 0
    %1492 = vmatmul.mubr.bf16.gmra.mxu0 %v1424
    %v1493 = vpop.f32.mrf.mxu0
    %v1494 = vadd.f32 0.0, %v1493
    %v1495 = vpop.f32.mrf.mxu0
    %v1496 = vadd.f32 0.0, %v1495
    %v1497 = vpop.f32.mrf.mxu0
    %v1498 = vadd.f32 0.0, %v1497
    %v1499 = vpop.f32.mrf.mxu0
    %v1500 = vadd.f32 0.0, %v1499
    %1501 = vmatprep.mubr.bf16.mxu0 0
    %1502 = vmatmul.mubr.bf16.gmra.mxu0 %v1427
    %v1503 = vpop.f32.mrf.mxu0
    %v1504 = vadd.f32 0.0, %v1503
    %v1505 = vpop.f32.mrf.mxu0
    %v1506 = vadd.f32 0.0, %v1505
    %v1507 = vpop.f32.mrf.mxu0
    %v1508 = vpop.f32.mrf.mxu0
    %1509 = vdwg.mxu0
    %1510 = vmatprep.subr.bf16.mxu0 0
    %1511 = vmatpush1.bf16.msra.mxu0 0
    %1512 = vmatprep.subr.bf16.mxu0 0
    %1513 = vmatpush1.bf16.msra.mxu0 0
    %1514 = vmatprep.subr.bf16.mxu0 0
    %1515 = vmatpush1.bf16.msra.mxu0 0
    %1516 = vmatprep.subr.bf16.mxu0 0
    %1517 = vmatpush1.bf16.msra.mxu0 0
    %1518 = vmatprep.subr.bf16.mxu0 %v632
    %1519 = vmatpush1.bf16.msra.mxu0 %v631
    %1520 = vmatprep.subr.bf16.mxu0 %v624
    %1521 = vmatpush1.bf16.msra.mxu0 %v623
    %1522 = vmatprep.subr.bf16.mxu0 %v616
    %1523 = vmatpush1.bf16.msra.mxu0 %v615
    %1524 = vmatprep.subr.bf16.mxu0 %v608
    %1525 = vmatpush1.bf16.msra.mxu0 %v607
    %1526 = vmatprep.subr.bf16.mxu0 0
    %1527 = vmatpush2.bf16.msra.mxu0 0
    %1528 = vmatprep.subr.bf16.mxu0 0
    %1529 = vmatpush2.bf16.msra.mxu0 0
    %1530 = vmatprep.subr.bf16.mxu0 0
    %1531 = vmatpush2.bf16.msra.mxu0 0
    %1532 = vmatprep.subr.bf16.mxu0 0
    %1533 = vmatpush2.bf16.msra.mxu0 0
    %1534 = vmatprep.subr.bf16.mxu0 0
    %1535 = vmatpush2.bf16.msra.mxu0 0
    %1536 = vmatprep.subr.bf16.mxu0 0
    %1537 = vmatpush2.bf16.msra.mxu0 0
    %1538 = vmatprep.subr.bf16.mxu0 0
    %1539 = vmatpush2.bf16.msra.mxu0 0
    %1540 = vmatprep.subr.bf16.mxu0 0
    %1541 = vmatpush2.bf16.msra.mxu0 0
    %1542 = vmatprep.mubr.bf16.mxu0 0
    %1543 = vmatmul.mubr.bf16.gmra.mxu0 %v1415
    %v1544 = vpop.f32.mrf.mxu0
    %v1545 = vadd.f32 0.0, %v1544
    %v1546 = vpop.f32.mrf.mxu0
    %v1547 = vadd.f32 0.0, %v1546
    %v1548 = vpop.f32.mrf.mxu0
    %v1549 = vadd.f32 0.0, %v1548
    %v1550 = vpop.f32.mrf.mxu0
    %v1551 = vadd.f32 0.0, %v1550
    %1552 = vmatprep.mubr.bf16.mxu0 0
    %1553 = vmatmul.mubr.bf16.gmra.mxu0 %v1418
    %v1554 = vpop.f32.mrf.mxu0
    %v1555 = vadd.f32 0.0, %v1554
    %v1556 = vpop.f32.mrf.mxu0
    %v1557 = vadd.f32 0.0, %v1556
    %v1558 = vpop.f32.mrf.mxu0
    %v1559 = vadd.f32 0.0, %v1558
    %v1560 = vpop.f32.mrf.mxu0
    %v1561 = vadd.f32 0.0, %v1560
    %1562 = vmatprep.mubr.bf16.mxu0 0
    %1563 = vmatmul.mubr.bf16.gmra.mxu0 %v1421
    %v1564 = vpop.f32.mrf.mxu0
    %v1565 = vadd.f32 0.0, %v1564
    %v1566 = vpop.f32.mrf.mxu0
    %v1567 = vadd.f32 0.0, %v1566
    %v1568 = vpop.f32.mrf.mxu0
    %v1569 = vadd.f32 0.0, %v1568
    %v1570 = vpop.f32.mrf.mxu0
    %v1571 = vadd.f32 0.0, %v1570
    %1572 = vmatprep.mubr.bf16.mxu0 0
    %1573 = vmatmul.mubr.bf16.gmra.mxu0 %v1424
    %v1574 = vpop.f32.mrf.mxu0
    %v1575 = vadd.f32 0.0, %v1574
    %v1576 = vpop.f32.mrf.mxu0
    %v1577 = vadd.f32 0.0, %v1576
    %v1578 = vpop.f32.mrf.mxu0
    %v1579 = vadd.f32 0.0, %v1578
    %v1580 = vpop.f32.mrf.mxu0
    %v1581 = vadd.f32 0.0, %v1580
    %1582 = vmatprep.mubr.bf16.mxu0 0
    %1583 = vmatmul.mubr.bf16.gmra.mxu0 %v1427
    %v1584 = vpop.f32.mrf.mxu0
    %v1585 = vadd.f32 0.0, %v1584
    %v1586 = vpop.f32.mrf.mxu0
    %v1587 = vadd.f32 0.0, %v1586
    %v1588 = vpop.f32.mrf.mxu0
    %v1589 = vpop.f32.mrf.mxu0
    %1590 = vdwg.mxu0
    %1591 = vmatprep.subr.bf16.mxu0 0
    %1592 = vmatpush1.bf16.msra.mxu0 0
    %1593 = vmatprep.subr.bf16.mxu0 0
    %1594 = vmatpush1.bf16.msra.mxu0 0
    %1595 = vmatprep.subr.bf16.mxu0 0
    %1596 = vmatpush1.bf16.msra.mxu0 0
    %1597 = vmatprep.subr.bf16.mxu0 0
    %1598 = vmatpush1.bf16.msra.mxu0 0
    %1599 = vmatprep.subr.bf16.mxu0 %v634
    %1600 = vmatpush1.bf16.msra.mxu0 %v633
    %1601 = vmatprep.subr.bf16.mxu0 %v626
    %1602 = vmatpush1.bf16.msra.mxu0 %v625
    %1603 = vmatprep.subr.bf16.mxu0 %v618
    %1604 = vmatpush1.bf16.msra.mxu0 %v617
    %1605 = vmatprep.subr.bf16.mxu0 %v610
    %1606 = vmatpush1.bf16.msra.mxu0 %v609
    %1607 = vmatprep.subr.bf16.mxu0 0
    %1608 = vmatpush2.bf16.msra.mxu0 0
    %1609 = vmatprep.subr.bf16.mxu0 0
    %1610 = vmatpush2.bf16.msra.mxu0 0
    %1611 = vmatprep.subr.bf16.mxu0 0
    %1612 = vmatpush2.bf16.msra.mxu0 0
    %1613 = vmatprep.subr.bf16.mxu0 0
    %1614 = vmatpush2.bf16.msra.mxu0 0
    %1615 = vmatprep.subr.bf16.mxu0 0
    %1616 = vmatpush2.bf16.msra.mxu0 0
    %1617 = vmatprep.subr.bf16.mxu0 0
    %1618 = vmatpush2.bf16.msra.mxu0 0
    %1619 = vmatprep.subr.bf16.mxu0 0
    %1620 = vmatpush2.bf16.msra.mxu0 0
    %1621 = vmatprep.subr.bf16.mxu0 0
    %1622 = vmatpush2.bf16.msra.mxu0 0
    %1623 = vmatprep.mubr.bf16.mxu0 0
    %1624 = vmatmul.mubr.bf16.gmra.mxu0 %v1415
    %v1625 = vpop.f32.mrf.mxu0
    %v1626 = vadd.f32 0.0, %v1625
    %v1627 = vpop.f32.mrf.mxu0
    %v1628 = vadd.f32 0.0, %v1627
    %v1629 = vpop.f32.mrf.mxu0
    %v1630 = vadd.f32 0.0, %v1629
    %v1631 = vpop.f32.mrf.mxu0
    %v1632 = vadd.f32 0.0, %v1631
    %1633 = vmatprep.mubr.bf16.mxu0 0
    %1634 = vmatmul.mubr.bf16.gmra.mxu0 %v1418
    %v1635 = vpop.f32.mrf.mxu0
    %v1636 = vadd.f32 0.0, %v1635
    %v1637 = vpop.f32.mrf.mxu0
    %v1638 = vadd.f32 0.0, %v1637
    %v1639 = vpop.f32.mrf.mxu0
    %v1640 = vadd.f32 0.0, %v1639
    %v1641 = vpop.f32.mrf.mxu0
    %v1642 = vadd.f32 0.0, %v1641
    %1643 = vmatprep.mubr.bf16.mxu0 0
    %1644 = vmatmul.mubr.bf16.gmra.mxu0 %v1421
    %v1645 = vpop.f32.mrf.mxu0
    %v1646 = vadd.f32 0.0, %v1645
    %v1647 = vpop.f32.mrf.mxu0
    %v1648 = vadd.f32 0.0, %v1647
    %v1649 = vpop.f32.mrf.mxu0
    %v1650 = vadd.f32 0.0, %v1649
    %v1651 = vpop.f32.mrf.mxu0
    %v1652 = vadd.f32 0.0, %v1651
    %1653 = vmatprep.mubr.bf16.mxu0 0
    %1654 = vmatmul.mubr.bf16.gmra.mxu0 %v1424
    %v1655 = vpop.f32.mrf.mxu0
    %v1656 = vadd.f32 0.0, %v1655
    %v1657 = vpop.f32.mrf.mxu0
    %v1658 = vadd.f32 0.0, %v1657
    %v1659 = vpop.f32.mrf.mxu0
    %v1660 = vadd.f32 0.0, %v1659
    %v1661 = vpop.f32.mrf.mxu0
    %v1662 = vadd.f32 0.0, %v1661
    %1663 = vmatprep.mubr.bf16.mxu0 0
    %1664 = vmatmul.mubr.bf16.gmra.mxu0 %v1427
    %v1665 = vpop.f32.mrf.mxu0
    %v1666 = vadd.f32 0.0, %v1665
    %v1667 = vpop.f32.mrf.mxu0
    %v1668 = vadd.f32 0.0, %v1667
    %v1669 = vpop.f32.mrf.mxu0
    %v1670 = vpop.f32.mrf.mxu0
    %1671 = vdwg.mxu0
    %1672 = vmatprep.subr.bf16.mxu0 0
    %1673 = vmatpush1.bf16.msra.mxu0 0
    %1674 = vmatprep.subr.bf16.mxu0 0
    %1675 = vmatpush1.bf16.msra.mxu0 0
    %1676 = vmatprep.subr.bf16.mxu0 0
    %1677 = vmatpush1.bf16.msra.mxu0 0
    %1678 = vmatprep.subr.bf16.mxu0 0
    %1679 = vmatpush1.bf16.msra.mxu0 0
    %1680 = vmatprep.subr.bf16.mxu0 %v636
    %1681 = vmatpush1.bf16.msra.mxu0 %v635
    %1682 = vmatprep.subr.bf16.mxu0 %v628
    %1683 = vmatpush1.bf16.msra.mxu0 %v627
    %1684 = vmatprep.subr.bf16.mxu0 %v620
    %1685 = vmatpush1.bf16.msra.mxu0 %v619
    %1686 = vmatprep.subr.bf16.mxu0 %v612
    %1687 = vmatpush1.bf16.msra.mxu0 %v611
    %1688 = vmatprep.subr.bf16.mxu0 0
    %1689 = vmatpush2.bf16.msra.mxu0 0
    %1690 = vmatprep.subr.bf16.mxu0 0
    %1691 = vmatpush2.bf16.msra.mxu0 0
    %1692 = vmatprep.subr.bf16.mxu0 0
    %1693 = vmatpush2.bf16.msra.mxu0 0
    %1694 = vmatprep.subr.bf16.mxu0 0
    %1695 = vmatpush2.bf16.msra.mxu0 0
    %1696 = vmatprep.subr.bf16.mxu0 0
    %1697 = vmatpush2.bf16.msra.mxu0 0
    %1698 = vmatprep.subr.bf16.mxu0 0
    %1699 = vmatpush2.bf16.msra.mxu0 0
    %1700 = vmatprep.subr.bf16.mxu0 0
    %1701 = vmatpush2.bf16.msra.mxu0 0
    %1702 = vmatprep.subr.bf16.mxu0 0
    %1703 = vmatpush2.bf16.msra.mxu0 0
    %1704 = vmatprep.mubr.bf16.mxu0 0
    %1705 = vmatmul.mubr.bf16.gmra.mxu0 %v1415
    %v1706 = vpop.f32.mrf.mxu0
    %v1707 = vadd.f32 0.0, %v1706
    %v1708 = vpop.f32.mrf.mxu0
    %v1709 = vadd.f32 0.0, %v1708
    %v1710 = vpop.f32.mrf.mxu0
    %v1711 = vadd.f32 0.0, %v1710
    %v1712 = vpop.f32.mrf.mxu0
    %v1713 = vadd.f32 0.0, %v1712
    %1714 = vmatprep.mubr.bf16.mxu0 0
    %1715 = vmatmul.mubr.bf16.gmra.mxu0 %v1418
    %v1716 = vpop.f32.mrf.mxu0
    %v1717 = vadd.f32 0.0, %v1716
    %v1718 = vpop.f32.mrf.mxu0
    %v1719 = vadd.f32 0.0, %v1718
    %v1720 = vpop.f32.mrf.mxu0
    %v1721 = vadd.f32 0.0, %v1720
    %v1722 = vpop.f32.mrf.mxu0
    %v1723 = vadd.f32 0.0, %v1722
    %1724 = vmatprep.mubr.bf16.mxu0 0
    %1725 = vmatmul.mubr.bf16.gmra.mxu0 %v1421
    %v1726 = vpop.f32.mrf.mxu0
    %v1727 = vadd.f32 0.0, %v1726
    %v1728 = vpop.f32.mrf.mxu0
    %v1729 = vadd.f32 0.0, %v1728
    %v1730 = vpop.f32.mrf.mxu0
    %v1731 = vadd.f32 0.0, %v1730
    %v1732 = vpop.f32.mrf.mxu0
    %v1733 = vadd.f32 0.0, %v1732
    %1734 = vmatprep.mubr.bf16.mxu0 0
    %1735 = vmatmul.mubr.bf16.gmra.mxu0 %v1424
    %v1736 = vpop.f32.mrf.mxu0
    %v1737 = vadd.f32 0.0, %v1736
    %v1738 = vpop.f32.mrf.mxu0
    %v1739 = vadd.f32 0.0, %v1738
    %v1740 = vpop.f32.mrf.mxu0
    %v1741 = vadd.f32 0.0, %v1740
    %v1742 = vpop.f32.mrf.mxu0
    %v1743 = vadd.f32 0.0, %v1742
    %1744 = vmatprep.mubr.bf16.mxu0 0
    %1745 = vmatmul.mubr.bf16.gmra.mxu0 %v1427
    %v1746 = vpop.f32.mrf.mxu0
    %v1747 = vadd.f32 0.0, %v1746
    %v1748 = vpop.f32.mrf.mxu0
    %v1749 = vadd.f32 0.0, %v1748
    %v1750 = vpop.f32.mrf.mxu0
    %v1751 = vpop.f32.mrf.mxu0
    %1752 = vdwg.mxu0
    %v1753 = vadd.f32 %v1092, %v1464
    %v1754 = vadd.f32 %v1094, %v1466
    %v1755 = vadd.f32 %v1173, %v1545
    %v1756 = vadd.f32 %v1175, %v1547
    %v1757 = vadd.f32 %v1254, %v1626
    %v1758 = vadd.f32 %v1256, %v1628
    %v1759 = vadd.f32 %v1335, %v1707
    %v1760 = vadd.f32 %v1337, %v1709
    %v1761 = vadd.f32 %v1096, %v1468
    %v1762 = vadd.f32 %v1098, %v1470
    %v1763 = vadd.f32 %v1177, %v1549
    %v1764 = vadd.f32 %v1179, %v1551
    %v1765 = vadd.f32 %v1258, %v1630
    %v1766 = vadd.f32 %v1260, %v1632
    %v1767 = vadd.f32 %v1339, %v1711
    %v1768 = vadd.f32 %v1341, %v1713
    %v1769 = vadd.f32 %v1102, %v1474
    %v1770 = vadd.f32 %v1104, %v1476
    %v1771 = vadd.f32 %v1183, %v1555
    %v1772 = vadd.f32 %v1185, %v1557
    %v1773 = vadd.f32 %v1264, %v1636
    %v1774 = vadd.f32 %v1266, %v1638
    %v1775 = vadd.f32 %v1345, %v1717
    %v1776 = vadd.f32 %v1347, %v1719
    %v1777 = vadd.f32 %v1106, %v1478
    %v1778 = vadd.f32 %v1108, %v1480
    %v1779 = vadd.f32 %v1187, %v1559
    %v1780 = vadd.f32 %v1189, %v1561
    %v1781 = vadd.f32 %v1268, %v1640
    %v1782 = vadd.f32 %v1270, %v1642
    %v1783 = vadd.f32 %v1349, %v1721
    %v1784 = vadd.f32 %v1351, %v1723
    %v1785 = vadd.f32 %v1112, %v1484
    %v1786 = vadd.f32 %v1114, %v1486
    %v1787 = vadd.f32 %v1193, %v1565
    %v1788 = vadd.f32 %v1195, %v1567
    %v1789 = vadd.f32 %v1274, %v1646
    %v1790 = vadd.f32 %v1276, %v1648
    %v1791 = vadd.f32 %v1355, %v1727
    %v1792 = vadd.f32 %v1357, %v1729
    %v1793 = vadd.f32 %v1116, %v1488
    %v1794 = vadd.f32 %v1118, %v1490
    %v1795 = vadd.f32 %v1197, %v1569
    %v1796 = vadd.f32 %v1199, %v1571
    %v1797 = vadd.f32 %v1278, %v1650
    %v1798 = vadd.f32 %v1280, %v1652
    %v1799 = vadd.f32 %v1359, %v1731
    %v1800 = vadd.f32 %v1361, %v1733
    %v1801 = vadd.f32 %v1122, %v1494
    %v1802 = vadd.f32 %v1124, %v1496
    %v1803 = vadd.f32 %v1203, %v1575
    %v1804 = vadd.f32 %v1205, %v1577
    %v1805 = vadd.f32 %v1284, %v1656
    %v1806 = vadd.f32 %v1286, %v1658
    %v1807 = vadd.f32 %v1365, %v1737
    %v1808 = vadd.f32 %v1367, %v1739
    %v1809 = vadd.f32 %v1126, %v1498
    %v1810 = vadd.f32 %v1128, %v1500
    %v1811 = vadd.f32 %v1207, %v1579
    %v1812 = vadd.f32 %v1209, %v1581
    %v1813 = vadd.f32 %v1288, %v1660
    %v1814 = vadd.f32 %v1290, %v1662
    %v1815 = vadd.f32 %v1369, %v1741
    %v1816 = vadd.f32 %v1371, %v1743
    %v1817 = vadd.f32 %v1132, %v1504
    %v1818 = vadd.f32 %v1134, %v1506
    %v1819 = vadd.f32 %v1213, %v1585
    %v1820 = vadd.f32 %v1215, %v1587
    %v1821 = vadd.f32 %v1294, %v1666
    %v1822 = vadd.f32 %v1296, %v1668
    %v1823 = vadd.f32 %v1375, %v1747
    %v1824 = vadd.f32 %v1377, %v1749
    %v1825 = vmul.f32 %v1753, %v1753
    %v1826 = vmul.f32 %v1754, %v1754
    %v1827 = vmul.f32 %v1755, %v1755
    %v1828 = vmul.f32 %v1756, %v1756
    %v1829 = vmul.f32 %v1757, %v1757
    %v1830 = vmul.f32 %v1758, %v1758
    %v1831 = vmul.f32 %v1759, %v1759
    %v1832 = vmul.f32 %v1760, %v1760
    %v1833 = vmul.f32 %v1761, %v1761
    %v1834 = vmul.f32 %v1762, %v1762
    %v1835 = vmul.f32 %v1763, %v1763
    %v1836 = vmul.f32 %v1764, %v1764
    %v1837 = vmul.f32 %v1765, %v1765
    %v1838 = vmul.f32 %v1766, %v1766
    %v1839 = vmul.f32 %v1767, %v1767
    %v1840 = vmul.f32 %v1768, %v1768
    %v1841 = vmul.f32 %v1769, %v1769
    %v1842 = vmul.f32 %v1770, %v1770
    %v1843 = vmul.f32 %v1771, %v1771
    %v1844 = vmul.f32 %v1772, %v1772
    %v1845 = vmul.f32 %v1773, %v1773
    %v1846 = vmul.f32 %v1774, %v1774
    %v1847 = vmul.f32 %v1775, %v1775
    %v1848 = vmul.f32 %v1776, %v1776
    %v1849 = vmul.f32 %v1777, %v1777
    %v1850 = vmul.f32 %v1778, %v1778
    %v1851 = vmul.f32 %v1779, %v1779
    %v1852 = vmul.f32 %v1780, %v1780
    %v1853 = vmul.f32 %v1781, %v1781
    %v1854 = vmul.f32 %v1782, %v1782
    %v1855 = vmul.f32 %v1783, %v1783
    %v1856 = vmul.f32 %v1784, %v1784
    %v1857 = vsub.f32 %v1825, %v1785
    %v1858 = vsub.f32 %v1826, %v1786
    %v1859 = vsub.f32 %v1827, %v1787
    %v1860 = vsub.f32 %v1828, %v1788
    %v1861 = vsub.f32 %v1829, %v1789
    %v1862 = vsub.f32 %v1830, %v1790
    %v1863 = vsub.f32 %v1831, %v1791
    %v1864 = vsub.f32 %v1832, %v1792
    %v1865 = vsub.f32 %v1833, %v1793
    %v1866 = vsub.f32 %v1834, %v1794
    %v1867 = vsub.f32 %v1835, %v1795
    %v1868 = vsub.f32 %v1836, %v1796
    %v1869 = vsub.f32 %v1837, %v1797
    %v1870 = vsub.f32 %v1838, %v1798
    %v1871 = vsub.f32 %v1839, %v1799
    %v1872 = vsub.f32 %v1840, %v1800
    %v1873 = vsub.f32 %v1841, %v1801
    %v1874 = vsub.f32 %v1842, %v1802
    %v1875 = vsub.f32 %v1843, %v1803
    %v1876 = vsub.f32 %v1844, %v1804
    %v1877 = vsub.f32 %v1845, %v1805
    %v1878 = vsub.f32 %v1846, %v1806
    %v1879 = vsub.f32 %v1847, %v1807
    %v1880 = vsub.f32 %v1848, %v1808
    %v1881 = vsub.f32 %v1849, %v1809
    %v1882 = vsub.f32 %v1850, %v1810
    %v1883 = vsub.f32 %v1851, %v1811
    %v1884 = vsub.f32 %v1852, %v1812
    %v1885 = vsub.f32 %v1853, %v1813
    %v1886 = vsub.f32 %v1854, %v1814
    %v1887 = vsub.f32 %v1855, %v1815
    %v1888 = vsub.f32 %v1856, %v1816
    %v1889 = vadd.f32 %v1857, %v1865
    %v1890 = vadd.f32 %v1889, %v1873
    %v1891 = vadd.f32 %v1890, %v1881
    %v1892 = vrot.slane %v1891, 4
    %v1893 = vadd.f32 %v1891, %v1892
    %v1894 = vrot.slane %v1893, 2
    %v1895 = vadd.f32 %v1893, %v1894
    %v1896 = vrot.slane %v1895, 1
    %v1897 = vadd.f32 %v1895, %v1896
    %v1898 = vadd.f32 %v1858, %v1866
    %v1899 = vadd.f32 %v1898, %v1874
    %v1900 = vadd.f32 %v1899, %v1882
    %v1901 = vrot.slane %v1900, 4
    %v1902 = vadd.f32 %v1900, %v1901
    %v1903 = vrot.slane %v1902, 2
    %v1904 = vadd.f32 %v1902, %v1903
    %v1905 = vrot.slane %v1904, 1
    %v1906 = vadd.f32 %v1904, %v1905
    %v1907 = vadd.f32 %v1859, %v1867
    %v1908 = vadd.f32 %v1907, %v1875
    %v1909 = vadd.f32 %v1908, %v1883
    %v1910 = vrot.slane %v1909, 4
    %v1911 = vadd.f32 %v1909, %v1910
    %v1912 = vrot.slane %v1911, 2
    %v1913 = vadd.f32 %v1911, %v1912
    %v1914 = vrot.slane %v1913, 1
    %v1915 = vadd.f32 %v1913, %v1914
    %v1916 = vadd.f32 %v1860, %v1868
    %v1917 = vadd.f32 %v1916, %v1876
    %v1918 = vadd.f32 %v1917, %v1884
    %v1919 = vrot.slane %v1918, 4
    %v1920 = vadd.f32 %v1918, %v1919
    %v1921 = vrot.slane %v1920, 2
    %v1922 = vadd.f32 %v1920, %v1921
    %v1923 = vrot.slane %v1922, 1
    %v1924 = vadd.f32 %v1922, %v1923
    %v1925 = vadd.f32 %v1861, %v1869
    %v1926 = vadd.f32 %v1925, %v1877
    %v1927 = vadd.f32 %v1926, %v1885
    %v1928 = vrot.slane %v1927, 4
    %v1929 = vadd.f32 %v1927, %v1928
    %v1930 = vrot.slane %v1929, 2
    %v1931 = vadd.f32 %v1929, %v1930
    %v1932 = vrot.slane %v1931, 1
    %v1933 = vadd.f32 %v1931, %v1932
    %v1934 = vadd.f32 %v1862, %v1870
    %v1935 = vadd.f32 %v1934, %v1878
    %v1936 = vadd.f32 %v1935, %v1886
    %v1937 = vrot.slane %v1936, 4
    %v1938 = vadd.f32 %v1936, %v1937
    %v1939 = vrot.slane %v1938, 2
    %v1940 = vadd.f32 %v1938, %v1939
    %v1941 = vrot.slane %v1940, 1
    %v1942 = vadd.f32 %v1940, %v1941
    %v1943 = vadd.f32 %v1863, %v1871
    %v1944 = vadd.f32 %v1943, %v1879
    %v1945 = vadd.f32 %v1944, %v1887
    %v1946 = vrot.slane %v1945, 4
    %v1947 = vadd.f32 %v1945, %v1946
    %v1948 = vrot.slane %v1947, 2
    %v1949 = vadd.f32 %v1947, %v1948
    %v1950 = vrot.slane %v1949, 1
    %v1951 = vadd.f32 %v1949, %v1950
    %v1952 = vadd.f32 %v1864, %v1872
    %v1953 = vadd.f32 %v1952, %v1880
    %v1954 = vadd.f32 %v1953, %v1888
    %v1955 = vrot.slane %v1954, 4
    %v1956 = vadd.f32 %v1954, %v1955
    %v1957 = vrot.slane %v1956, 2
    %v1958 = vadd.f32 %v1956, %v1957
    %v1959 = vrot.slane %v1958, 1
    %v1960 = vadd.f32 %v1958, %v1959
    %v1961 = vmul.f32 %v1897, 0.5
    %v1962 = vmul.f32 %v1906, 0.5
    %v1963 = vmul.f32 %v1915, 0.5
    %v1964 = vmul.f32 %v1924, 0.5
    %v1965 = vmul.f32 %v1933, 0.5
    %v1966 = vmul.f32 %v1942, 0.5
    %v1967 = vmul.f32 %v1951, 0.5
    %v1968 = vmul.f32 %v1960, 0.5
    %v1969 = vadd.f32 %v1961, %v1817
    %v1970 = vadd.f32 %v1962, %v1818
    %v1971 = vadd.f32 %v1963, %v1819
    %v1972 = vadd.f32 %v1964, %v1820
    %v1973 = vadd.f32 %v1965, %v1821
    %v1974 = vadd.f32 %v1966, %v1822
    %v1975 = vadd.f32 %v1967, %v1823
    %v1976 = vadd.f32 %v1968, %v1824
    %s1977 = sld [smem:[#allocation2]]
    %v1978 = vstv %s1977
    %v1979 = vadd.f32 %v1969, %v1978
    %v1980 = vadd.f32 %v1970, %v1978
    %v1981 = vadd.f32 %v1971, %v1978
    %v1982 = vadd.f32 %v1972, %v1978
    %v1983 = vadd.f32 %v1973, %v1978
    %v1984 = vadd.f32 %v1974, %v1978
    %v1985 = vadd.f32 %v1975, %v1978
    %v1986 = vadd.f32 %v1976, %v1978
    %v1995 = vcombine.low %v1979, %v1980
    %v1996 = vcombine.low %v1981, %v1982
    %v1997 = vcombine.low %v1983, %v1984
    %v1998 = vcombine.low %v1985, %v1986
    %v2000 = vunpack.c.l.s4 1966171168
    %v2001 = vunpack.c.0.s8 %v2000
    %v2002 = vlaneseq
    %v2003 = vshrl.u32 %v2002, 7
    %v2004 = vsub.s32 %v2001, %v2003
    %v2005 = vrot.slane %v1995, %v2004
    %v2007 = vunpack.c.l.s4 1966171168
    %v2008 = vunpack.c.0.s8 %v2007
    %v2009 = vlaneseq
    %v2010 = vshrl.u32 %v2009, 7
    %v2011 = vsub.s32 %v2008, %v2010
    %v2012 = vrot.slane %v1996, %v2011
    %v2014 = vunpack.c.l.s4 1966171168
    %v2015 = vunpack.c.0.s8 %v2014
    %v2016 = vlaneseq
    %v2017 = vshrl.u32 %v2016, 7
    %v2018 = vsub.s32 %v2015, %v2017
    %v2019 = vrot.slane %v1997, %v2018
    %v2021 = vunpack.c.l.s4 1966171168
    %v2022 = vunpack.c.0.s8 %v2021
    %v2023 = vlaneseq
    %v2024 = vshrl.u32 %v2023, 7
    %v2025 = vsub.s32 %v2022, %v2024
    %v2026 = vrot.slane %v1998, %v2025
    %v2027 = vcombine.low %v2005, %v2012
    %v2028 = vcombine.low %v2019, %v2026
    %v2030 = vunpack.c.l.s4 1966171168
    %v2031 = vunpack.c.0.s8 %v2030
    %v2032 = vlaneseq
    %v2033 = vshrl.u32 %v2032, 7
    %v2034 = vsub.s32 %v2031, %v2033
    %v2035 = vrot.slane %v2027, %v2034
    %v2037 = vunpack.c.l.s4 1966171168
    %v2038 = vunpack.c.0.s8 %v2037
    %v2039 = vlaneseq
    %v2040 = vshrl.u32 %v2039, 7
    %v2041 = vsub.s32 %v2038, %v2040
    %v2042 = vrot.slane %v2028, %v2041
    %v2043 = vcombine.low %v2035, %v2042
    %2045 = vst [vmem:[#allocation3] sm:$0xff] %v2043
    // Predicated region
    $region14: #{tpu_custom_call.1} parent=1 // pred_check
      _
    $region15: #{tpu_custom_call.1} parent=1 // pred_check_branch
      %2047 = sbr.rel (0) target = $region17
    $region16: #{tpu_custom_call.1} parent=1 // pred_region
      %s2049 = ssub.s32 128, 128
      %2050 = vsyncadd [#allocation4], %s2049
      %s2052 = sshll.u32 [#allocation3], 4
      %s2053 = int_to_ptr.vmem [resolvable:$true] %s2052
      %2055 = dma.vmem_to_hbm [thread:$0]  %s2053, 128, %s3, [#allocation4]
    $region17: #{tpu_custom_call.1} parent=1 // pred_fallthru
      _
    // Predicated region
    $region18: #{tpu_custom_call.1} parent=1 // pred_check
      _
    $region19: #{tpu_custom_call.1} parent=1 // pred_check_branch
      %2057 = sbr.rel (0) target = $region21
    $region20: #{tpu_custom_call.1} parent=1 // pred_region
      %2058 = dma.done [#allocation4], 128
    $region21: #{tpu_custom_call.1} parent=1 // pred_fallthru
      _
    %2059 = vsyncpa [#allocation4], 1

// kernel: tpu_custom_call.1
$region0: #{tpu_custom_call.1}
  #allocation0 [shape = 'u32[]', space=smem, size = 0x4, offset = 0x4, fixed_abs, tag = 'smem constant byte address 0x4 - core index']
  #allocation1 [shape = 'u32[144,128]{1,0:T(1,128)}', space=vmem, size = 0x12000, scoped, tag = 'internal scratch']
  #allocation2 [shape = 'f32[1]{0:T(128)S(6)}', space=smem, size = 0x200, scoped, tag = 'scoped memory for tpu_custom_call.1']
  %s0 = inlined_call_operand.<no memory space> [shape: f32[1], index: 0, kind: input, shape index: {}]
  %s1 = inlined_call_operand.vmem [shape: s32[2,1024], index: 1, kind: input, shape index: {}]
  %s2 = inlined_call_operand.vmem [shape: bf16[3,65,64], index: 2, kind: input, shape index: {}]
  %s3 = inlined_call_operand.hbm [shape: f32[1,1024], index: 3, kind: output, shape index: {}]
  %s4 = sld [smem:[#allocation0]]
  $region22: #{tpu_custom_call.1} parent=0
    _
  %s6 = ssub.s32 1, %s4
  %s7 = scalar_select 0, %s6, %s4
  %8 = sst [smem:[#allocation2]] %s0
  $region1: #{tpu_custom_call.1} parent=0
    #allocation3 [shape = 'u8[4096]{0}', space=vmem, size = 0x1000, scoped, tag = 'output window, operand 0, single buffered']
    #allocation4 [shape = 's32[1]{0}', space=sflag, size = 0x4, scoped, tag = 'scoped memory for tpu_custom_call.1']
    %9 = vsyncpa [#allocation4], 0
    // Predicated region
    $region2: #{tpu_custom_call.1} parent=1 // pred_check
      _
    $region3: #{tpu_custom_call.1} parent=1 // pred_check_branch
      %11 = sbr.rel (0) target = $region5
    $region4: #{tpu_custom_call.1} parent=1 // pred_region
      _
    $region5: #{tpu_custom_call.1} parent=1 // pred_fallthru
      _
    // Predicated region
    $region6: #{tpu_custom_call.1} parent=1 // pred_check
      _
    $region7: #{tpu_custom_call.1} parent=1 // pred_check_branch
      %13 = sbr.rel (0) target = $region9
    $region8: #{tpu_custom_call.1} parent=1 // pred_region
      _
    $region9: #{tpu_custom_call.1} parent=1 // pred_fallthru
      _
    // Predicated region
    $region10: #{tpu_custom_call.1} parent=1 // pred_check
      _
    $region11: #{tpu_custom_call.1} parent=1 // pred_check_branch
      %15 = sbr.rel (0) target = $region13
    $region12: #{tpu_custom_call.1} parent=1 // pred_region
      _
    $region13: #{tpu_custom_call.1} parent=1 // pred_fallthru
      _
    %v17 = vlaneseq
    %v18 = vshrl.u32 %v17, 7
    %v19 = vadd.s32 %v18, 8
    %v20 = vadd.s32 %v18, 16
    %v21 = vadd.s32 %v18, 24
    %v22 = vadd.s32 %v18, 32
    %v23 = vadd.s32 %v18, 40
    %v24 = vadd.s32 %v18, 48
    %v25 = vadd.s32 %v18, 56
    %v26 = vld [vmem:[%s1] ss:$2 sm:$0xff]
    %v27 = vlaneseq
    %v28 = vshrl.u32 %v27, 7
    %v29 = vsub.s32 0, %v28
    %v30 = vrot.slane %v26, %v29
    %v31 = vlaneseq
    %v32 = vshrl.u32 %v31, 7
    %v33 = vsub.s32 1, %v32
    %v34 = vrot.slane %v26, %v33
    %v35 = vlaneseq
    %v36 = vshrl.u32 %v35, 7
    %v37 = vsub.s32 2, %v36
    %v38 = vrot.slane %v26, %v37
    %v39 = vlaneseq
    %v40 = vshrl.u32 %v39, 7
    %v41 = vsub.s32 3, %v40
    %v42 = vrot.slane %v26, %v41
    %v43 = vlaneseq
    %v44 = vshrl.u32 %v43, 7
    %v45 = vsub.s32 4, %v44
    %v46 = vrot.slane %v26, %v45
    %v47 = vlaneseq
    %v48 = vshrl.u32 %v47, 7
    %v49 = vsub.s32 5, %v48
    %v50 = vrot.slane %v26, %v49
    %v51 = vlaneseq
    %v52 = vshrl.u32 %v51, 7
    %v53 = vsub.s32 6, %v52
    %v54 = vrot.slane %v26, %v53
    %v55 = vlaneseq
    %v56 = vshrl.u32 %v55, 7
    %v57 = vsub.s32 7, %v56
    %v58 = vrot.slane %v26, %v57
    %vm59 = vcmp.eq.s32.totalorder %v18, %v30
    %vm60 = vcmp.eq.s32.totalorder %v18, %v34
    %vm61 = vcmp.eq.s32.totalorder %v18, %v38
    %vm62 = vcmp.eq.s32.totalorder %v18, %v42
    %vm63 = vcmp.eq.s32.totalorder %v18, %v46
    %vm64 = vcmp.eq.s32.totalorder %v18, %v50
    %vm65 = vcmp.eq.s32.totalorder %v18, %v54
    %vm66 = vcmp.eq.s32.totalorder %v18, %v58
    %vm67 = vcmp.eq.s32.totalorder %v19, %v30
    %vm68 = vcmp.eq.s32.totalorder %v19, %v34
    %vm69 = vcmp.eq.s32.totalorder %v19, %v38
    %vm70 = vcmp.eq.s32.totalorder %v19, %v42
    %vm71 = vcmp.eq.s32.totalorder %v19, %v46
    %vm72 = vcmp.eq.s32.totalorder %v19, %v50
    %vm73 = vcmp.eq.s32.totalorder %v19, %v54
    %vm74 = vcmp.eq.s32.totalorder %v19, %v58
    %vm75 = vcmp.eq.s32.totalorder %v20, %v30
    %vm76 = vcmp.eq.s32.totalorder %v20, %v34
    %vm77 = vcmp.eq.s32.totalorder %v20, %v38
    %vm78 = vcmp.eq.s32.totalorder %v20, %v42
    %vm79 = vcmp.eq.s32.totalorder %v20, %v46
    %vm80 = vcmp.eq.s32.totalorder %v20, %v50
    %vm81 = vcmp.eq.s32.totalorder %v20, %v54
    %vm82 = vcmp.eq.s32.totalorder %v20, %v58
    %vm83 = vcmp.eq.s32.totalorder %v21, %v30
    %vm84 = vcmp.eq.s32.totalorder %v21, %v34
    %vm85 = vcmp.eq.s32.totalorder %v21, %v38
    %vm86 = vcmp.eq.s32.totalorder %v21, %v42
    %vm87 = vcmp.eq.s32.totalorder %v21, %v46
    %vm88 = vcmp.eq.s32.totalorder %v21, %v50
    %vm89 = vcmp.eq.s32.totalorder %v21, %v54
    %vm90 = vcmp.eq.s32.totalorder %v21, %v58
    %vm91 = vcmp.eq.s32.totalorder %v22, %v30
    %vm92 = vcmp.eq.s32.totalorder %v22, %v34
    %vm93 = vcmp.eq.s32.totalorder %v22, %v38
    %vm94 = vcmp.eq.s32.totalorder %v22, %v42
    %vm95 = vcmp.eq.s32.totalorder %v22, %v46
    %vm96 = vcmp.eq.s32.totalorder %v22, %v50
    %vm97 = vcmp.eq.s32.totalorder %v22, %v54
    %vm98 = vcmp.eq.s32.totalorder %v22, %v58
    %vm99 = vcmp.eq.s32.totalorder %v23, %v30
    %vm100 = vcmp.eq.s32.totalorder %v23, %v34
    %vm101 = vcmp.eq.s32.totalorder %v23, %v38
    %vm102 = vcmp.eq.s32.totalorder %v23, %v42
    %vm103 = vcmp.eq.s32.totalorder %v23, %v46
    %vm104 = vcmp.eq.s32.totalorder %v23, %v50
    %vm105 = vcmp.eq.s32.totalorder %v23, %v54
    %vm106 = vcmp.eq.s32.totalorder %v23, %v58
    %vm107 = vcmp.eq.s32.totalorder %v24, %v30
    %vm108 = vcmp.eq.s32.totalorder %v24, %v34
    %vm109 = vcmp.eq.s32.totalorder %v24, %v38
    %vm110 = vcmp.eq.s32.totalorder %v24, %v42
    %vm111 = vcmp.eq.s32.totalorder %v24, %v46
    %vm112 = vcmp.eq.s32.totalorder %v24, %v50
    %vm113 = vcmp.eq.s32.totalorder %v24, %v54
    %vm114 = vcmp.eq.s32.totalorder %v24, %v58
    %vm115 = vcmp.eq.s32.totalorder %v25, %v30
    %vm116 = vcmp.eq.s32.totalorder %v25, %v34
    %vm117 = vcmp.eq.s32.totalorder %v25, %v38
    %vm118 = vcmp.eq.s32.totalorder %v25, %v42
    %vm119 = vcmp.eq.s32.totalorder %v25, %v46
    %vm120 = vcmp.eq.s32.totalorder %v25, %v50
    %vm121 = vcmp.eq.s32.totalorder %v25, %v54
    %vm122 = vcmp.eq.s32.totalorder %v25, %v58
    %v123 = vsel %vm59, 1, 0
    %v124 = vsel %vm60, 1, 0
    %v125 = vsel %vm61, 1, 0
    %v126 = vsel %vm62, 1, 0
    %v127 = vsel %vm63, 1, 0
    %v128 = vsel %vm64, 1, 0
    %v129 = vsel %vm65, 1, 0
    %v130 = vsel %vm66, 1, 0
    %v131 = vsel %vm67, 1, 0
    %v132 = vsel %vm68, 1, 0
    %v133 = vsel %vm69, 1, 0
    %v134 = vsel %vm70, 1, 0
    %v135 = vsel %vm71, 1, 0
    %v136 = vsel %vm72, 1, 0
    %v137 = vsel %vm73, 1, 0
    %v138 = vsel %vm74, 1, 0
    %v139 = vsel %vm75, 1, 0
    %v140 = vsel %vm76, 1, 0
    %v141 = vsel %vm77, 1, 0
    %v142 = vsel %vm78, 1, 0
    %v143 = vsel %vm79, 1, 0
    %v144 = vsel %vm80, 1, 0
    %v145 = vsel %vm81, 1, 0
    %v146 = vsel %vm82, 1, 0
    %v147 = vsel %vm83, 1, 0
    %v148 = vsel %vm84, 1, 0
    %v149 = vsel %vm85, 1, 0
    %v150 = vsel %vm86, 1, 0
    %v151 = vsel %vm87, 1, 0
    %v152 = vsel %vm88, 1, 0
    %v153 = vsel %vm89, 1, 0
    %v154 = vsel %vm90, 1, 0
    %v155 = vsel %vm91, 1, 0
    %v156 = vsel %vm92, 1, 0
    %v157 = vsel %vm93, 1, 0
    %v158 = vsel %vm94, 1, 0
    %v159 = vsel %vm95, 1, 0
    %v160 = vsel %vm96, 1, 0
    %v161 = vsel %vm97, 1, 0
    %v162 = vsel %vm98, 1, 0
    %v163 = vsel %vm99, 1, 0
    %v164 = vsel %vm100, 1, 0
    %v165 = vsel %vm101, 1, 0
    %v166 = vsel %vm102, 1, 0
    %v167 = vsel %vm103, 1, 0
    %v168 = vsel %vm104, 1, 0
    %v169 = vsel %vm105, 1, 0
    %v170 = vsel %vm106, 1, 0
    %v171 = vsel %vm107, 1, 0
    %v172 = vsel %vm108, 1, 0
    %v173 = vsel %vm109, 1, 0
    %v174 = vsel %vm110, 1, 0
    %v175 = vsel %vm111, 1, 0
    %v176 = vsel %vm112, 1, 0
    %v177 = vsel %vm113, 1, 0
    %v178 = vsel %vm114, 1, 0
    %v179 = vsel %vm115, 1, 0
    %v180 = vsel %vm116, 1, 0
    %v181 = vsel %vm117, 1, 0
    %v182 = vsel %vm118, 1, 0
    %v183 = vsel %vm119, 1, 0
    %v184 = vsel %vm120, 1, 0
    %v185 = vsel %vm121, 1, 0
    %v186 = vsel %vm122, 1, 0
    %v187 = vcvt.s32.f32 %v123
    %v188 = vcvt.s32.f32 %v124
    %v189 = vcvt.s32.f32 %v125
    %v190 = vcvt.s32.f32 %v126
    %v191 = vcvt.s32.f32 %v127
    %v192 = vcvt.s32.f32 %v128
    %v193 = vcvt.s32.f32 %v129
    %v194 = vcvt.s32.f32 %v130
    %v195 = vcvt.s32.f32 %v131
    %v196 = vcvt.s32.f32 %v132
    %v197 = vcvt.s32.f32 %v133
    %v198 = vcvt.s32.f32 %v134
    %v199 = vcvt.s32.f32 %v135
    %v200 = vcvt.s32.f32 %v136
    %v201 = vcvt.s32.f32 %v137
    %v202 = vcvt.s32.f32 %v138
    %v203 = vcvt.s32.f32 %v139
    %v204 = vcvt.s32.f32 %v140
    %v205 = vcvt.s32.f32 %v141
    %v206 = vcvt.s32.f32 %v142
    %v207 = vcvt.s32.f32 %v143
    %v208 = vcvt.s32.f32 %v144
    %v209 = vcvt.s32.f32 %v145
    %v210 = vcvt.s32.f32 %v146
    %v211 = vcvt.s32.f32 %v147
    %v212 = vcvt.s32.f32 %v148
    %v213 = vcvt.s32.f32 %v149
    %v214 = vcvt.s32.f32 %v150
    %v215 = vcvt.s32.f32 %v151
    %v216 = vcvt.s32.f32 %v152
    %v217 = vcvt.s32.f32 %v153
    %v218 = vcvt.s32.f32 %v154
    %v219 = vcvt.s32.f32 %v155
    %v220 = vcvt.s32.f32 %v156
    %v221 = vcvt.s32.f32 %v157
    %v222 = vcvt.s32.f32 %v158
    %v223 = vcvt.s32.f32 %v159
    %v224 = vcvt.s32.f32 %v160
    %v225 = vcvt.s32.f32 %v161
    %v226 = vcvt.s32.f32 %v162
    %v227 = vcvt.s32.f32 %v163
    %v228 = vcvt.s32.f32 %v164
    %v229 = vcvt.s32.f32 %v165
    %v230 = vcvt.s32.f32 %v166
    %v231 = vcvt.s32.f32 %v167
    %v232 = vcvt.s32.f32 %v168
    %v233 = vcvt.s32.f32 %v169
    %v234 = vcvt.s32.f32 %v170
    %v235 = vcvt.s32.f32 %v171
    %v236 = vcvt.s32.f32 %v172
    %v237 = vcvt.s32.f32 %v173
    %v238 = vcvt.s32.f32 %v174
    %v239 = vcvt.s32.f32 %v175
    %v240 = vcvt.s32.f32 %v176
    %v241 = vcvt.s32.f32 %v177
    %v242 = vcvt.s32.f32 %v178
    %v243 = vcvt.s32.f32 %v179
    %v244 = vcvt.s32.f32 %v180
    %v245 = vcvt.s32.f32 %v181
    %v246 = vcvt.s32.f32 %v182
    %v247 = vcvt.s32.f32 %v183
    %v248 = vcvt.s32.f32 %v184
    %v249 = vcvt.s32.f32 %v185
    %v250 = vcvt.s32.f32 %v186
    %v251 = vadd.f32 %v187, 0.0
    %v252 = vadd.f32 %v188, 0.0
    %v253 = vadd.f32 %v189, 0.0
    %v254 = vadd.f32 %v190, 0.0
    %v255 = vadd.f32 %v191, 0.0
    %v256 = vadd.f32 %v192, 0.0
    %v257 = vadd.f32 %v193, 0.0
    %v258 = vadd.f32 %v194, 0.0
    %v259 = vadd.f32 %v195, 0.0
    %v260 = vadd.f32 %v196, 0.0
    %v261 = vadd.f32 %v197, 0.0
    %v262 = vadd.f32 %v198, 0.0
    %v263 = vadd.f32 %v199, 0.0
    %v264 = vadd.f32 %v200, 0.0
    %v265 = vadd.f32 %v201, 0.0
    %v266 = vadd.f32 %v202, 0.0
    %v267 = vadd.f32 %v203, 0.0
    %v268 = vadd.f32 %v204, 0.0
    %v269 = vadd.f32 %v205, 0.0
    %v270 = vadd.f32 %v206, 0.0
    %v271 = vadd.f32 %v207, 0.0
    %v272 = vadd.f32 %v208, 0.0
    %v273 = vadd.f32 %v209, 0.0
    %v274 = vadd.f32 %v210, 0.0
    %v275 = vadd.f32 %v211, 0.0
    %v276 = vadd.f32 %v212, 0.0
    %v277 = vadd.f32 %v213, 0.0
    %v278 = vadd.f32 %v214, 0.0
    %v279 = vadd.f32 %v215, 0.0
    %v280 = vadd.f32 %v216, 0.0
    %v281 = vadd.f32 %v217, 0.0
    %v282 = vadd.f32 %v218, 0.0
    %v283 = vadd.f32 %v219, 0.0
    %v284 = vadd.f32 %v220, 0.0
    %v285 = vadd.f32 %v221, 0.0
    %v286 = vadd.f32 %v222, 0.0
    %v287 = vadd.f32 %v223, 0.0
    %v288 = vadd.f32 %v224, 0.0
    %v289 = vadd.f32 %v225, 0.0
    %v290 = vadd.f32 %v226, 0.0
    %v291 = vadd.f32 %v227, 0.0
    %v292 = vadd.f32 %v228, 0.0
    %v293 = vadd.f32 %v229, 0.0
    %v294 = vadd.f32 %v230, 0.0
    %v295 = vadd.f32 %v231, 0.0
    %v296 = vadd.f32 %v232, 0.0
    %v297 = vadd.f32 %v233, 0.0
    %v298 = vadd.f32 %v234, 0.0
    %v299 = vadd.f32 %v235, 0.0
    %v300 = vadd.f32 %v236, 0.0
    %v301 = vadd.f32 %v237, 0.0
    %v302 = vadd.f32 %v238, 0.0
    %v303 = vadd.f32 %v239, 0.0
    %v304 = vadd.f32 %v240, 0.0
    %v305 = vadd.f32 %v241, 0.0
    %v306 = vadd.f32 %v242, 0.0
    %v307 = vadd.f32 %v243, 0.0
    %v308 = vadd.f32 %v244, 0.0
    %v309 = vadd.f32 %v245, 0.0
    %v310 = vadd.f32 %v246, 0.0
    %v311 = vadd.f32 %v247, 0.0
    %v312 = vadd.f32 %v248, 0.0
    %v313 = vadd.f32 %v249, 0.0
    %v314 = vadd.f32 %v250, 0.0
    %s315 = scalar_lea.vmem %s1, 1
    %v316 = vld [vmem:[%s315] ss:$2 sm:$0xff]
    %v317 = vlaneseq
    %v318 = vshrl.u32 %v317, 7
    %v319 = vsub.s32 0, %v318
    %v320 = vrot.slane %v316, %v319
    %v321 = vlaneseq
    %v322 = vshrl.u32 %v321, 7
    %v323 = vsub.s32 1, %v322
    %v324 = vrot.slane %v316, %v323
    %v325 = vlaneseq
    %v326 = vshrl.u32 %v325, 7
    %v327 = vsub.s32 2, %v326
    %v328 = vrot.slane %v316, %v327
    %v329 = vlaneseq
    %v330 = vshrl.u32 %v329, 7
    %v331 = vsub.s32 3, %v330
    %v332 = vrot.slane %v316, %v331
    %v333 = vlaneseq
    %v334 = vshrl.u32 %v333, 7
    %v335 = vsub.s32 4, %v334
    %v336 = vrot.slane %v316, %v335
    %v337 = vlaneseq
    %v338 = vshrl.u32 %v337, 7
    %v339 = vsub.s32 5, %v338
    %v340 = vrot.slane %v316, %v339
    %v341 = vlaneseq
    %v342 = vshrl.u32 %v341, 7
    %v343 = vsub.s32 6, %v342
    %v344 = vrot.slane %v316, %v343
    %v345 = vlaneseq
    %v346 = vshrl.u32 %v345, 7
    %v347 = vsub.s32 7, %v346
    %v348 = vrot.slane %v316, %v347
    %vm349 = vcmp.eq.s32.totalorder %v18, %v320
    %vm350 = vcmp.eq.s32.totalorder %v18, %v324
    %vm351 = vcmp.eq.s32.totalorder %v18, %v328
    %vm352 = vcmp.eq.s32.totalorder %v18, %v332
    %vm353 = vcmp.eq.s32.totalorder %v18, %v336
    %vm354 = vcmp.eq.s32.totalorder %v18, %v340
    %vm355 = vcmp.eq.s32.totalorder %v18, %v344
    %vm356 = vcmp.eq.s32.totalorder %v18, %v348
    %vm357 = vcmp.eq.s32.totalorder %v19, %v320
    %vm358 = vcmp.eq.s32.totalorder %v19, %v324
    %vm359 = vcmp.eq.s32.totalorder %v19, %v328
    %vm360 = vcmp.eq.s32.totalorder %v19, %v332
    %vm361 = vcmp.eq.s32.totalorder %v19, %v336
    %vm362 = vcmp.eq.s32.totalorder %v19, %v340
    %vm363 = vcmp.eq.s32.totalorder %v19, %v344
    %vm364 = vcmp.eq.s32.totalorder %v19, %v348
    %vm365 = vcmp.eq.s32.totalorder %v20, %v320
    %vm366 = vcmp.eq.s32.totalorder %v20, %v324
    %vm367 = vcmp.eq.s32.totalorder %v20, %v328
    %vm368 = vcmp.eq.s32.totalorder %v20, %v332
    %vm369 = vcmp.eq.s32.totalorder %v20, %v336
    %vm370 = vcmp.eq.s32.totalorder %v20, %v340
    %vm371 = vcmp.eq.s32.totalorder %v20, %v344
    %vm372 = vcmp.eq.s32.totalorder %v20, %v348
    %vm373 = vcmp.eq.s32.totalorder %v21, %v320
    %vm374 = vcmp.eq.s32.totalorder %v21, %v324
    %vm375 = vcmp.eq.s32.totalorder %v21, %v328
    %vm376 = vcmp.eq.s32.totalorder %v21, %v332
    %vm377 = vcmp.eq.s32.totalorder %v21, %v336
    %vm378 = vcmp.eq.s32.totalorder %v21, %v340
    %vm379 = vcmp.eq.s32.totalorder %v21, %v344
    %vm380 = vcmp.eq.s32.totalorder %v21, %v348
    %vm381 = vcmp.eq.s32.totalorder %v22, %v320
    %vm382 = vcmp.eq.s32.totalorder %v22, %v324
    %vm383 = vcmp.eq.s32.totalorder %v22, %v328
    %vm384 = vcmp.eq.s32.totalorder %v22, %v332
    %vm385 = vcmp.eq.s32.totalorder %v22, %v336
    %vm386 = vcmp.eq.s32.totalorder %v22, %v340
    %vm387 = vcmp.eq.s32.totalorder %v22, %v344
    %vm388 = vcmp.eq.s32.totalorder %v22, %v348
    %vm389 = vcmp.eq.s32.totalorder %v23, %v320
    %vm390 = vcmp.eq.s32.totalorder %v23, %v324
    %vm391 = vcmp.eq.s32.totalorder %v23, %v328
    %vm392 = vcmp.eq.s32.totalorder %v23, %v332
    %vm393 = vcmp.eq.s32.totalorder %v23, %v336
    %vm394 = vcmp.eq.s32.totalorder %v23, %v340
    %vm395 = vcmp.eq.s32.totalorder %v23, %v344
    %vm396 = vcmp.eq.s32.totalorder %v23, %v348
    %vm397 = vcmp.eq.s32.totalorder %v24, %v320
    %vm398 = vcmp.eq.s32.totalorder %v24, %v324
    %vm399 = vcmp.eq.s32.totalorder %v24, %v328
    %vm400 = vcmp.eq.s32.totalorder %v24, %v332
    %vm401 = vcmp.eq.s32.totalorder %v24, %v336
    %vm402 = vcmp.eq.s32.totalorder %v24, %v340
    %vm403 = vcmp.eq.s32.totalorder %v24, %v344
    %vm404 = vcmp.eq.s32.totalorder %v24, %v348
    %vm405 = vcmp.eq.s32.totalorder %v25, %v320
    %vm406 = vcmp.eq.s32.totalorder %v25, %v324
    %vm407 = vcmp.eq.s32.totalorder %v25, %v328
    %vm408 = vcmp.eq.s32.totalorder %v25, %v332
    %vm409 = vcmp.eq.s32.totalorder %v25, %v336
    %vm410 = vcmp.eq.s32.totalorder %v25, %v340
    %vm411 = vcmp.eq.s32.totalorder %v25, %v344
    %vm412 = vcmp.eq.s32.totalorder %v25, %v348
    %v413 = vsel %vm349, 1, 0
    %v414 = vsel %vm350, 1, 0
    %v415 = vsel %vm351, 1, 0
    %v416 = vsel %vm352, 1, 0
    %v417 = vsel %vm353, 1, 0
    %v418 = vsel %vm354, 1, 0
    %v419 = vsel %vm355, 1, 0
    %v420 = vsel %vm356, 1, 0
    %v421 = vsel %vm357, 1, 0
    %v422 = vsel %vm358, 1, 0
    %v423 = vsel %vm359, 1, 0
    %v424 = vsel %vm360, 1, 0
    %v425 = vsel %vm361, 1, 0
    %v426 = vsel %vm362, 1, 0
    %v427 = vsel %vm363, 1, 0
    %v428 = vsel %vm364, 1, 0
    %v429 = vsel %vm365, 1, 0
    %v430 = vsel %vm366, 1, 0
    %v431 = vsel %vm367, 1, 0
    %v432 = vsel %vm368, 1, 0
    %v433 = vsel %vm369, 1, 0
    %v434 = vsel %vm370, 1, 0
    %v435 = vsel %vm371, 1, 0
    %v436 = vsel %vm372, 1, 0
    %v437 = vsel %vm373, 1, 0
    %v438 = vsel %vm374, 1, 0
    %v439 = vsel %vm375, 1, 0
    %v440 = vsel %vm376, 1, 0
    %v441 = vsel %vm377, 1, 0
    %v442 = vsel %vm378, 1, 0
    %v443 = vsel %vm379, 1, 0
    %v444 = vsel %vm380, 1, 0
    %v445 = vsel %vm381, 1, 0
    %v446 = vsel %vm382, 1, 0
    %v447 = vsel %vm383, 1, 0
    %v448 = vsel %vm384, 1, 0
    %v449 = vsel %vm385, 1, 0
    %v450 = vsel %vm386, 1, 0
    %v451 = vsel %vm387, 1, 0
    %v452 = vsel %vm388, 1, 0
    %v453 = vsel %vm389, 1, 0
    %v454 = vsel %vm390, 1, 0
    %v455 = vsel %vm391, 1, 0
    %v456 = vsel %vm392, 1, 0
    %v457 = vsel %vm393, 1, 0
    %v458 = vsel %vm394, 1, 0
    %v459 = vsel %vm395, 1, 0
    %v460 = vsel %vm396, 1, 0
    %v461 = vsel %vm397, 1, 0
    %v462 = vsel %vm398, 1, 0
    %v463 = vsel %vm399, 1, 0
    %v464 = vsel %vm400, 1, 0
    %v465 = vsel %vm401, 1, 0
    %v466 = vsel %vm402, 1, 0
    %v467 = vsel %vm403, 1, 0
    %v468 = vsel %vm404, 1, 0
    %v469 = vsel %vm405, 1, 0
    %v470 = vsel %vm406, 1, 0
    %v471 = vsel %vm407, 1, 0
    %v472 = vsel %vm408, 1, 0
    %v473 = vsel %vm409, 1, 0
    %v474 = vsel %vm410, 1, 0
    %v475 = vsel %vm411, 1, 0
    %v476 = vsel %vm412, 1, 0
    %v477 = vcvt.s32.f32 %v413
    %v478 = vcvt.s32.f32 %v414
    %v479 = vcvt.s32.f32 %v415
    %v480 = vcvt.s32.f32 %v416
    %v481 = vcvt.s32.f32 %v417
    %v482 = vcvt.s32.f32 %v418
    %v483 = vcvt.s32.f32 %v419
    %v484 = vcvt.s32.f32 %v420
    %v485 = vcvt.s32.f32 %v421
    %v486 = vcvt.s32.f32 %v422
    %v487 = vcvt.s32.f32 %v423
    %v488 = vcvt.s32.f32 %v424
    %v489 = vcvt.s32.f32 %v425
    %v490 = vcvt.s32.f32 %v426
    %v491 = vcvt.s32.f32 %v427
    %v492 = vcvt.s32.f32 %v428
    %v493 = vcvt.s32.f32 %v429
    %v494 = vcvt.s32.f32 %v430
    %v495 = vcvt.s32.f32 %v431
    %v496 = vcvt.s32.f32 %v432
    %v497 = vcvt.s32.f32 %v433
    %v498 = vcvt.s32.f32 %v434
    %v499 = vcvt.s32.f32 %v435
    %v500 = vcvt.s32.f32 %v436
    %v501 = vcvt.s32.f32 %v437
    %v502 = vcvt.s32.f32 %v438
    %v503 = vcvt.s32.f32 %v439
    %v504 = vcvt.s32.f32 %v440
    %v505 = vcvt.s32.f32 %v441
    %v506 = vcvt.s32.f32 %v442
    %v507 = vcvt.s32.f32 %v443
    %v508 = vcvt.s32.f32 %v444
    %v509 = vcvt.s32.f32 %v445
    %v510 = vcvt.s32.f32 %v446
    %v511 = vcvt.s32.f32 %v447
    %v512 = vcvt.s32.f32 %v448
    %v513 = vcvt.s32.f32 %v449
    %v514 = vcvt.s32.f32 %v450
    %v515 = vcvt.s32.f32 %v451
    %v516 = vcvt.s32.f32 %v452
    %v517 = vcvt.s32.f32 %v453
    %v518 = vcvt.s32.f32 %v454
    %v519 = vcvt.s32.f32 %v455
    %v520 = vcvt.s32.f32 %v456
    %v521 = vcvt.s32.f32 %v457
    %v522 = vcvt.s32.f32 %v458
    %v523 = vcvt.s32.f32 %v459
    %v524 = vcvt.s32.f32 %v460
    %v525 = vcvt.s32.f32 %v461
    %v526 = vcvt.s32.f32 %v462
    %v527 = vcvt.s32.f32 %v463
    %v528 = vcvt.s32.f32 %v464
    %v529 = vcvt.s32.f32 %v465
    %v530 = vcvt.s32.f32 %v466
    %v531 = vcvt.s32.f32 %v467
    %v532 = vcvt.s32.f32 %v468
    %v533 = vcvt.s32.f32 %v469
    %v534 = vcvt.s32.f32 %v470
    %v535 = vcvt.s32.f32 %v471
    %v536 = vcvt.s32.f32 %v472
    %v537 = vcvt.s32.f32 %v473
    %v538 = vcvt.s32.f32 %v474
    %v539 = vcvt.s32.f32 %v475
    %v540 = vcvt.s32.f32 %v476
    %v541 = vadd.f32 %v251, %v477
    %v542 = vadd.f32 %v252, %v478
    %v543 = vadd.f32 %v253, %v479
    %v544 = vadd.f32 %v254, %v480
    %v545 = vadd.f32 %v255, %v481
    %v546 = vadd.f32 %v256, %v482
    %v547 = vadd.f32 %v257, %v483
    %v548 = vadd.f32 %v258, %v484
    %v549 = vadd.f32 %v259, %v485
    %v550 = vadd.f32 %v260, %v486
    %v551 = vadd.f32 %v261, %v487
    %v552 = vadd.f32 %v262, %v488
    %v553 = vadd.f32 %v263, %v489
    %v554 = vadd.f32 %v264, %v490
    %v555 = vadd.f32 %v265, %v491
    %v556 = vadd.f32 %v266, %v492
    %v557 = vadd.f32 %v267, %v493
    %v558 = vadd.f32 %v268, %v494
    %v559 = vadd.f32 %v269, %v495
    %v560 = vadd.f32 %v270, %v496
    %v561 = vadd.f32 %v271, %v497
    %v562 = vadd.f32 %v272, %v498
    %v563 = vadd.f32 %v273, %v499
    %v564 = vadd.f32 %v274, %v500
    %v565 = vadd.f32 %v275, %v501
    %v566 = vadd.f32 %v276, %v502
    %v567 = vadd.f32 %v277, %v503
    %v568 = vadd.f32 %v278, %v504
    %v569 = vadd.f32 %v279, %v505
    %v570 = vadd.f32 %v280, %v506
    %v571 = vadd.f32 %v281, %v507
    %v572 = vadd.f32 %v282, %v508
    %v573 = vadd.f32 %v283, %v509
    %v574 = vadd.f32 %v284, %v510
    %v575 = vadd.f32 %v285, %v511
    %v576 = vadd.f32 %v286, %v512
    %v577 = vadd.f32 %v287, %v513
    %v578 = vadd.f32 %v288, %v514
    %v579 = vadd.f32 %v289, %v515
    %v580 = vadd.f32 %v290, %v516
    %v581 = vadd.f32 %v291, %v517
    %v582 = vadd.f32 %v292, %v518
    %v583 = vadd.f32 %v293, %v519
    %v584 = vadd.f32 %v294, %v520
    %v585 = vadd.f32 %v295, %v521
    %v586 = vadd.f32 %v296, %v522
    %v587 = vadd.f32 %v297, %v523
    %v588 = vadd.f32 %v298, %v524
    %v589 = vadd.f32 %v299, %v525
    %v590 = vadd.f32 %v300, %v526
    %v591 = vadd.f32 %v301, %v527
    %v592 = vadd.f32 %v302, %v528
    %v593 = vadd.f32 %v303, %v529
    %v594 = vadd.f32 %v304, %v530
    %v595 = vadd.f32 %v305, %v531
    %v596 = vadd.f32 %v306, %v532
    %v597 = vadd.f32 %v307, %v533
    %v598 = vadd.f32 %v308, %v534
    %v599 = vadd.f32 %v309, %v535
    %v600 = vadd.f32 %v310, %v536
    %v601 = vadd.f32 %v311, %v537
    %v602 = vadd.f32 %v312, %v538
    %v603 = vadd.f32 %v313, %v539
    %v604 = vadd.f32 %v314, %v540
    %v605 = vpack.c.bf16 %v549, %v541
    %v606 = vpack.c.bf16 %v550, %v542
    %v607 = vpack.c.bf16 %v551, %v543
    %v608 = vpack.c.bf16 %v552, %v544
    %v609 = vpack.c.bf16 %v553, %v545
    %v610 = vpack.c.bf16 %v554, %v546
    %v611 = vpack.c.bf16 %v555, %v547
    %v612 = vpack.c.bf16 %v556, %v548
    %v613 = vpack.c.bf16 %v565, %v557
    %v614 = vpack.c.bf16 %v566, %v558
    %v615 = vpack.c.bf16 %v567, %v559
    %v616 = vpack.c.bf16 %v568, %v560
    %v617 = vpack.c.bf16 %v569, %v561
    %v618 = vpack.c.bf16 %v570, %v562
    %v619 = vpack.c.bf16 %v571, %v563
    %v620 = vpack.c.bf16 %v572, %v564
    %v621 = vpack.c.bf16 %v581, %v573
    %v622 = vpack.c.bf16 %v582, %v574
    %v623 = vpack.c.bf16 %v583, %v575
    %v624 = vpack.c.bf16 %v584, %v576
    %v625 = vpack.c.bf16 %v585, %v577
    %v626 = vpack.c.bf16 %v586, %v578
    %v627 = vpack.c.bf16 %v587, %v579
    %v628 = vpack.c.bf16 %v588, %v580
    %v629 = vpack.c.bf16 %v597, %v589
    %v630 = vpack.c.bf16 %v598, %v590
    %v631 = vpack.c.bf16 %v599, %v591
    %v632 = vpack.c.bf16 %v600, %v592
    %v633 = vpack.c.bf16 %v601, %v593
    %v634 = vpack.c.bf16 %v602, %v594
    %v635 = vpack.c.bf16 %v603, %v595
    %v636 = vpack.c.bf16 %v604, %v596
    %v637 = vld [vmem:[%s2] sm:$0xf]
    %v638 = vld [vmem:[%s2 + $0x4] sm:$0xf]
    %v639 = vld [vmem:[%s2 + $0x8] sm:$0xf]
    %v640 = vld [vmem:[%s2 + $0xc] sm:$0xf]
    %v641 = vld [vmem:[%s2 + $0x10] sm:$0xf]
    %v642 = vld [vmem:[%s2 + $0x14] sm:$0xf]
    %v643 = vld [vmem:[%s2 + $0x18] sm:$0xf]
    %v644 = vld [vmem:[%s2 + $0x1c] sm:$0xf]
    %v645 = vld [vmem:[%s2 + $0x20] sm:$0x1]
    %s646 = scalar_lea.vmem %s2, 36
    %v647 = vld [vmem:[%s646] sm:$0xf]
    %v648 = vld [vmem:[%s646 + $0x4] sm:$0xf]
    %v649 = vld [vmem:[%s646 + $0x8] sm:$0xf]
    %v650 = vld [vmem:[%s646 + $0xc] sm:$0xf]
    %v651 = vld [vmem:[%s646 + $0x10] sm:$0xf]
    %v652 = vld [vmem:[%s646 + $0x14] sm:$0xf]
    %v653 = vld [vmem:[%s646 + $0x18] sm:$0xf]
    %v654 = vld [vmem:[%s646 + $0x1c] sm:$0xf]
    %v655 = vld [vmem:[%s646 + $0x20] sm:$0x1]
    %v665 = vunpack.c.l.b16 %v647
    %v666 = vunpack.c.l.b16 %v648
    %v667 = vunpack.c.l.b16 %v649
    %v668 = vunpack.c.l.b16 %v650
    %v669 = vunpack.c.l.b16 %v651
    %v670 = vunpack.c.l.b16 %v652
    %v671 = vunpack.c.l.b16 %v653
    %v672 = vunpack.c.l.b16 %v654
    %v673 = vunpack.c.l.b16 %v655
    %v674 = vpack.c.b16 %v666, %v665
    %v675 = vpack.c.b16 %v668, %v667
    %v676 = vpack.c.b16 %v670, %v669
    %v677 = vpack.c.b16 %v672, %v671
    %v678 = vpack.c.b16 %v673, %v673
    %vm679 = vcmask 523264
    %v681 = vsel %vm679, %v674, 0
    %v684 = vsel %vm679, %v675, 0
    %v687 = vsel %vm679, %v676, 0
    %v690 = vsel %vm679, %v677, 0
    %v693 = vsel %vm679, %v678, 0
    %695 = vmatprep.subr.bf16.mxu0 0
    %696 = vmatpush1.bf16.msra.mxu0 0
    %697 = vmatprep.subr.bf16.mxu0 0
    %698 = vmatpush1.bf16.msra.mxu0 0
    %699 = vmatprep.subr.bf16.mxu0 0
    %700 = vmatpush1.bf16.msra.mxu0 0
    %701 = vmatprep.subr.bf16.mxu0 0
    %702 = vmatpush1.bf16.msra.mxu0 0
    %703 = vmatprep.subr.bf16.mxu0 %v630
    %704 = vmatpush1.bf16.msra.mxu0 %v629
    %705 = vmatprep.subr.bf16.mxu0 %v622
    %706 = vmatpush1.bf16.msra.mxu0 %v621
    %707 = vmatprep.subr.bf16.mxu0 %v614
    %708 = vmatpush1.bf16.msra.mxu0 %v613
    %709 = vmatprep.subr.bf16.mxu0 %v606
    %710 = vmatpush1.bf16.msra.mxu0 %v605
    %711 = vmatprep.subr.bf16.mxu0 0
    %712 = vmatpush2.bf16.msra.mxu0 0
    %713 = vmatprep.subr.bf16.mxu0 0
    %714 = vmatpush2.bf16.msra.mxu0 0
    %715 = vmatprep.subr.bf16.mxu0 0
    %716 = vmatpush2.bf16.msra.mxu0 0
    %717 = vmatprep.subr.bf16.mxu0 0
    %718 = vmatpush2.bf16.msra.mxu0 0
    %719 = vmatprep.subr.bf16.mxu0 0
    %720 = vmatpush2.bf16.msra.mxu0 0
    %721 = vmatprep.subr.bf16.mxu0 0
    %722 = vmatpush2.bf16.msra.mxu0 0
    %723 = vmatprep.subr.bf16.mxu0 0
    %724 = vmatpush2.bf16.msra.mxu0 0
    %725 = vmatprep.subr.bf16.mxu0 0
    %726 = vmatpush2.bf16.msra.mxu0 0
    %727 = vmatprep.mubr.bf16.mxu0 0
    %728 = vmatmul.mubr.bf16.gmra.mxu0 %v681
    %v729 = vpop.f32.mrf.mxu0
    %v730 = vadd.f32 0.0, %v729
    %v731 = vpop.f32.mrf.mxu0
    %v732 = vadd.f32 0.0, %v731
    %v733 = vpop.f32.mrf.mxu0
    %v734 = vadd.f32 0.0, %v733
    %v735 = vpop.f32.mrf.mxu0
    %v736 = vadd.f32 0.0, %v735
    %737 = vmatprep.mubr.bf16.mxu0 0
    %738 = vmatmul.mubr.bf16.gmra.mxu0 %v684
    %v739 = vpop.f32.mrf.mxu0
    %v740 = vadd.f32 0.0, %v739
    %v741 = vpop.f32.mrf.mxu0
    %v742 = vadd.f32 0.0, %v741
    %v743 = vpop.f32.mrf.mxu0
    %v744 = vadd.f32 0.0, %v743
    %v745 = vpop.f32.mrf.mxu0
    %v746 = vadd.f32 0.0, %v745
    %747 = vmatprep.mubr.bf16.mxu0 0
    %748 = vmatmul.mubr.bf16.gmra.mxu0 %v687
    %v749 = vpop.f32.mrf.mxu0
    %v750 = vadd.f32 0.0, %v749
    %v751 = vpop.f32.mrf.mxu0
    %v752 = vadd.f32 0.0, %v751
    %v753 = vpop.f32.mrf.mxu0
    %v754 = vadd.f32 0.0, %v753
    %v755 = vpop.f32.mrf.mxu0
    %v756 = vadd.f32 0.0, %v755
    %757 = vmatprep.mubr.bf16.mxu0 0
    %758 = vmatmul.mubr.bf16.gmra.mxu0 %v690
    %v759 = vpop.f32.mrf.mxu0
    %v760 = vadd.f32 0.0, %v759
    %v761 = vpop.f32.mrf.mxu0
    %v762 = vadd.f32 0.0, %v761
    %v763 = vpop.f32.mrf.mxu0
    %v764 = vadd.f32 0.0, %v763
    %v765 = vpop.f32.mrf.mxu0
    %v766 = vadd.f32 0.0, %v765
    %767 = vmatprep.mubr.bf16.mxu0 0
    %768 = vmatmul.mubr.bf16.gmra.mxu0 %v693
    %v769 = vpop.f32.mrf.mxu0
    %v770 = vadd.f32 0.0, %v769
    %v771 = vpop.f32.mrf.mxu0
    %v772 = vadd.f32 0.0, %v771
    %v773 = vpop.f32.mrf.mxu0
    %v774 = vpop.f32.mrf.mxu0
    %775 = vdwg.mxu0
    %776 = vmatprep.subr.bf16.mxu0 0
    %777 = vmatpush1.bf16.msra.mxu0 0
    %778 = vmatprep.subr.bf16.mxu0 0
    %779 = vmatpush1.bf16.msra.mxu0 0
    %780 = vmatprep.subr.bf16.mxu0 0
    %781 = vmatpush1.bf16.msra.mxu0 0
    %782 = vmatprep.subr.bf16.mxu0 0
    %783 = vmatpush1.bf16.msra.mxu0 0
    %784 = vmatprep.subr.bf16.mxu0 %v632
    %785 = vmatpush1.bf16.msra.mxu0 %v631
    %786 = vmatprep.subr.bf16.mxu0 %v624
    %787 = vmatpush1.bf16.msra.mxu0 %v623
    %788 = vmatprep.subr.bf16.mxu0 %v616
    %789 = vmatpush1.bf16.msra.mxu0 %v615
    %790 = vmatprep.subr.bf16.mxu0 %v608
    %791 = vmatpush1.bf16.msra.mxu0 %v607
    %792 = vmatprep.subr.bf16.mxu0 0
    %793 = vmatpush2.bf16.msra.mxu0 0
    %794 = vmatprep.subr.bf16.mxu0 0
    %795 = vmatpush2.bf16.msra.mxu0 0
    %796 = vmatprep.subr.bf16.mxu0 0
    %797 = vmatpush2.bf16.msra.mxu0 0
    %798 = vmatprep.subr.bf16.mxu0 0
    %799 = vmatpush2.bf16.msra.mxu0 0
    %800 = vmatprep.subr.bf16.mxu0 0
    %801 = vmatpush2.bf16.msra.mxu0 0
    %802 = vmatprep.subr.bf16.mxu0 0
    %803 = vmatpush2.bf16.msra.mxu0 0
    %804 = vmatprep.subr.bf16.mxu0 0
    %805 = vmatpush2.bf16.msra.mxu0 0
    %806 = vmatprep.subr.bf16.mxu0 0
    %807 = vmatpush2.bf16.msra.mxu0 0
    %808 = vmatprep.mubr.bf16.mxu0 0
    %809 = vmatmul.mubr.bf16.gmra.mxu0 %v681
    %v810 = vpop.f32.mrf.mxu0
    %v811 = vadd.f32 0.0, %v810
    %v812 = vpop.f32.mrf.mxu0
    %v813 = vadd.f32 0.0, %v812
    %v814 = vpop.f32.mrf.mxu0
    %v815 = vadd.f32 0.0, %v814
    %v816 = vpop.f32.mrf.mxu0
    %v817 = vadd.f32 0.0, %v816
    %818 = vmatprep.mubr.bf16.mxu0 0
    %819 = vmatmul.mubr.bf16.gmra.mxu0 %v684
    %v820 = vpop.f32.mrf.mxu0
    %v821 = vadd.f32 0.0, %v820
    %v822 = vpop.f32.mrf.mxu0
    %v823 = vadd.f32 0.0, %v822
    %v824 = vpop.f32.mrf.mxu0
    %v825 = vadd.f32 0.0, %v824
    %v826 = vpop.f32.mrf.mxu0
    %v827 = vadd.f32 0.0, %v826
    %828 = vmatprep.mubr.bf16.mxu0 0
    %829 = vmatmul.mubr.bf16.gmra.mxu0 %v687
    %v830 = vpop.f32.mrf.mxu0
    %v831 = vadd.f32 0.0, %v830
    %v832 = vpop.f32.mrf.mxu0
    %v833 = vadd.f32 0.0, %v832
    %v834 = vpop.f32.mrf.mxu0
    %v835 = vadd.f32 0.0, %v834
    %v836 = vpop.f32.mrf.mxu0
    %v837 = vadd.f32 0.0, %v836
    %838 = vmatprep.mubr.bf16.mxu0 0
    %839 = vmatmul.mubr.bf16.gmra.mxu0 %v690
    %v840 = vpop.f32.mrf.mxu0
    %v841 = vadd.f32 0.0, %v840
    %v842 = vpop.f32.mrf.mxu0
    %v843 = vadd.f32 0.0, %v842
    %v844 = vpop.f32.mrf.mxu0
    %v845 = vadd.f32 0.0, %v844
    %v846 = vpop.f32.mrf.mxu0
    %v847 = vadd.f32 0.0, %v846
    %848 = vmatprep.mubr.bf16.mxu0 0
    %849 = vmatmul.mubr.bf16.gmra.mxu0 %v693
    %v850 = vpop.f32.mrf.mxu0
    %v851 = vadd.f32 0.0, %v850
    %v852 = vpop.f32.mrf.mxu0
    %v853 = vadd.f32 0.0, %v852
    %v854 = vpop.f32.mrf.mxu0
    %v855 = vpop.f32.mrf.mxu0
    %856 = vdwg.mxu0
    %857 = vmatprep.subr.bf16.mxu0 0
    %858 = vmatpush1.bf16.msra.mxu0 0
    %859 = vmatprep.subr.bf16.mxu0 0
    %860 = vmatpush1.bf16.msra.mxu0 0
    %861 = vmatprep.subr.bf16.mxu0 0
    %862 = vmatpush1.bf16.msra.mxu0 0
    %863 = vmatprep.subr.bf16.mxu0 0
    %864 = vmatpush1.bf16.msra.mxu0 0
    %865 = vmatprep.subr.bf16.mxu0 %v634
    %866 = vmatpush1.bf16.msra.mxu0 %v633
    %867 = vmatprep.subr.bf16.mxu0 %v626
    %868 = vmatpush1.bf16.msra.mxu0 %v625
    %869 = vmatprep.subr.bf16.mxu0 %v618
    %870 = vmatpush1.bf16.msra.mxu0 %v617
    %871 = vmatprep.subr.bf16.mxu0 %v610
    %872 = vmatpush1.bf16.msra.mxu0 %v609
    %873 = vmatprep.subr.bf16.mxu0 0
    %874 = vmatpush2.bf16.msra.mxu0 0
    %875 = vmatprep.subr.bf16.mxu0 0
    %876 = vmatpush2.bf16.msra.mxu0 0
    %877 = vmatprep.subr.bf16.mxu0 0
    %878 = vmatpush2.bf16.msra.mxu0 0
    %879 = vmatprep.subr.bf16.mxu0 0
    %880 = vmatpush2.bf16.msra.mxu0 0
    %881 = vmatprep.subr.bf16.mxu0 0
    %882 = vmatpush2.bf16.msra.mxu0 0
    %883 = vmatprep.subr.bf16.mxu0 0
    %884 = vmatpush2.bf16.msra.mxu0 0
    %885 = vmatprep.subr.bf16.mxu0 0
    %886 = vmatpush2.bf16.msra.mxu0 0
    %887 = vmatprep.subr.bf16.mxu0 0
    %888 = vmatpush2.bf16.msra.mxu0 0
    %889 = vmatprep.mubr.bf16.mxu0 0
    %890 = vmatmul.mubr.bf16.gmra.mxu0 %v681
    %v891 = vpop.f32.mrf.mxu0
    %v892 = vadd.f32 0.0, %v891
    %v893 = vpop.f32.mrf.mxu0
    %v894 = vadd.f32 0.0, %v893
    %v895 = vpop.f32.mrf.mxu0
    %v896 = vadd.f32 0.0, %v895
    %v897 = vpop.f32.mrf.mxu0
    %v898 = vadd.f32 0.0, %v897
    %899 = vmatprep.mubr.bf16.mxu0 0
    %900 = vmatmul.mubr.bf16.gmra.mxu0 %v684
    %v901 = vpop.f32.mrf.mxu0
    %v902 = vadd.f32 0.0, %v901
    %v903 = vpop.f32.mrf.mxu0
    %v904 = vadd.f32 0.0, %v903
    %v905 = vpop.f32.mrf.mxu0
    %v906 = vadd.f32 0.0, %v905
    %v907 = vpop.f32.mrf.mxu0
    %v908 = vadd.f32 0.0, %v907
    %909 = vmatprep.mubr.bf16.mxu0 0
    %910 = vmatmul.mubr.bf16.gmra.mxu0 %v687
    %v911 = vpop.f32.mrf.mxu0
    %v912 = vadd.f32 0.0, %v911
    %v913 = vpop.f32.mrf.mxu0
    %v914 = vadd.f32 0.0, %v913
    %v915 = vpop.f32.mrf.mxu0
    %v916 = vadd.f32 0.0, %v915
    %v917 = vpop.f32.mrf.mxu0
    %v918 = vadd.f32 0.0, %v917
    %919 = vmatprep.mubr.bf16.mxu0 0
    %920 = vmatmul.mubr.bf16.gmra.mxu0 %v690
    %v921 = vpop.f32.mrf.mxu0
    %v922 = vadd.f32 0.0, %v921
    %v923 = vpop.f32.mrf.mxu0
    %v924 = vadd.f32 0.0, %v923
    %v925 = vpop.f32.mrf.mxu0
    %v926 = vadd.f32 0.0, %v925
    %v927 = vpop.f32.mrf.mxu0
    %v928 = vadd.f32 0.0, %v927
    %929 = vmatprep.mubr.bf16.mxu0 0
    %930 = vmatmul.mubr.bf16.gmra.mxu0 %v693
    %v931 = vpop.f32.mrf.mxu0
    %v932 = vadd.f32 0.0, %v931
    %v933 = vpop.f32.mrf.mxu0
    %v934 = vadd.f32 0.0, %v933
    %v935 = vpop.f32.mrf.mxu0
    %v936 = vpop.f32.mrf.mxu0
    %937 = vdwg.mxu0
    %938 = vmatprep.subr.bf16.mxu0 0
    %939 = vmatpush1.bf16.msra.mxu0 0
    %940 = vmatprep.subr.bf16.mxu0 0
    %941 = vmatpush1.bf16.msra.mxu0 0
    %942 = vmatprep.subr.bf16.mxu0 0
    %943 = vmatpush1.bf16.msra.mxu0 0
    %944 = vmatprep.subr.bf16.mxu0 0
    %945 = vmatpush1.bf16.msra.mxu0 0
    %946 = vmatprep.subr.bf16.mxu0 %v636
    %947 = vmatpush1.bf16.msra.mxu0 %v635
    %948 = vmatprep.subr.bf16.mxu0 %v628
    %949 = vmatpush1.bf16.msra.mxu0 %v627
    %950 = vmatprep.subr.bf16.mxu0 %v620
    %951 = vmatpush1.bf16.msra.mxu0 %v619
    %952 = vmatprep.subr.bf16.mxu0 %v612
    %953 = vmatpush1.bf16.msra.mxu0 %v611
    %954 = vmatprep.subr.bf16.mxu0 0
    %955 = vmatpush2.bf16.msra.mxu0 0
    %956 = vmatprep.subr.bf16.mxu0 0
    %957 = vmatpush2.bf16.msra.mxu0 0
    %958 = vmatprep.subr.bf16.mxu0 0
    %959 = vmatpush2.bf16.msra.mxu0 0
    %960 = vmatprep.subr.bf16.mxu0 0
    %961 = vmatpush2.bf16.msra.mxu0 0
    %962 = vmatprep.subr.bf16.mxu0 0
    %963 = vmatpush2.bf16.msra.mxu0 0
    %964 = vmatprep.subr.bf16.mxu0 0
    %965 = vmatpush2.bf16.msra.mxu0 0
    %966 = vmatprep.subr.bf16.mxu0 0
    %967 = vmatpush2.bf16.msra.mxu0 0
    %968 = vmatprep.subr.bf16.mxu0 0
    %969 = vmatpush2.bf16.msra.mxu0 0
    %970 = vmatprep.mubr.bf16.mxu0 0
    %971 = vmatmul.mubr.bf16.gmra.mxu0 %v681
    %v972 = vpop.f32.mrf.mxu0
    %v973 = vadd.f32 0.0, %v972
    %v974 = vpop.f32.mrf.mxu0
    %v975 = vadd.f32 0.0, %v974
    %v976 = vpop.f32.mrf.mxu0
    %v977 = vadd.f32 0.0, %v976
    %v978 = vpop.f32.mrf.mxu0
    %v979 = vadd.f32 0.0, %v978
    %980 = vmatprep.mubr.bf16.mxu0 0
    %981 = vmatmul.mubr.bf16.gmra.mxu0 %v684
    %v982 = vpop.f32.mrf.mxu0
    %v983 = vadd.f32 0.0, %v982
    %v984 = vpop.f32.mrf.mxu0
    %v985 = vadd.f32 0.0, %v984
    %v986 = vpop.f32.mrf.mxu0
    %v987 = vadd.f32 0.0, %v986
    %v988 = vpop.f32.mrf.mxu0
    %v989 = vadd.f32 0.0, %v988
    %990 = vmatprep.mubr.bf16.mxu0 0
    %991 = vmatmul.mubr.bf16.gmra.mxu0 %v687
    %v992 = vpop.f32.mrf.mxu0
    %v993 = vadd.f32 0.0, %v992
    %v994 = vpop.f32.mrf.mxu0
    %v995 = vadd.f32 0.0, %v994
    %v996 = vpop.f32.mrf.mxu0
    %v997 = vadd.f32 0.0, %v996
    %v998 = vpop.f32.mrf.mxu0
    %v999 = vadd.f32 0.0, %v998
    %1000 = vmatprep.mubr.bf16.mxu0 0
    %1001 = vmatmul.mubr.bf16.gmra.mxu0 %v690
    %v1002 = vpop.f32.mrf.mxu0
    %v1003 = vadd.f32 0.0, %v1002
    %v1004 = vpop.f32.mrf.mxu0
    %v1005 = vadd.f32 0.0, %v1004
    %v1006 = vpop.f32.mrf.mxu0
    %v1007 = vadd.f32 0.0, %v1006
    %v1008 = vpop.f32.mrf.mxu0
    %v1009 = vadd.f32 0.0, %v1008
    %1010 = vmatprep.mubr.bf16.mxu0 0
    %1011 = vmatmul.mubr.bf16.gmra.mxu0 %v693
    %v1012 = vpop.f32.mrf.mxu0
    %v1013 = vadd.f32 0.0, %v1012
    %v1014 = vpop.f32.mrf.mxu0
    %v1015 = vadd.f32 0.0, %v1014
    %v1016 = vpop.f32.mrf.mxu0
    %v1017 = vpop.f32.mrf.mxu0
    %1018 = vdwg.mxu0
    %v1028 = vunpack.c.l.b16 %v637
    %v1029 = vunpack.c.l.b16 %v638
    %v1030 = vunpack.c.l.b16 %v639
    %v1031 = vunpack.c.l.b16 %v640
    %v1032 = vunpack.c.l.b16 %v641
    %v1033 = vunpack.c.l.b16 %v642
    %v1034 = vunpack.c.l.b16 %v643
    %v1035 = vunpack.c.l.b16 %v644
    %v1036 = vunpack.c.l.b16 %v645
    %v1037 = vpack.c.b16 %v1029, %v1028
    %v1038 = vpack.c.b16 %v1031, %v1030
    %v1039 = vpack.c.b16 %v1033, %v1032
    %v1040 = vpack.c.b16 %v1035, %v1034
    %v1041 = vpack.c.b16 %v1036, %v1036
    %v1043 = vsel %vm679, %v1037, 0
    %v1046 = vsel %vm679, %v1038, 0
    %v1049 = vsel %vm679, %v1039, 0
    %v1052 = vsel %vm679, %v1040, 0
    %v1055 = vsel %vm679, %v1041, 0
    %1057 = vmatprep.subr.bf16.mxu0 0
    %1058 = vmatpush1.bf16.msra.mxu0 0
    %1059 = vmatprep.subr.bf16.mxu0 0
    %1060 = vmatpush1.bf16.msra.mxu0 0
    %1061 = vmatprep.subr.bf16.mxu0 0
    %1062 = vmatpush1.bf16.msra.mxu0 0
    %1063 = vmatprep.subr.bf16.mxu0 0
    %1064 = vmatpush1.bf16.msra.mxu0 0
    %1065 = vmatprep.subr.bf16.mxu0 %v630
    %1066 = vmatpush1.bf16.msra.mxu0 %v629
    %1067 = vmatprep.subr.bf16.mxu0 %v622
    %1068 = vmatpush1.bf16.msra.mxu0 %v621
    %1069 = vmatprep.subr.bf16.mxu0 %v614
    %1070 = vmatpush1.bf16.msra.mxu0 %v613
    %1071 = vmatprep.subr.bf16.mxu0 %v606
    %1072 = vmatpush1.bf16.msra.mxu0 %v605
    %1073 = vmatprep.subr.bf16.mxu0 0
    %1074 = vmatpush2.bf16.msra.mxu0 0
    %1075 = vmatprep.subr.bf16.mxu0 0
    %1076 = vmatpush2.bf16.msra.mxu0 0
    %1077 = vmatprep.subr.bf16.mxu0 0
    %1078 = vmatpush2.bf16.msra.mxu0 0
    %1079 = vmatprep.subr.bf16.mxu0 0
    %1080 = vmatpush2.bf16.msra.mxu0 0
    %1081 = vmatprep.subr.bf16.mxu0 0
    %1082 = vmatpush2.bf16.msra.mxu0 0
    %1083 = vmatprep.subr.bf16.mxu0 0
    %1084 = vmatpush2.bf16.msra.mxu0 0
    %1085 = vmatprep.subr.bf16.mxu0 0
    %1086 = vmatpush2.bf16.msra.mxu0 0
    %1087 = vmatprep.subr.bf16.mxu0 0
    %1088 = vmatpush2.bf16.msra.mxu0 0
    %1089 = vmatprep.mubr.bf16.mxu0 0
    %1090 = vmatmul.mubr.bf16.gmra.mxu0 %v1043
    %v1091 = vpop.f32.mrf.mxu0
    %v1092 = vadd.f32 %v730, %v1091
    %v1093 = vpop.f32.mrf.mxu0
    %v1094 = vadd.f32 %v732, %v1093
    %v1095 = vpop.f32.mrf.mxu0
    %v1096 = vadd.f32 %v734, %v1095
    %v1097 = vpop.f32.mrf.mxu0
    %v1098 = vadd.f32 %v736, %v1097
    %1099 = vmatprep.mubr.bf16.mxu0 0
    %1100 = vmatmul.mubr.bf16.gmra.mxu0 %v1046
    %v1101 = vpop.f32.mrf.mxu0
    %v1102 = vadd.f32 %v740, %v1101
    %v1103 = vpop.f32.mrf.mxu0
    %v1104 = vadd.f32 %v742, %v1103
    %v1105 = vpop.f32.mrf.mxu0
    %v1106 = vadd.f32 %v744, %v1105
    %v1107 = vpop.f32.mrf.mxu0
    %v1108 = vadd.f32 %v746, %v1107
    %1109 = vmatprep.mubr.bf16.mxu0 0
    %1110 = vmatmul.mubr.bf16.gmra.mxu0 %v1049
    %v1111 = vpop.f32.mrf.mxu0
    %v1112 = vadd.f32 %v750, %v1111
    %v1113 = vpop.f32.mrf.mxu0
    %v1114 = vadd.f32 %v752, %v1113
    %v1115 = vpop.f32.mrf.mxu0
    %v1116 = vadd.f32 %v754, %v1115
    %v1117 = vpop.f32.mrf.mxu0
    %v1118 = vadd.f32 %v756, %v1117
    %1119 = vmatprep.mubr.bf16.mxu0 0
    %1120 = vmatmul.mubr.bf16.gmra.mxu0 %v1052
    %v1121 = vpop.f32.mrf.mxu0
    %v1122 = vadd.f32 %v760, %v1121
    %v1123 = vpop.f32.mrf.mxu0
    %v1124 = vadd.f32 %v762, %v1123
    %v1125 = vpop.f32.mrf.mxu0
    %v1126 = vadd.f32 %v764, %v1125
    %v1127 = vpop.f32.mrf.mxu0
    %v1128 = vadd.f32 %v766, %v1127
    %1129 = vmatprep.mubr.bf16.mxu0 0
    %1130 = vmatmul.mubr.bf16.gmra.mxu0 %v1055
    %v1131 = vpop.f32.mrf.mxu0
    %v1132 = vadd.f32 %v770, %v1131
    %v1133 = vpop.f32.mrf.mxu0
    %v1134 = vadd.f32 %v772, %v1133
    %v1135 = vpop.f32.mrf.mxu0
    %v1136 = vpop.f32.mrf.mxu0
    %1137 = vdwg.mxu0
    %1138 = vmatprep.subr.bf16.mxu0 0
    %1139 = vmatpush1.bf16.msra.mxu0 0
    %1140 = vmatprep.subr.bf16.mxu0 0
    %1141 = vmatpush1.bf16.msra.mxu0 0
    %1142 = vmatprep.subr.bf16.mxu0 0
    %1143 = vmatpush1.bf16.msra.mxu0 0
    %1144 = vmatprep.subr.bf16.mxu0 0
    %1145 = vmatpush1.bf16.msra.mxu0 0
    %1146 = vmatprep.subr.bf16.mxu0 %v632
    %1147 = vmatpush1.bf16.msra.mxu0 %v631
    %1148 = vmatprep.subr.bf16.mxu0 %v624
    %1149 = vmatpush1.bf16.msra.mxu0 %v623
    %1150 = vmatprep.subr.bf16.mxu0 %v616
    %1151 = vmatpush1.bf16.msra.mxu0 %v615
    %1152 = vmatprep.subr.bf16.mxu0 %v608
    %1153 = vmatpush1.bf16.msra.mxu0 %v607
    %1154 = vmatprep.subr.bf16.mxu0 0
    %1155 = vmatpush2.bf16.msra.mxu0 0
    %1156 = vmatprep.subr.bf16.mxu0 0
    %1157 = vmatpush2.bf16.msra.mxu0 0
    %1158 = vmatprep.subr.bf16.mxu0 0
    %1159 = vmatpush2.bf16.msra.mxu0 0
    %1160 = vmatprep.subr.bf16.mxu0 0
    %1161 = vmatpush2.bf16.msra.mxu0 0
    %1162 = vmatprep.subr.bf16.mxu0 0
    %1163 = vmatpush2.bf16.msra.mxu0 0
    %1164 = vmatprep.subr.bf16.mxu0 0
    %1165 = vmatpush2.bf16.msra.mxu0 0
    %1166 = vmatprep.subr.bf16.mxu0 0
    %1167 = vmatpush2.bf16.msra.mxu0 0
    %1168 = vmatprep.subr.bf16.mxu0 0
    %1169 = vmatpush2.bf16.msra.mxu0 0
    %1170 = vmatprep.mubr.bf16.mxu0 0
    %1171 = vmatmul.mubr.bf16.gmra.mxu0 %v1043
    %v1172 = vpop.f32.mrf.mxu0
    %v1173 = vadd.f32 %v811, %v1172
    %v1174 = vpop.f32.mrf.mxu0
    %v1175 = vadd.f32 %v813, %v1174
    %v1176 = vpop.f32.mrf.mxu0
    %v1177 = vadd.f32 %v815, %v1176
    %v1178 = vpop.f32.mrf.mxu0
    %v1179 = vadd.f32 %v817, %v1178
    %1180 = vmatprep.mubr.bf16.mxu0 0
    %1181 = vmatmul.mubr.bf16.gmra.mxu0 %v1046
    %v1182 = vpop.f32.mrf.mxu0
    %v1183 = vadd.f32 %v821, %v1182
    %v1184 = vpop.f32.mrf.mxu0
    %v1185 = vadd.f32 %v823, %v1184
    %v1186 = vpop.f32.mrf.mxu0
    %v1187 = vadd.f32 %v825, %v1186
    %v1188 = vpop.f32.mrf.mxu0
    %v1189 = vadd.f32 %v827, %v1188
    %1190 = vmatprep.mubr.bf16.mxu0 0
    %1191 = vmatmul.mubr.bf16.gmra.mxu0 %v1049
    %v1192 = vpop.f32.mrf.mxu0
    %v1193 = vadd.f32 %v831, %v1192
    %v1194 = vpop.f32.mrf.mxu0
    %v1195 = vadd.f32 %v833, %v1194
    %v1196 = vpop.f32.mrf.mxu0
    %v1197 = vadd.f32 %v835, %v1196
    %v1198 = vpop.f32.mrf.mxu0
    %v1199 = vadd.f32 %v837, %v1198
    %1200 = vmatprep.mubr.bf16.mxu0 0
    %1201 = vmatmul.mubr.bf16.gmra.mxu0 %v1052
    %v1202 = vpop.f32.mrf.mxu0
    %v1203 = vadd.f32 %v841, %v1202
    %v1204 = vpop.f32.mrf.mxu0
    %v1205 = vadd.f32 %v843, %v1204
    %v1206 = vpop.f32.mrf.mxu0
    %v1207 = vadd.f32 %v845, %v1206
    %v1208 = vpop.f32.mrf.mxu0
    %v1209 = vadd.f32 %v847, %v1208
    %1210 = vmatprep.mubr.bf16.mxu0 0
    %1211 = vmatmul.mubr.bf16.gmra.mxu0 %v1055
    %v1212 = vpop.f32.mrf.mxu0
    %v1213 = vadd.f32 %v851, %v1212
    %v1214 = vpop.f32.mrf.mxu0
    %v1215 = vadd.f32 %v853, %v1214
    %v1216 = vpop.f32.mrf.mxu0
    %v1217 = vpop.f32.mrf.mxu0
    %1218 = vdwg.mxu0
    %1219 = vmatprep.subr.bf16.mxu0 0
    %1220 = vmatpush1.bf16.msra.mxu0 0
    %1221 = vmatprep.subr.bf16.mxu0 0
    %1222 = vmatpush1.bf16.msra.mxu0 0
    %1223 = vmatprep.subr.bf16.mxu0 0
    %1224 = vmatpush1.bf16.msra.mxu0 0
    %1225 = vmatprep.subr.bf16.mxu0 0
    %1226 = vmatpush1.bf16.msra.mxu0 0
    %1227 = vmatprep.subr.bf16.mxu0 %v634
    %1228 = vmatpush1.bf16.msra.mxu0 %v633
    %1229 = vmatprep.subr.bf16.mxu0 %v626
    %1230 = vmatpush1.bf16.msra.mxu0 %v625
    %1231 = vmatprep.subr.bf16.mxu0 %v618
    %1232 = vmatpush1.bf16.msra.mxu0 %v617
    %1233 = vmatprep.subr.bf16.mxu0 %v610
    %1234 = vmatpush1.bf16.msra.mxu0 %v609
    %1235 = vmatprep.subr.bf16.mxu0 0
    %1236 = vmatpush2.bf16.msra.mxu0 0
    %1237 = vmatprep.subr.bf16.mxu0 0
    %1238 = vmatpush2.bf16.msra.mxu0 0
    %1239 = vmatprep.subr.bf16.mxu0 0
    %1240 = vmatpush2.bf16.msra.mxu0 0
    %1241 = vmatprep.subr.bf16.mxu0 0
    %1242 = vmatpush2.bf16.msra.mxu0 0
    %1243 = vmatprep.subr.bf16.mxu0 0
    %1244 = vmatpush2.bf16.msra.mxu0 0
    %1245 = vmatprep.subr.bf16.mxu0 0
    %1246 = vmatpush2.bf16.msra.mxu0 0
    %1247 = vmatprep.subr.bf16.mxu0 0
    %1248 = vmatpush2.bf16.msra.mxu0 0
    %1249 = vmatprep.subr.bf16.mxu0 0
    %1250 = vmatpush2.bf16.msra.mxu0 0
    %1251 = vmatprep.mubr.bf16.mxu0 0
    %1252 = vmatmul.mubr.bf16.gmra.mxu0 %v1043
    %v1253 = vpop.f32.mrf.mxu0
    %v1254 = vadd.f32 %v892, %v1253
    %v1255 = vpop.f32.mrf.mxu0
    %v1256 = vadd.f32 %v894, %v1255
    %v1257 = vpop.f32.mrf.mxu0
    %v1258 = vadd.f32 %v896, %v1257
    %v1259 = vpop.f32.mrf.mxu0
    %v1260 = vadd.f32 %v898, %v1259
    %1261 = vmatprep.mubr.bf16.mxu0 0
    %1262 = vmatmul.mubr.bf16.gmra.mxu0 %v1046
    %v1263 = vpop.f32.mrf.mxu0
    %v1264 = vadd.f32 %v902, %v1263
    %v1265 = vpop.f32.mrf.mxu0
    %v1266 = vadd.f32 %v904, %v1265
    %v1267 = vpop.f32.mrf.mxu0
    %v1268 = vadd.f32 %v906, %v1267
    %v1269 = vpop.f32.mrf.mxu0
    %v1270 = vadd.f32 %v908, %v1269
    %1271 = vmatprep.mubr.bf16.mxu0 0
    %1272 = vmatmul.mubr.bf16.gmra.mxu0 %v1049
    %v1273 = vpop.f32.mrf.mxu0
    %v1274 = vadd.f32 %v912, %v1273
    %v1275 = vpop.f32.mrf.mxu0
    %v1276 = vadd.f32 %v914, %v1275
    %v1277 = vpop.f32.mrf.mxu0
    %v1278 = vadd.f32 %v916, %v1277
    %v1279 = vpop.f32.mrf.mxu0
    %v1280 = vadd.f32 %v918, %v1279
    %1281 = vmatprep.mubr.bf16.mxu0 0
    %1282 = vmatmul.mubr.bf16.gmra.mxu0 %v1052
    %v1283 = vpop.f32.mrf.mxu0
    %v1284 = vadd.f32 %v922, %v1283
    %v1285 = vpop.f32.mrf.mxu0
    %v1286 = vadd.f32 %v924, %v1285
    %v1287 = vpop.f32.mrf.mxu0
    %v1288 = vadd.f32 %v926, %v1287
    %v1289 = vpop.f32.mrf.mxu0
    %v1290 = vadd.f32 %v928, %v1289
    %1291 = vmatprep.mubr.bf16.mxu0 0
    %1292 = vmatmul.mubr.bf16.gmra.mxu0 %v1055
    %v1293 = vpop.f32.mrf.mxu0
    %v1294 = vadd.f32 %v932, %v1293
    %v1295 = vpop.f32.mrf.mxu0
    %v1296 = vadd.f32 %v934, %v1295
    %v1297 = vpop.f32.mrf.mxu0
    %v1298 = vpop.f32.mrf.mxu0
    %1299 = vdwg.mxu0
    %1300 = vmatprep.subr.bf16.mxu0 0
    %1301 = vmatpush1.bf16.msra.mxu0 0
    %1302 = vmatprep.subr.bf16.mxu0 0
    %1303 = vmatpush1.bf16.msra.mxu0 0
    %1304 = vmatprep.subr.bf16.mxu0 0
    %1305 = vmatpush1.bf16.msra.mxu0 0
    %1306 = vmatprep.subr.bf16.mxu0 0
    %1307 = vmatpush1.bf16.msra.mxu0 0
    %1308 = vmatprep.subr.bf16.mxu0 %v636
    %1309 = vmatpush1.bf16.msra.mxu0 %v635
    %1310 = vmatprep.subr.bf16.mxu0 %v628
    %1311 = vmatpush1.bf16.msra.mxu0 %v627
    %1312 = vmatprep.subr.bf16.mxu0 %v620
    %1313 = vmatpush1.bf16.msra.mxu0 %v619
    %1314 = vmatprep.subr.bf16.mxu0 %v612
    %1315 = vmatpush1.bf16.msra.mxu0 %v611
    %1316 = vmatprep.subr.bf16.mxu0 0
    %1317 = vmatpush2.bf16.msra.mxu0 0
    %1318 = vmatprep.subr.bf16.mxu0 0
    %1319 = vmatpush2.bf16.msra.mxu0 0
    %1320 = vmatprep.subr.bf16.mxu0 0
    %1321 = vmatpush2.bf16.msra.mxu0 0
    %1322 = vmatprep.subr.bf16.mxu0 0
    %1323 = vmatpush2.bf16.msra.mxu0 0
    %1324 = vmatprep.subr.bf16.mxu0 0
    %1325 = vmatpush2.bf16.msra.mxu0 0
    %1326 = vmatprep.subr.bf16.mxu0 0
    %1327 = vmatpush2.bf16.msra.mxu0 0
    %1328 = vmatprep.subr.bf16.mxu0 0
    %1329 = vmatpush2.bf16.msra.mxu0 0
    %1330 = vmatprep.subr.bf16.mxu0 0
    %1331 = vmatpush2.bf16.msra.mxu0 0
    %1332 = vmatprep.mubr.bf16.mxu0 0
    %1333 = vmatmul.mubr.bf16.gmra.mxu0 %v1043
    %v1334 = vpop.f32.mrf.mxu0
    %v1335 = vadd.f32 %v973, %v1334
    %v1336 = vpop.f32.mrf.mxu0
    %v1337 = vadd.f32 %v975, %v1336
    %v1338 = vpop.f32.mrf.mxu0
    %v1339 = vadd.f32 %v977, %v1338
    %v1340 = vpop.f32.mrf.mxu0
    %v1341 = vadd.f32 %v979, %v1340
    %1342 = vmatprep.mubr.bf16.mxu0 0
    %1343 = vmatmul.mubr.bf16.gmra.mxu0 %v1046
    %v1344 = vpop.f32.mrf.mxu0
    %v1345 = vadd.f32 %v983, %v1344
    %v1346 = vpop.f32.mrf.mxu0
    %v1347 = vadd.f32 %v985, %v1346
    %v1348 = vpop.f32.mrf.mxu0
    %v1349 = vadd.f32 %v987, %v1348
    %v1350 = vpop.f32.mrf.mxu0
    %v1351 = vadd.f32 %v989, %v1350
    %1352 = vmatprep.mubr.bf16.mxu0 0
    %1353 = vmatmul.mubr.bf16.gmra.mxu0 %v1049
    %v1354 = vpop.f32.mrf.mxu0
    %v1355 = vadd.f32 %v993, %v1354
    %v1356 = vpop.f32.mrf.mxu0
    %v1357 = vadd.f32 %v995, %v1356
    %v1358 = vpop.f32.mrf.mxu0
    %v1359 = vadd.f32 %v997, %v1358
    %v1360 = vpop.f32.mrf.mxu0
    %v1361 = vadd.f32 %v999, %v1360
    %1362 = vmatprep.mubr.bf16.mxu0 0
    %1363 = vmatmul.mubr.bf16.gmra.mxu0 %v1052
    %v1364 = vpop.f32.mrf.mxu0
    %v1365 = vadd.f32 %v1003, %v1364
    %v1366 = vpop.f32.mrf.mxu0
    %v1367 = vadd.f32 %v1005, %v1366
    %v1368 = vpop.f32.mrf.mxu0
    %v1369 = vadd.f32 %v1007, %v1368
    %v1370 = vpop.f32.mrf.mxu0
    %v1371 = vadd.f32 %v1009, %v1370
    %1372 = vmatprep.mubr.bf16.mxu0 0
    %1373 = vmatmul.mubr.bf16.gmra.mxu0 %v1055
    %v1374 = vpop.f32.mrf.mxu0
    %v1375 = vadd.f32 %v1013, %v1374
    %v1376 = vpop.f32.mrf.mxu0
    %v1377 = vadd.f32 %v1015, %v1376
    %v1378 = vpop.f32.mrf.mxu0
    %v1379 = vpop.f32.mrf.mxu0
    %1380 = vdwg.mxu0
    %s1381 = scalar_lea.vmem %s2, 72
    %v1382 = vld [vmem:[%s1381] sm:$0xf]
    %v1383 = vld [vmem:[%s1381 + $0x4] sm:$0xf]
    %v1384 = vld [vmem:[%s1381 + $0x8] sm:$0xf]
    %v1385 = vld [vmem:[%s1381 + $0xc] sm:$0xf]
    %v1386 = vld [vmem:[%s1381 + $0x10] sm:$0xf]
    %v1387 = vld [vmem:[%s1381 + $0x14] sm:$0xf]
    %v1388 = vld [vmem:[%s1381 + $0x18] sm:$0xf]
    %v1389 = vld [vmem:[%s1381 + $0x1c] sm:$0xf]
    %v1390 = vld [vmem:[%s1381 + $0x20] sm:$0x1]
    %v1400 = vunpack.c.l.b16 %v1382
    %v1401 = vunpack.c.l.b16 %v1383
    %v1402 = vunpack.c.l.b16 %v1384
    %v1403 = vunpack.c.l.b16 %v1385
    %v1404 = vunpack.c.l.b16 %v1386
    %v1405 = vunpack.c.l.b16 %v1387
    %v1406 = vunpack.c.l.b16 %v1388
    %v1407 = vunpack.c.l.b16 %v1389
    %v1408 = vunpack.c.l.b16 %v1390
    %v1409 = vpack.c.b16 %v1401, %v1400
    %v1410 = vpack.c.b16 %v1403, %v1402
    %v1411 = vpack.c.b16 %v1405, %v1404
    %v1412 = vpack.c.b16 %v1407, %v1406
    %v1413 = vpack.c.b16 %v1408, %v1408
    %v1415 = vsel %vm679, %v1409, 0
    %v1418 = vsel %vm679, %v1410, 0
    %v1421 = vsel %vm679, %v1411, 0
    %v1424 = vsel %vm679, %v1412, 0
    %v1427 = vsel %vm679, %v1413, 0
    %1429 = vmatprep.subr.bf16.mxu0 0
    %1430 = vmatpush1.bf16.msra.mxu0 0
    %1431 = vmatprep.subr.bf16.mxu0 0
    %1432 = vmatpush1.bf16.msra.mxu0 0
    %1433 = vmatprep.subr.bf16.mxu0 0
    %1434 = vmatpush1.bf16.msra.mxu0 0
    %1435 = vmatprep.subr.bf16.mxu0 0
    %1436 = vmatpush1.bf16.msra.mxu0 0
    %1437 = vmatprep.subr.bf16.mxu0 %v630
    %1438 = vmatpush1.bf16.msra.mxu0 %v629
    %1439 = vmatprep.subr.bf16.mxu0 %v622
    %1440 = vmatpush1.bf16.msra.mxu0 %v621
    %1441 = vmatprep.subr.bf16.mxu0 %v614
    %1442 = vmatpush1.bf16.msra.mxu0 %v613
    %1443 = vmatprep.subr.bf16.mxu0 %v606
    %1444 = vmatpush1.bf16.msra.mxu0 %v605
    %1445 = vmatprep.subr.bf16.mxu0 0
    %1446 = vmatpush2.bf16.msra.mxu0 0
    %1447 = vmatprep.subr.bf16.mxu0 0
    %1448 = vmatpush2.bf16.msra.mxu0 0
    %1449 = vmatprep.subr.bf16.mxu0 0
    %1450 = vmatpush2.bf16.msra.mxu0 0
    %1451 = vmatprep.subr.bf16.mxu0 0
    %1452 = vmatpush2.bf16.msra.mxu0 0
    %1453 = vmatprep.subr.bf16.mxu0 0
    %1454 = vmatpush2.bf16.msra.mxu0 0
    %1455 = vmatprep.subr.bf16.mxu0 0
    %1456 = vmatpush2.bf16.msra.mxu0 0
    %1457 = vmatprep.subr.bf16.mxu0 0
    %1458 = vmatpush2.bf16.msra.mxu0 0
    %1459 = vmatprep.subr.bf16.mxu0 0
    %1460 = vmatpush2.bf16.msra.mxu0 0
    %1461 = vmatprep.mubr.bf16.mxu0 0
    %1462 = vmatmul.mubr.bf16.gmra.mxu0 %v1415
    %v1463 = vpop.f32.mrf.mxu0
    %v1464 = vadd.f32 0.0, %v1463
    %v1465 = vpop.f32.mrf.mxu0
    %v1466 = vadd.f32 0.0, %v1465
    %v1467 = vpop.f32.mrf.mxu0
    %v1468 = vadd.f32 0.0, %v1467
    %v1469 = vpop.f32.mrf.mxu0
    %v1470 = vadd.f32 0.0, %v1469
    %1471 = vmatprep.mubr.bf16.mxu0 0
    %1472 = vmatmul.mubr.bf16.gmra.mxu0 %v1418
    %v1473 = vpop.f32.mrf.mxu0
    %v1474 = vadd.f32 0.0, %v1473
    %v1475 = vpop.f32.mrf.mxu0
    %v1476 = vadd.f32 0.0, %v1475
    %v1477 = vpop.f32.mrf.mxu0
    %v1478 = vadd.f32 0.0, %v1477
    %v1479 = vpop.f32.mrf.mxu0
    %v1480 = vadd.f32 0.0, %v1479
    %1481 = vmatprep.mubr.bf16.mxu0 0
    %1482 = vmatmul.mubr.bf16.gmra.mxu0 %v1421
    %v1483 = vpop.f32.mrf.mxu0
    %v1484 = vadd.f32 0.0, %v1483
    %v1485 = vpop.f32.mrf.mxu0
    %v1486 = vadd.f32 0.0, %v1485
    %v1487 = vpop.f32.mrf.mxu0
    %v1488 = vadd.f32 0.0, %v1487
    %v1489 = vpop.f32.mrf.mxu0
    %v1490 = vadd.f32 0.0, %v1489
    %1491 = vmatprep.mubr.bf16.mxu0 0
    %1492 = vmatmul.mubr.bf16.gmra.mxu0 %v1424
    %v1493 = vpop.f32.mrf.mxu0
    %v1494 = vadd.f32 0.0, %v1493
    %v1495 = vpop.f32.mrf.mxu0
    %v1496 = vadd.f32 0.0, %v1495
    %v1497 = vpop.f32.mrf.mxu0
    %v1498 = vadd.f32 0.0, %v1497
    %v1499 = vpop.f32.mrf.mxu0
    %v1500 = vadd.f32 0.0, %v1499
    %1501 = vmatprep.mubr.bf16.mxu0 0
    %1502 = vmatmul.mubr.bf16.gmra.mxu0 %v1427
    %v1503 = vpop.f32.mrf.mxu0
    %v1504 = vadd.f32 0.0, %v1503
    %v1505 = vpop.f32.mrf.mxu0
    %v1506 = vadd.f32 0.0, %v1505
    %v1507 = vpop.f32.mrf.mxu0
    %v1508 = vpop.f32.mrf.mxu0
    %1509 = vdwg.mxu0
    %1510 = vmatprep.subr.bf16.mxu0 0
    %1511 = vmatpush1.bf16.msra.mxu0 0
    %1512 = vmatprep.subr.bf16.mxu0 0
    %1513 = vmatpush1.bf16.msra.mxu0 0
    %1514 = vmatprep.subr.bf16.mxu0 0
    %1515 = vmatpush1.bf16.msra.mxu0 0
    %1516 = vmatprep.subr.bf16.mxu0 0
    %1517 = vmatpush1.bf16.msra.mxu0 0
    %1518 = vmatprep.subr.bf16.mxu0 %v632
    %1519 = vmatpush1.bf16.msra.mxu0 %v631
    %1520 = vmatprep.subr.bf16.mxu0 %v624
    %1521 = vmatpush1.bf16.msra.mxu0 %v623
    %1522 = vmatprep.subr.bf16.mxu0 %v616
    %1523 = vmatpush1.bf16.msra.mxu0 %v615
    %1524 = vmatprep.subr.bf16.mxu0 %v608
    %1525 = vmatpush1.bf16.msra.mxu0 %v607
    %1526 = vmatprep.subr.bf16.mxu0 0
    %1527 = vmatpush2.bf16.msra.mxu0 0
    %1528 = vmatprep.subr.bf16.mxu0 0
    %1529 = vmatpush2.bf16.msra.mxu0 0
    %1530 = vmatprep.subr.bf16.mxu0 0
    %1531 = vmatpush2.bf16.msra.mxu0 0
    %1532 = vmatprep.subr.bf16.mxu0 0
    %1533 = vmatpush2.bf16.msra.mxu0 0
    %1534 = vmatprep.subr.bf16.mxu0 0
    %1535 = vmatpush2.bf16.msra.mxu0 0
    %1536 = vmatprep.subr.bf16.mxu0 0
    %1537 = vmatpush2.bf16.msra.mxu0 0
    %1538 = vmatprep.subr.bf16.mxu0 0
    %1539 = vmatpush2.bf16.msra.mxu0 0
    %1540 = vmatprep.subr.bf16.mxu0 0
    %1541 = vmatpush2.bf16.msra.mxu0 0
    %1542 = vmatprep.mubr.bf16.mxu0 0
    %1543 = vmatmul.mubr.bf16.gmra.mxu0 %v1415
    %v1544 = vpop.f32.mrf.mxu0
    %v1545 = vadd.f32 0.0, %v1544
    %v1546 = vpop.f32.mrf.mxu0
    %v1547 = vadd.f32 0.0, %v1546
    %v1548 = vpop.f32.mrf.mxu0
    %v1549 = vadd.f32 0.0, %v1548
    %v1550 = vpop.f32.mrf.mxu0
    %v1551 = vadd.f32 0.0, %v1550
    %1552 = vmatprep.mubr.bf16.mxu0 0
    %1553 = vmatmul.mubr.bf16.gmra.mxu0 %v1418
    %v1554 = vpop.f32.mrf.mxu0
    %v1555 = vadd.f32 0.0, %v1554
    %v1556 = vpop.f32.mrf.mxu0
    %v1557 = vadd.f32 0.0, %v1556
    %v1558 = vpop.f32.mrf.mxu0
    %v1559 = vadd.f32 0.0, %v1558
    %v1560 = vpop.f32.mrf.mxu0
    %v1561 = vadd.f32 0.0, %v1560
    %1562 = vmatprep.mubr.bf16.mxu0 0
    %1563 = vmatmul.mubr.bf16.gmra.mxu0 %v1421
    %v1564 = vpop.f32.mrf.mxu0
    %v1565 = vadd.f32 0.0, %v1564
    %v1566 = vpop.f32.mrf.mxu0
    %v1567 = vadd.f32 0.0, %v1566
    %v1568 = vpop.f32.mrf.mxu0
    %v1569 = vadd.f32 0.0, %v1568
    %v1570 = vpop.f32.mrf.mxu0
    %v1571 = vadd.f32 0.0, %v1570
    %1572 = vmatprep.mubr.bf16.mxu0 0
    %1573 = vmatmul.mubr.bf16.gmra.mxu0 %v1424
    %v1574 = vpop.f32.mrf.mxu0
    %v1575 = vadd.f32 0.0, %v1574
    %v1576 = vpop.f32.mrf.mxu0
    %v1577 = vadd.f32 0.0, %v1576
    %v1578 = vpop.f32.mrf.mxu0
    %v1579 = vadd.f32 0.0, %v1578
    %v1580 = vpop.f32.mrf.mxu0
    %v1581 = vadd.f32 0.0, %v1580
    %1582 = vmatprep.mubr.bf16.mxu0 0
    %1583 = vmatmul.mubr.bf16.gmra.mxu0 %v1427
    %v1584 = vpop.f32.mrf.mxu0
    %v1585 = vadd.f32 0.0, %v1584
    %v1586 = vpop.f32.mrf.mxu0
    %v1587 = vadd.f32 0.0, %v1586
    %v1588 = vpop.f32.mrf.mxu0
    %v1589 = vpop.f32.mrf.mxu0
    %1590 = vdwg.mxu0
    %1591 = vmatprep.subr.bf16.mxu0 0
    %1592 = vmatpush1.bf16.msra.mxu0 0
    %1593 = vmatprep.subr.bf16.mxu0 0
    %1594 = vmatpush1.bf16.msra.mxu0 0
    %1595 = vmatprep.subr.bf16.mxu0 0
    %1596 = vmatpush1.bf16.msra.mxu0 0
    %1597 = vmatprep.subr.bf16.mxu0 0
    %1598 = vmatpush1.bf16.msra.mxu0 0
    %1599 = vmatprep.subr.bf16.mxu0 %v634
    %1600 = vmatpush1.bf16.msra.mxu0 %v633
    %1601 = vmatprep.subr.bf16.mxu0 %v626
    %1602 = vmatpush1.bf16.msra.mxu0 %v625
    %1603 = vmatprep.subr.bf16.mxu0 %v618
    %1604 = vmatpush1.bf16.msra.mxu0 %v617
    %1605 = vmatprep.subr.bf16.mxu0 %v610
    %1606 = vmatpush1.bf16.msra.mxu0 %v609
    %1607 = vmatprep.subr.bf16.mxu0 0
    %1608 = vmatpush2.bf16.msra.mxu0 0
    %1609 = vmatprep.subr.bf16.mxu0 0
    %1610 = vmatpush2.bf16.msra.mxu0 0
    %1611 = vmatprep.subr.bf16.mxu0 0
    %1612 = vmatpush2.bf16.msra.mxu0 0
    %1613 = vmatprep.subr.bf16.mxu0 0
    %1614 = vmatpush2.bf16.msra.mxu0 0
    %1615 = vmatprep.subr.bf16.mxu0 0
    %1616 = vmatpush2.bf16.msra.mxu0 0
    %1617 = vmatprep.subr.bf16.mxu0 0
    %1618 = vmatpush2.bf16.msra.mxu0 0
    %1619 = vmatprep.subr.bf16.mxu0 0
    %1620 = vmatpush2.bf16.msra.mxu0 0
    %1621 = vmatprep.subr.bf16.mxu0 0
    %1622 = vmatpush2.bf16.msra.mxu0 0
    %1623 = vmatprep.mubr.bf16.mxu0 0
    %1624 = vmatmul.mubr.bf16.gmra.mxu0 %v1415
    %v1625 = vpop.f32.mrf.mxu0
    %v1626 = vadd.f32 0.0, %v1625
    %v1627 = vpop.f32.mrf.mxu0
    %v1628 = vadd.f32 0.0, %v1627
    %v1629 = vpop.f32.mrf.mxu0
    %v1630 = vadd.f32 0.0, %v1629
    %v1631 = vpop.f32.mrf.mxu0
    %v1632 = vadd.f32 0.0, %v1631
    %1633 = vmatprep.mubr.bf16.mxu0 0
    %1634 = vmatmul.mubr.bf16.gmra.mxu0 %v1418
    %v1635 = vpop.f32.mrf.mxu0
    %v1636 = vadd.f32 0.0, %v1635
    %v1637 = vpop.f32.mrf.mxu0
    %v1638 = vadd.f32 0.0, %v1637
    %v1639 = vpop.f32.mrf.mxu0
    %v1640 = vadd.f32 0.0, %v1639
    %v1641 = vpop.f32.mrf.mxu0
    %v1642 = vadd.f32 0.0, %v1641
    %1643 = vmatprep.mubr.bf16.mxu0 0
    %1644 = vmatmul.mubr.bf16.gmra.mxu0 %v1421
    %v1645 = vpop.f32.mrf.mxu0
    %v1646 = vadd.f32 0.0, %v1645
    %v1647 = vpop.f32.mrf.mxu0
    %v1648 = vadd.f32 0.0, %v1647
    %v1649 = vpop.f32.mrf.mxu0
    %v1650 = vadd.f32 0.0, %v1649
    %v1651 = vpop.f32.mrf.mxu0
    %v1652 = vadd.f32 0.0, %v1651
    %1653 = vmatprep.mubr.bf16.mxu0 0
    %1654 = vmatmul.mubr.bf16.gmra.mxu0 %v1424
    %v1655 = vpop.f32.mrf.mxu0
    %v1656 = vadd.f32 0.0, %v1655
    %v1657 = vpop.f32.mrf.mxu0
    %v1658 = vadd.f32 0.0, %v1657
    %v1659 = vpop.f32.mrf.mxu0
    %v1660 = vadd.f32 0.0, %v1659
    %v1661 = vpop.f32.mrf.mxu0
    %v1662 = vadd.f32 0.0, %v1661
    %1663 = vmatprep.mubr.bf16.mxu0 0
    %1664 = vmatmul.mubr.bf16.gmra.mxu0 %v1427
    %v1665 = vpop.f32.mrf.mxu0
    %v1666 = vadd.f32 0.0, %v1665
    %v1667 = vpop.f32.mrf.mxu0
    %v1668 = vadd.f32 0.0, %v1667
    %v1669 = vpop.f32.mrf.mxu0
    %v1670 = vpop.f32.mrf.mxu0
    %1671 = vdwg.mxu0
    %1672 = vmatprep.subr.bf16.mxu0 0
    %1673 = vmatpush1.bf16.msra.mxu0 0
    %1674 = vmatprep.subr.bf16.mxu0 0
    %1675 = vmatpush1.bf16.msra.mxu0 0
    %1676 = vmatprep.subr.bf16.mxu0 0
    %1677 = vmatpush1.bf16.msra.mxu0 0
    %1678 = vmatprep.subr.bf16.mxu0 0
    %1679 = vmatpush1.bf16.msra.mxu0 0
    %1680 = vmatprep.subr.bf16.mxu0 %v636
    %1681 = vmatpush1.bf16.msra.mxu0 %v635
    %1682 = vmatprep.subr.bf16.mxu0 %v628
    %1683 = vmatpush1.bf16.msra.mxu0 %v627
    %1684 = vmatprep.subr.bf16.mxu0 %v620
    %1685 = vmatpush1.bf16.msra.mxu0 %v619
    %1686 = vmatprep.subr.bf16.mxu0 %v612
    %1687 = vmatpush1.bf16.msra.mxu0 %v611
    %1688 = vmatprep.subr.bf16.mxu0 0
    %1689 = vmatpush2.bf16.msra.mxu0 0
    %1690 = vmatprep.subr.bf16.mxu0 0
    %1691 = vmatpush2.bf16.msra.mxu0 0
    %1692 = vmatprep.subr.bf16.mxu0 0
    %1693 = vmatpush2.bf16.msra.mxu0 0
    %1694 = vmatprep.subr.bf16.mxu0 0
    %1695 = vmatpush2.bf16.msra.mxu0 0
    %1696 = vmatprep.subr.bf16.mxu0 0
    %1697 = vmatpush2.bf16.msra.mxu0 0
    %1698 = vmatprep.subr.bf16.mxu0 0
    %1699 = vmatpush2.bf16.msra.mxu0 0
    %1700 = vmatprep.subr.bf16.mxu0 0
    %1701 = vmatpush2.bf16.msra.mxu0 0
    %1702 = vmatprep.subr.bf16.mxu0 0
    %1703 = vmatpush2.bf16.msra.mxu0 0
    %1704 = vmatprep.mubr.bf16.mxu0 0
    %1705 = vmatmul.mubr.bf16.gmra.mxu0 %v1415
    %v1706 = vpop.f32.mrf.mxu0
    %v1707 = vadd.f32 0.0, %v1706
    %v1708 = vpop.f32.mrf.mxu0
    %v1709 = vadd.f32 0.0, %v1708
    %v1710 = vpop.f32.mrf.mxu0
    %v1711 = vadd.f32 0.0, %v1710
    %v1712 = vpop.f32.mrf.mxu0
    %v1713 = vadd.f32 0.0, %v1712
    %1714 = vmatprep.mubr.bf16.mxu0 0
    %1715 = vmatmul.mubr.bf16.gmra.mxu0 %v1418
    %v1716 = vpop.f32.mrf.mxu0
    %v1717 = vadd.f32 0.0, %v1716
    %v1718 = vpop.f32.mrf.mxu0
    %v1719 = vadd.f32 0.0, %v1718
    %v1720 = vpop.f32.mrf.mxu0
    %v1721 = vadd.f32 0.0, %v1720
    %v1722 = vpop.f32.mrf.mxu0
    %v1723 = vadd.f32 0.0, %v1722
    %1724 = vmatprep.mubr.bf16.mxu0 0
    %1725 = vmatmul.mubr.bf16.gmra.mxu0 %v1421
    %v1726 = vpop.f32.mrf.mxu0
    %v1727 = vadd.f32 0.0, %v1726
    %v1728 = vpop.f32.mrf.mxu0
    %v1729 = vadd.f32 0.0, %v1728
    %v1730 = vpop.f32.mrf.mxu0
    %v1731 = vadd.f32 0.0, %v1730
    %v1732 = vpop.f32.mrf.mxu0
    %v1733 = vadd.f32 0.0, %v1732
    %1734 = vmatprep.mubr.bf16.mxu0 0
    %1735 = vmatmul.mubr.bf16.gmra.mxu0 %v1424
    %v1736 = vpop.f32.mrf.mxu0
    %v1737 = vadd.f32 0.0, %v1736
    %v1738 = vpop.f32.mrf.mxu0
    %v1739 = vadd.f32 0.0, %v1738
    %v1740 = vpop.f32.mrf.mxu0
    %v1741 = vadd.f32 0.0, %v1740
    %v1742 = vpop.f32.mrf.mxu0
    %v1743 = vadd.f32 0.0, %v1742
    %1744 = vmatprep.mubr.bf16.mxu0 0
    %1745 = vmatmul.mubr.bf16.gmra.mxu0 %v1427
    %v1746 = vpop.f32.mrf.mxu0
    %v1747 = vadd.f32 0.0, %v1746
    %v1748 = vpop.f32.mrf.mxu0
    %v1749 = vadd.f32 0.0, %v1748
    %v1750 = vpop.f32.mrf.mxu0
    %v1751 = vpop.f32.mrf.mxu0
    %1752 = vdwg.mxu0
    %v1753 = vadd.f32 %v1092, %v1464
    %v1754 = vadd.f32 %v1094, %v1466
    %v1755 = vadd.f32 %v1173, %v1545
    %v1756 = vadd.f32 %v1175, %v1547
    %v1757 = vadd.f32 %v1254, %v1626
    %v1758 = vadd.f32 %v1256, %v1628
    %v1759 = vadd.f32 %v1335, %v1707
    %v1760 = vadd.f32 %v1337, %v1709
    %v1761 = vadd.f32 %v1096, %v1468
    %v1762 = vadd.f32 %v1098, %v1470
    %v1763 = vadd.f32 %v1177, %v1549
    %v1764 = vadd.f32 %v1179, %v1551
    %v1765 = vadd.f32 %v1258, %v1630
    %v1766 = vadd.f32 %v1260, %v1632
    %v1767 = vadd.f32 %v1339, %v1711
    %v1768 = vadd.f32 %v1341, %v1713
    %v1769 = vadd.f32 %v1102, %v1474
    %v1770 = vadd.f32 %v1104, %v1476
    %v1771 = vadd.f32 %v1183, %v1555
    %v1772 = vadd.f32 %v1185, %v1557
    %v1773 = vadd.f32 %v1264, %v1636
    %v1774 = vadd.f32 %v1266, %v1638
    %v1775 = vadd.f32 %v1345, %v1717
    %v1776 = vadd.f32 %v1347, %v1719
    %v1777 = vadd.f32 %v1106, %v1478
    %v1778 = vadd.f32 %v1108, %v1480
    %v1779 = vadd.f32 %v1187, %v1559
    %v1780 = vadd.f32 %v1189, %v1561
    %v1781 = vadd.f32 %v1268, %v1640
    %v1782 = vadd.f32 %v1270, %v1642
    %v1783 = vadd.f32 %v1349, %v1721
    %v1784 = vadd.f32 %v1351, %v1723
    %v1785 = vadd.f32 %v1112, %v1484
    %v1786 = vadd.f32 %v1114, %v1486
    %v1787 = vadd.f32 %v1193, %v1565
    %v1788 = vadd.f32 %v1195, %v1567
    %v1789 = vadd.f32 %v1274, %v1646
    %v1790 = vadd.f32 %v1276, %v1648
    %v1791 = vadd.f32 %v1355, %v1727
    %v1792 = vadd.f32 %v1357, %v1729
    %v1793 = vadd.f32 %v1116, %v1488
    %v1794 = vadd.f32 %v1118, %v1490
    %v1795 = vadd.f32 %v1197, %v1569
    %v1796 = vadd.f32 %v1199, %v1571
    %v1797 = vadd.f32 %v1278, %v1650
    %v1798 = vadd.f32 %v1280, %v1652
    %v1799 = vadd.f32 %v1359, %v1731
    %v1800 = vadd.f32 %v1361, %v1733
    %v1801 = vadd.f32 %v1122, %v1494
    %v1802 = vadd.f32 %v1124, %v1496
    %v1803 = vadd.f32 %v1203, %v1575
    %v1804 = vadd.f32 %v1205, %v1577
    %v1805 = vadd.f32 %v1284, %v1656
    %v1806 = vadd.f32 %v1286, %v1658
    %v1807 = vadd.f32 %v1365, %v1737
    %v1808 = vadd.f32 %v1367, %v1739
    %v1809 = vadd.f32 %v1126, %v1498
    %v1810 = vadd.f32 %v1128, %v1500
    %v1811 = vadd.f32 %v1207, %v1579
    %v1812 = vadd.f32 %v1209, %v1581
    %v1813 = vadd.f32 %v1288, %v1660
    %v1814 = vadd.f32 %v1290, %v1662
    %v1815 = vadd.f32 %v1369, %v1741
    %v1816 = vadd.f32 %v1371, %v1743
    %v1817 = vadd.f32 %v1132, %v1504
    %v1818 = vadd.f32 %v1134, %v1506
    %v1819 = vadd.f32 %v1213, %v1585
    %v1820 = vadd.f32 %v1215, %v1587
    %v1821 = vadd.f32 %v1294, %v1666
    %v1822 = vadd.f32 %v1296, %v1668
    %v1823 = vadd.f32 %v1375, %v1747
    %v1824 = vadd.f32 %v1377, %v1749
    %v1825 = vmul.f32 %v1753, %v1753
    %v1826 = vmul.f32 %v1754, %v1754
    %v1827 = vmul.f32 %v1755, %v1755
    %v1828 = vmul.f32 %v1756, %v1756
    %v1829 = vmul.f32 %v1757, %v1757
    %v1830 = vmul.f32 %v1758, %v1758
    %v1831 = vmul.f32 %v1759, %v1759
    %v1832 = vmul.f32 %v1760, %v1760
    %v1833 = vmul.f32 %v1761, %v1761
    %v1834 = vmul.f32 %v1762, %v1762
    %v1835 = vmul.f32 %v1763, %v1763
    %v1836 = vmul.f32 %v1764, %v1764
    %v1837 = vmul.f32 %v1765, %v1765
    %v1838 = vmul.f32 %v1766, %v1766
    %v1839 = vmul.f32 %v1767, %v1767
    %v1840 = vmul.f32 %v1768, %v1768
    %v1841 = vmul.f32 %v1769, %v1769
    %v1842 = vmul.f32 %v1770, %v1770
    %v1843 = vmul.f32 %v1771, %v1771
    %v1844 = vmul.f32 %v1772, %v1772
    %v1845 = vmul.f32 %v1773, %v1773
    %v1846 = vmul.f32 %v1774, %v1774
    %v1847 = vmul.f32 %v1775, %v1775
    %v1848 = vmul.f32 %v1776, %v1776
    %v1849 = vmul.f32 %v1777, %v1777
    %v1850 = vmul.f32 %v1778, %v1778
    %v1851 = vmul.f32 %v1779, %v1779
    %v1852 = vmul.f32 %v1780, %v1780
    %v1853 = vmul.f32 %v1781, %v1781
    %v1854 = vmul.f32 %v1782, %v1782
    %v1855 = vmul.f32 %v1783, %v1783
    %v1856 = vmul.f32 %v1784, %v1784
    %v1857 = vsub.f32 %v1825, %v1785
    %v1858 = vsub.f32 %v1826, %v1786
    %v1859 = vsub.f32 %v1827, %v1787
    %v1860 = vsub.f32 %v1828, %v1788
    %v1861 = vsub.f32 %v1829, %v1789
    %v1862 = vsub.f32 %v1830, %v1790
    %v1863 = vsub.f32 %v1831, %v1791
    %v1864 = vsub.f32 %v1832, %v1792
    %v1865 = vsub.f32 %v1833, %v1793
    %v1866 = vsub.f32 %v1834, %v1794
    %v1867 = vsub.f32 %v1835, %v1795
    %v1868 = vsub.f32 %v1836, %v1796
    %v1869 = vsub.f32 %v1837, %v1797
    %v1870 = vsub.f32 %v1838, %v1798
    %v1871 = vsub.f32 %v1839, %v1799
    %v1872 = vsub.f32 %v1840, %v1800
    %v1873 = vsub.f32 %v1841, %v1801
    %v1874 = vsub.f32 %v1842, %v1802
    %v1875 = vsub.f32 %v1843, %v1803
    %v1876 = vsub.f32 %v1844, %v1804
    %v1877 = vsub.f32 %v1845, %v1805
    %v1878 = vsub.f32 %v1846, %v1806
    %v1879 = vsub.f32 %v1847, %v1807
    %v1880 = vsub.f32 %v1848, %v1808
    %v1881 = vsub.f32 %v1849, %v1809
    %v1882 = vsub.f32 %v1850, %v1810
    %v1883 = vsub.f32 %v1851, %v1811
    %v1884 = vsub.f32 %v1852, %v1812
    %v1885 = vsub.f32 %v1853, %v1813
    %v1886 = vsub.f32 %v1854, %v1814
    %v1887 = vsub.f32 %v1855, %v1815
    %v1888 = vsub.f32 %v1856, %v1816
    %v1889 = vadd.f32 %v1857, %v1865
    %v1890 = vadd.f32 %v1889, %v1873
    %v1891 = vadd.f32 %v1890, %v1881
    %v1892 = vrot.slane %v1891, 4
    %v1893 = vadd.f32 %v1891, %v1892
    %v1894 = vrot.slane %v1893, 2
    %v1895 = vadd.f32 %v1893, %v1894
    %v1896 = vrot.slane %v1895, 1
    %v1897 = vadd.f32 %v1895, %v1896
    %v1898 = vadd.f32 %v1858, %v1866
    %v1899 = vadd.f32 %v1898, %v1874
    %v1900 = vadd.f32 %v1899, %v1882
    %v1901 = vrot.slane %v1900, 4
    %v1902 = vadd.f32 %v1900, %v1901
    %v1903 = vrot.slane %v1902, 2
    %v1904 = vadd.f32 %v1902, %v1903
    %v1905 = vrot.slane %v1904, 1
    %v1906 = vadd.f32 %v1904, %v1905
    %v1907 = vadd.f32 %v1859, %v1867
    %v1908 = vadd.f32 %v1907, %v1875
    %v1909 = vadd.f32 %v1908, %v1883
    %v1910 = vrot.slane %v1909, 4
    %v1911 = vadd.f32 %v1909, %v1910
    %v1912 = vrot.slane %v1911, 2
    %v1913 = vadd.f32 %v1911, %v1912
    %v1914 = vrot.slane %v1913, 1
    %v1915 = vadd.f32 %v1913, %v1914
    %v1916 = vadd.f32 %v1860, %v1868
    %v1917 = vadd.f32 %v1916, %v1876
    %v1918 = vadd.f32 %v1917, %v1884
    %v1919 = vrot.slane %v1918, 4
    %v1920 = vadd.f32 %v1918, %v1919
    %v1921 = vrot.slane %v1920, 2
    %v1922 = vadd.f32 %v1920, %v1921
    %v1923 = vrot.slane %v1922, 1
    %v1924 = vadd.f32 %v1922, %v1923
    %v1925 = vadd.f32 %v1861, %v1869
    %v1926 = vadd.f32 %v1925, %v1877
    %v1927 = vadd.f32 %v1926, %v1885
    %v1928 = vrot.slane %v1927, 4
    %v1929 = vadd.f32 %v1927, %v1928
    %v1930 = vrot.slane %v1929, 2
    %v1931 = vadd.f32 %v1929, %v1930
    %v1932 = vrot.slane %v1931, 1
    %v1933 = vadd.f32 %v1931, %v1932
    %v1934 = vadd.f32 %v1862, %v1870
    %v1935 = vadd.f32 %v1934, %v1878
    %v1936 = vadd.f32 %v1935, %v1886
    %v1937 = vrot.slane %v1936, 4
    %v1938 = vadd.f32 %v1936, %v1937
    %v1939 = vrot.slane %v1938, 2
    %v1940 = vadd.f32 %v1938, %v1939
    %v1941 = vrot.slane %v1940, 1
    %v1942 = vadd.f32 %v1940, %v1941
    %v1943 = vadd.f32 %v1863, %v1871
    %v1944 = vadd.f32 %v1943, %v1879
    %v1945 = vadd.f32 %v1944, %v1887
    %v1946 = vrot.slane %v1945, 4
    %v1947 = vadd.f32 %v1945, %v1946
    %v1948 = vrot.slane %v1947, 2
    %v1949 = vadd.f32 %v1947, %v1948
    %v1950 = vrot.slane %v1949, 1
    %v1951 = vadd.f32 %v1949, %v1950
    %v1952 = vadd.f32 %v1864, %v1872
    %v1953 = vadd.f32 %v1952, %v1880
    %v1954 = vadd.f32 %v1953, %v1888
    %v1955 = vrot.slane %v1954, 4
    %v1956 = vadd.f32 %v1954, %v1955
    %v1957 = vrot.slane %v1956, 2
    %v1958 = vadd.f32 %v1956, %v1957
    %v1959 = vrot.slane %v1958, 1
    %v1960 = vadd.f32 %v1958, %v1959
    %v1961 = vmul.f32 %v1897, 0.5
    %v1962 = vmul.f32 %v1906, 0.5
    %v1963 = vmul.f32 %v1915, 0.5
    %v1964 = vmul.f32 %v1924, 0.5
    %v1965 = vmul.f32 %v1933, 0.5
    %v1966 = vmul.f32 %v1942, 0.5
    %v1967 = vmul.f32 %v1951, 0.5
    %v1968 = vmul.f32 %v1960, 0.5
    %v1969 = vadd.f32 %v1961, %v1817
    %v1970 = vadd.f32 %v1962, %v1818
    %v1971 = vadd.f32 %v1963, %v1819
    %v1972 = vadd.f32 %v1964, %v1820
    %v1973 = vadd.f32 %v1965, %v1821
    %v1974 = vadd.f32 %v1966, %v1822
    %v1975 = vadd.f32 %v1967, %v1823
    %v1976 = vadd.f32 %v1968, %v1824
    %s1977 = sld [smem:[#allocation2]]
    %v1978 = vstv %s1977
    %v1979 = vadd.f32 %v1969, %v1978
    %v1980 = vadd.f32 %v1970, %v1978
    %v1981 = vadd.f32 %v1971, %v1978
    %v1982 = vadd.f32 %v1972, %v1978
    %v1983 = vadd.f32 %v1973, %v1978
    %v1984 = vadd.f32 %v1974, %v1978
    %v1985 = vadd.f32 %v1975, %v1978
    %v1986 = vadd.f32 %v1976, %v1978
    %v1995 = vcombine.low %v1979, %v1980
    %v1996 = vcombine.low %v1981, %v1982
    %v1997 = vcombine.low %v1983, %v1984
    %v1998 = vcombine.low %v1985, %v1986
    %v2000 = vunpack.c.l.s4 1966171168
    %v2001 = vunpack.c.0.s8 %v2000
    %v2002 = vlaneseq
    %v2003 = vshrl.u32 %v2002, 7
    %v2004 = vsub.s32 %v2001, %v2003
    %v2005 = vrot.slane %v1995, %v2004
    %v2007 = vunpack.c.l.s4 1966171168
    %v2008 = vunpack.c.0.s8 %v2007
    %v2009 = vlaneseq
    %v2010 = vshrl.u32 %v2009, 7
    %v2011 = vsub.s32 %v2008, %v2010
    %v2012 = vrot.slane %v1996, %v2011
    %v2014 = vunpack.c.l.s4 1966171168
    %v2015 = vunpack.c.0.s8 %v2014
    %v2016 = vlaneseq
    %v2017 = vshrl.u32 %v2016, 7
    %v2018 = vsub.s32 %v2015, %v2017
    %v2019 = vrot.slane %v1997, %v2018
    %v2021 = vunpack.c.l.s4 1966171168
    %v2022 = vunpack.c.0.s8 %v2021
    %v2023 = vlaneseq
    %v2024 = vshrl.u32 %v2023, 7
    %v2025 = vsub.s32 %v2022, %v2024
    %v2026 = vrot.slane %v1998, %v2025
    %v2027 = vcombine.low %v2005, %v2012
    %v2028 = vcombine.low %v2019, %v2026
    %v2030 = vunpack.c.l.s4 1966171168
    %v2031 = vunpack.c.0.s8 %v2030
    %v2032 = vlaneseq
    %v2033 = vshrl.u32 %v2032, 7
    %v2034 = vsub.s32 %v2031, %v2033
    %v2035 = vrot.slane %v2027, %v2034
    %v2037 = vunpack.c.l.s4 1966171168
    %v2038 = vunpack.c.0.s8 %v2037
    %v2039 = vlaneseq
    %v2040 = vshrl.u32 %v2039, 7
    %v2041 = vsub.s32 %v2038, %v2040
    %v2042 = vrot.slane %v2028, %v2041
    %v2043 = vcombine.low %v2035, %v2042
    %2045 = vst [vmem:[#allocation3] sm:$0xff] %v2043
    // Predicated region
    $region14: #{tpu_custom_call.1} parent=1 // pred_check
      _
    $region15: #{tpu_custom_call.1} parent=1 // pred_check_branch
      %2047 = sbr.rel (0) target = $region17
    $region16: #{tpu_custom_call.1} parent=1 // pred_region
      %s2049 = ssub.s32 128, 128
      %2050 = vsyncadd [#allocation4], %s2049
      %s2052 = sshll.u32 [#allocation3], 4
      %s2053 = int_to_ptr.vmem [resolvable:$true] %s2052
      %2055 = dma.vmem_to_hbm [thread:$0]  %s2053, 128, %s3, [#allocation4]
    $region17: #{tpu_custom_call.1} parent=1 // pred_fallthru
      _
    // Predicated region
    $region18: #{tpu_custom_call.1} parent=1 // pred_check
      _
    $region19: #{tpu_custom_call.1} parent=1 // pred_check_branch
      %2057 = sbr.rel (0) target = $region21
    $region20: #{tpu_custom_call.1} parent=1 // pred_region
      %2058 = dma.done [#allocation4], 128
    $region21: #{tpu_custom_call.1} parent=1 // pred_fallthru
      _
    %2059 = vsyncpa [#allocation4], 1

</llo_original>
